<compile_context>
chip_gen: v5e
topology: v5e:2x2
jax: 0.10.0
libtpu: 0.0.40
codegen_flags: <defaults>
</compile_context>

<pallas_src>
import functools

import jax
import jax.numpy as jnp
from jax.experimental import pallas as pl
from jax.experimental.pallas import tpu as pltpu

_HIGHEST = jax.lax.Precision.HIGHEST


def _sigmoid_from_tanh(x):
    # sigmoid(x) == 0.5 * tanh(0.5 * x) + 0.5 : a single EUP tanh (v5e item).
    return 0.5 * jnp.tanh(0.5 * x) + 0.5


def rnn1_kernel(*refs, num_layers, hidden_size):
    """Fused multi-layer LSTM + final sigmoid.

    refs layout:
      refs[0]              : x        (B, T, D_in)        VMEM
      refs[1 : 1+2L]       : wih_t / whh_t per layer      VMEM (resident)
                             wih_t (D_in, 4H), whh_t (H, 4H),
                             PyTorch gate order (i, f, g, o)
      refs[1+2L]           : out      (B, T*H) lane-dense VMEM
    """
    H = hidden_size
    x_ref = refs[0]
    w_refs = refs[1:1 + 2 * num_layers]
    out_ref = refs[1 + 2 * num_layers]

    B, T, D0 = x_ref.shape

    # Per-gate pre-activation scale (hoisted, computed once): 0.5 for the
    # sigmoid gates i/f/o (tanh-based sigmoid), 1.0 for the candidate gate g.
    lane = jax.lax.broadcasted_iota(jnp.int32, (1, 4 * H), 1)
    gate_scale = jnp.where((lane >= 2 * H) & (lane < 3 * H),
                           jnp.float32(1.0), jnp.float32(0.5))

    # Layer-0 input rows are batch-major: row = b*T + t (no wrapper transpose).
    inp2d = x_ref[...].reshape(B * T, D0)
    t_major = False

    for layer in range(num_layers):
        wih_t = w_refs[2 * layer][...]       # (D_in, 4H)
        whh_t = w_refs[2 * layer + 1][...]   # (H, 4H)

        # Hoisted input projection: one MXU matmul over all timesteps.
        # TODO(synk): optionally keep whh_t staged in the MXU across the
        # unrolled timestep loop via pltpu.matmul_push_rhs/acc_lhs/pop; Mosaic
        # should already hoist the loop-invariant RHS push for the tiny
        # recurrent matmuls below.
        proj = jnp.dot(inp2d, wih_t, precision=_HIGHEST,
                       preferred_element_type=jnp.float32)   # (rows, 4H)

        if t_major:
            def step_proj(t, proj=proj):                     # rows = t*B + b
                return proj[t * B:(t + 1) * B, :]
        else:
            proj3 = proj.reshape(B, T, 4 * H)                # rows = b*T + t

            def step_proj(t, proj3=proj3):
                return proj3[:, t, :]

        def gate_math(gates, c_prev, first):
            # One lane-dense tanh over all 4H gate lanes.
            acts = jnp.tanh(gates * gate_scale)              # (B, 4H)
            sig = 0.5 * acts + 0.5                           # i/f/o lanes
            i_g = sig[:, 0 * H:1 * H]
            g_g = acts[:, 2 * H:3 * H]
            o_g = sig[:, 3 * H:4 * H]
            if first:                                        # c_prev == 0
                c = i_g * g_g
            else:
                f_g = sig[:, 1 * H:2 * H]
                c = f_g * c_prev + i_g * g_g
            h = o_g * jnp.tanh(c)
            return h, c

        h_list = []

        # t = 0: h0 = c0 = 0 -> skip the recurrent matmul and the forget path.
        h, c = gate_math(step_proj(0), None, True)
        h_list.append(h)

        # T is small and static -> fully unrolled; only h @ whh_t + gate math
        # are on the serial critical path.
        for t in range(1, T):
            gates = step_proj(t) + jnp.dot(
                h, whh_t, precision=_HIGHEST,
                preferred_element_type=jnp.float32)          # (B, 4H)
            h, c = gate_math(gates, c, False)
            h_list.append(h)

        if layer + 1 < num_layers:
            # Next layer consumes this layer's hidden sequence: one stack per
            # layer (values stay on-chip; no per-step scratch stores, no HBM
            # round trip).  Rows become time-major: row = t*B + b.
            inp2d = jnp.stack(h_list, axis=0).reshape(T * B, H)
            t_major = True
        else:
            # Lane-dense (B, T*H) output written once; the module's final
            # sigmoid is fused as a single wide tanh.
            out_wide = jnp.concatenate(h_list, axis=-1)      # (B, T*H)
            out_ref[...] = _sigmoid_from_tanh(out_wide).astype(out_ref.dtype)


def rnn1_forward(x, params_t):
    """Pallas RNN1.forward.

    x        : (B, T, input_size) f32, batch-first (same as the nn.Module).
    params_t : list of (wih_t, whh_t) per layer, already transposed:
               wih_t (D_in, 4H), whh_t (H, 4H).  See prepare_params().
    returns  : (B, T, H) = sigmoid(LSTM(x)).
    """
    B, T, _ = x.shape
    num_layers = len(params_t)
    H = params_t[0][1].shape[0]              # whh_t: (H, 4H)

    kernel = functools.partial(rnn1_kernel,
                               num_layers=num_layers, hidden_size=H)

    flat_w = [w for pair in params_t for w in pair]
    vmem_spec = pl.BlockSpec(memory_space=pltpu.MemorySpace.VMEM)

    out_wide = pl.pallas_call(
        kernel,
        out_shape=jax.ShapeDtypeStruct((B, T * H), x.dtype),
        in_specs=[vmem_spec] * (1 + 2 * num_layers),
        out_specs=vmem_spec,
    )(x, *flat_w)

    # (B, T*H) -> (B, T, H): row-major contiguous outside the kernel -> free.
    return out_wide.reshape(B, T, H)


def prepare_params(params):
    """Transpose PyTorch-layout weights ((4H, D) per layer) exactly once,
    outside the (jitted) forward, so no per-call transposes remain."""
    return [(jnp.transpose(w_ih), jnp.transpose(w_hh))
            for (w_ih, w_hh) in params]


def rnn1_reference(x, params):
    """Pure-JAX reference (matches PyTorch nn.LSTM(bias=False) + Sigmoid),
    with matmul precision pinned to f32 like the kernel."""
    y = x
    for (w_ih, w_hh) in params:
        H = w_hh.shape[1]
        B = y.shape[0]
        h0 = jnp.zeros((B, H), jnp.float32)
        c0 = jnp.zeros((B, H), jnp.float32)

        def step(carry, x_t, w_ih=w_ih, w_hh=w_hh, H=H):
            h, c = carry
            gates = (jnp.dot(x_t, w_ih.T, precision=_HIGHEST)
                     + jnp.dot(h, w_hh.T, precision=_HIGHEST))
            i = jax.nn.sigmoid(gates[:, 0 * H:1 * H])
            f = jax.nn.sigmoid(gates[:, 1 * H:2 * H])
            g = jnp.tanh(gates[:, 2 * H:3 * H])
            o = jax.nn.sigmoid(gates[:, 3 * H:4 * H])
            c = f * c + i * g
            h = o * jnp.tanh(c)
            return (h, c), h

        (_, _), hs = jax.lax.scan(step, (h0, c0), jnp.transpose(y, (1, 0, 2)))
        y = jnp.transpose(hs, (1, 0, 2))
    return jax.nn.sigmoid(y)


def init_params(key, input_size, hidden_size, num_layers):
    """Deterministic init of LSTM weights in PyTorch layout ((4H, D) per layer)."""
    params = []
    k = 1.0 / jnp.sqrt(hidden_size)
    for layer in range(num_layers):
        d_in = input_size if layer == 0 else hidden_size
        key, k1, k2 = jax.random.split(key, 3)
        w_ih = jax.random.uniform(k1, (4 * hidden_size, d_in),
                                  jnp.float32, minval=-k, maxval=k)
        w_hh = jax.random.uniform(k2, (4 * hidden_size, hidden_size),
                                  jnp.float32, minval=-k, maxval=k)
        params.append((w_ih, w_hh))
    return params


if __name__ == "__main__":
    # small shapes consistent with the module: batch=2, seq=8, input=16, hidden=32
    B, T, INPUT_SIZE, HIDDEN_SIZE, NUM_LAYERS = 2, 8, 16, 32, 2

    key = jax.random.PRNGKey(0)
    key, kx = jax.random.split(key)
    x = jax.random.normal(kx, (B, T, INPUT_SIZE), jnp.float32)
    params_pt = init_params(key, INPUT_SIZE, HIDDEN_SIZE, NUM_LAYERS)
    params_k = prepare_params(params_pt)     # one-time weight transpose (cold path)

    forward = jax.jit(rnn1_forward)          # jit the end-to-end call
    out = jax.block_until_ready(forward(x, params_k))

    ref = jax.block_until_ready(rnn1_reference(x, params_pt))
    assert out.shape == (B, T, HIDDEN_SIZE), out.shape
    assert jnp.allclose(out, ref, atol=1e-5, rtol=1e-5), \
        f"max abs err = {jnp.max(jnp.abs(out - ref))}"

    print("KERNEL_OK")
</pallas_src>

<mosaic_0001>
module attributes {stable_mosaic.version = 11 : i64} {
  func.func @rnn1_kernel(%arg0: memref<2x8x16xf32, #tpu.memory_space<vmem>>, %arg1: memref<16x128xf32, #tpu.memory_space<vmem>>, %arg2: memref<32x128xf32, #tpu.memory_space<vmem>>, %arg3: memref<32x128xf32, #tpu.memory_space<vmem>>, %arg4: memref<32x128xf32, #tpu.memory_space<vmem>>, %arg5: memref<2x256xf32, #tpu.memory_space<vmem>>) attributes {dimension_semantics = [], scalar_prefetch = 0 : i64, scratch_operands = 0 : i64, tpu.core_type = #tpu.core_type<tc>} {
    %0 = tpu.iota {dimensions = array<i32: 1>} : vector<1x128xi32>
    %c64_i32 = arith.constant 64 : i32
    %1 = vector.broadcast %c64_i32 : i32 to vector<1x128xi32>
    %2 = arith.cmpi sge, %0, %1 : vector<1x128xi32>
    %c96_i32 = arith.constant 96 : i32
    %3 = vector.broadcast %c96_i32 : i32 to vector<1x128xi32>
    %4 = arith.cmpi slt, %0, %3 : vector<1x128xi32>
    %5 = arith.andi %2, %4 : vector<1x128xi1>
    %cst = arith.constant 1.000000e+00 : f32
    %cst_0 = arith.constant 5.000000e-01 : f32
    %6 = vector.broadcast %cst : f32 to vector<1x128xf32>
    %7 = vector.broadcast %cst_0 : f32 to vector<1x128xf32>
    %8 = arith.select %5, %6, %7 : vector<1x128xi1>, vector<1x128xf32>
    %c0 = arith.constant 0 : index
    %c0_1 = arith.constant 0 : index
    %c0_2 = arith.constant 0 : index
    %9 = vector.load %arg0[%c0, %c0_1, %c0_2] : memref<2x8x16xf32, #tpu.memory_space<vmem>>, vector<2x8x16xf32>
    %10 = vector.shape_cast %9 : vector<2x8x16xf32> to vector<16x16xf32>
    %c0_3 = arith.constant 0 : index
    %c0_4 = arith.constant 0 : index
    %11 = vector.load %arg1[%c0_3, %c0_4] : memref<16x128xf32, #tpu.memory_space<vmem>>, vector<16x128xf32>
    %c0_5 = arith.constant 0 : index
    %c0_6 = arith.constant 0 : index
    %12 = vector.load %arg2[%c0_5, %c0_6] : memref<32x128xf32, #tpu.memory_space<vmem>>, vector<32x128xf32>
    %cst_7 = arith.constant dense<0.000000e+00> : vector<16x128xf32>
    %13 = tpu.matmul %10, %11, %cst_7 {dimension_numbers = #tpu.dot_dimension_numbers<[1], [0], [0], [1], [0, 0, 1, 1], [], []>, precision = #tpu.contract_precision<fp32>} : vector<16x16xf32>, vector<16x128xf32>, vector<16x128xf32> -> vector<16x128xf32>
    %14 = vector.shape_cast %13 : vector<16x128xf32> to vector<2x8x128xf32>
    %15 = vector.extract_strided_slice %14 {offsets = [0, 0, 0], sizes = [2, 1, 128], strides = [1, 1, 1]} : vector<2x8x128xf32> to vector<2x1x128xf32>
    %16 = vector.shape_cast %15 : vector<2x1x128xf32> to vector<2x128xf32>
    %17 = vector.broadcast %8 : vector<1x128xf32> to vector<2x128xf32>
    %18 = arith.mulf %16, %17 : vector<2x128xf32>
    %19 = math.tanh %18 : vector<2x128xf32>
    %cst_8 = arith.constant 5.000000e-01 : f32
    %20 = vector.broadcast %cst_8 : f32 to vector<2x128xf32>
    %21 = arith.mulf %20, %19 : vector<2x128xf32>
    %cst_9 = arith.constant 5.000000e-01 : f32
    %22 = vector.broadcast %cst_9 : f32 to vector<2x128xf32>
    %23 = arith.addf %21, %22 : vector<2x128xf32>
    %24 = vector.extract_strided_slice %23 {offsets = [0, 0], sizes = [2, 32], strides = [1, 1]} : vector<2x128xf32> to vector<2x32xf32>
    %25 = vector.extract_strided_slice %19 {offsets = [0, 64], sizes = [2, 32], strides = [1, 1]} : vector<2x128xf32> to vector<2x32xf32>
    %26 = vector.extract_strided_slice %23 {offsets = [0, 96], sizes = [2, 32], strides = [1, 1]} : vector<2x128xf32> to vector<2x32xf32>
    %27 = arith.mulf %24, %25 : vector<2x32xf32>
    %28 = math.tanh %27 : vector<2x32xf32>
    %29 = arith.mulf %26, %28 : vector<2x32xf32>
    %30 = vector.extract_strided_slice %14 {offsets = [0, 1, 0], sizes = [2, 1, 128], strides = [1, 1, 1]} : vector<2x8x128xf32> to vector<2x1x128xf32>
    %31 = vector.shape_cast %30 : vector<2x1x128xf32> to vector<2x128xf32>
    %cst_10 = arith.constant dense<0.000000e+00> : vector<2x128xf32>
    %32 = tpu.matmul %29, %12, %cst_10 {dimension_numbers = #tpu.dot_dimension_numbers<[1], [0], [0], [1], [0, 0, 1, 1], [], []>, precision = #tpu.contract_precision<fp32>} : vector<2x32xf32>, vector<32x128xf32>, vector<2x128xf32> -> vector<2x128xf32>
    %33 = arith.addf %31, %32 : vector<2x128xf32>
    %34 = vector.broadcast %8 : vector<1x128xf32> to vector<2x128xf32>
    %35 = arith.mulf %33, %34 : vector<2x128xf32>
    %36 = math.tanh %35 : vector<2x128xf32>
    %cst_11 = arith.constant 5.000000e-01 : f32
    %37 = vector.broadcast %cst_11 : f32 to vector<2x128xf32>
    %38 = arith.mulf %37, %36 : vector<2x128xf32>
    %cst_12 = arith.constant 5.000000e-01 : f32
    %39 = vector.broadcast %cst_12 : f32 to vector<2x128xf32>
    %40 = arith.addf %38, %39 : vector<2x128xf32>
    %41 = vector.extract_strided_slice %40 {offsets = [0, 0], sizes = [2, 32], strides = [1, 1]} : vector<2x128xf32> to vector<2x32xf32>
    %42 = vector.extract_strided_slice %36 {offsets = [0, 64], sizes = [2, 32], strides = [1, 1]} : vector<2x128xf32> to vector<2x32xf32>
    %43 = vector.extract_strided_slice %40 {offsets = [0, 96], sizes = [2, 32], strides = [1, 1]} : vector<2x128xf32> to vector<2x32xf32>
    %44 = vector.extract_strided_slice %40 {offsets = [0, 32], sizes = [2, 32], strides = [1, 1]} : vector<2x128xf32> to vector<2x32xf32>
    %45 = arith.mulf %44, %27 : vector<2x32xf32>
    %46 = arith.mulf %41, %42 : vector<2x32xf32>
    %47 = arith.addf %45, %46 : vector<2x32xf32>
    %48 = math.tanh %47 : vector<2x32xf32>
    %49 = arith.mulf %43, %48 : vector<2x32xf32>
    %50 = vector.extract_strided_slice %14 {offsets = [0, 2, 0], sizes = [2, 1, 128], strides = [1, 1, 1]} : vector<2x8x128xf32> to vector<2x1x128xf32>
    %51 = vector.shape_cast %50 : vector<2x1x128xf32> to vector<2x128xf32>
    %cst_13 = arith.constant dense<0.000000e+00> : vector<2x128xf32>
    %52 = tpu.matmul %49, %12, %cst_13 {dimension_numbers = #tpu.dot_dimension_numbers<[1], [0], [0], [1], [0, 0, 1, 1], [], []>, precision = #tpu.contract_precision<fp32>} : vector<2x32xf32>, vector<32x128xf32>, vector<2x128xf32> -> vector<2x128xf32>
    %53 = arith.addf %51, %52 : vector<2x128xf32>
    %54 = vector.broadcast %8 : vector<1x128xf32> to vector<2x128xf32>
    %55 = arith.mulf %53, %54 : vector<2x128xf32>
    %56 = math.tanh %55 : vector<2x128xf32>
    %cst_14 = arith.constant 5.000000e-01 : f32
    %57 = vector.broadcast %cst_14 : f32 to vector<2x128xf32>
    %58 = arith.mulf %57, %56 : vector<2x128xf32>
    %cst_15 = arith.constant 5.000000e-01 : f32
    %59 = vector.broadcast %cst_15 : f32 to vector<2x128xf32>
    %60 = arith.addf %58, %59 : vector<2x128xf32>
    %61 = vector.extract_strided_slice %60 {offsets = [0, 0], sizes = [2, 32], strides = [1, 1]} : vector<2x128xf32> to vector<2x32xf32>
    %62 = vector.extract_strided_slice %56 {offsets = [0, 64], sizes = [2, 32], strides = [1, 1]} : vector<2x128xf32> to vector<2x32xf32>
    %63 = vector.extract_strided_slice %60 {offsets = [0, 96], sizes = [2, 32], strides = [1, 1]} : vector<2x128xf32> to vector<2x32xf32>
    %64 = vector.extract_strided_slice %60 {offsets = [0, 32], sizes = [2, 32], strides = [1, 1]} : vector<2x128xf32> to vector<2x32xf32>
    %65 = arith.mulf %64, %47 : vector<2x32xf32>
    %66 = arith.mulf %61, %62 : vector<2x32xf32>
    %67 = arith.addf %65, %66 : vector<2x32xf32>
    %68 = math.tanh %67 : vector<2x32xf32>
    %69 = arith.mulf %63, %68 : vector<2x32xf32>
    %70 = vector.extract_strided_slice %14 {offsets = [0, 3, 0], sizes = [2, 1, 128], strides = [1, 1, 1]} : vector<2x8x128xf32> to vector<2x1x128xf32>
    %71 = vector.shape_cast %70 : vector<2x1x128xf32> to vector<2x128xf32>
    %cst_16 = arith.constant dense<0.000000e+00> : vector<2x128xf32>
    %72 = tpu.matmul %69, %12, %cst_16 {dimension_numbers = #tpu.dot_dimension_numbers<[1], [0], [0], [1], [0, 0, 1, 1], [], []>, precision = #tpu.contract_precision<fp32>} : vector<2x32xf32>, vector<32x128xf32>, vector<2x128xf32> -> vector<2x128xf32>
    %73 = arith.addf %71, %72 : vector<2x128xf32>
    %74 = vector.broadcast %8 : vector<1x128xf32> to vector<2x128xf32>
    %75 = arith.mulf %73, %74 : vector<2x128xf32>
    %76 = math.tanh %75 : vector<2x128xf32>
    %cst_17 = arith.constant 5.000000e-01 : f32
    %77 = vector.broadcast %cst_17 : f32 to vector<2x128xf32>
    %78 = arith.mulf %77, %76 : vector<2x128xf32>
    %cst_18 = arith.constant 5.000000e-01 : f32
    %79 = vector.broadcast %cst_18 : f32 to vector<2x128xf32>
    %80 = arith.addf %78, %79 : vector<2x128xf32>
    %81 = vector.extract_strided_slice %80 {offsets = [0, 0], sizes = [2, 32], strides = [1, 1]} : vector<2x128xf32> to vector<2x32xf32>
    %82 = vector.extract_strided_slice %76 {offsets = [0, 64], sizes = [2, 32], strides = [1, 1]} : vector<2x128xf32> to vector<2x32xf32>
    %83 = vector.extract_strided_slice %80 {offsets = [0, 96], sizes = [2, 32], strides = [1, 1]} : vector<2x128xf32> to vector<2x32xf32>
    %84 = vector.extract_strided_slice %80 {offsets = [0, 32], sizes = [2, 32], strides = [1, 1]} : vector<2x128xf32> to vector<2x32xf32>
    %85 = arith.mulf %84, %67 : vector<2x32xf32>
    %86 = arith.mulf %81, %82 : vector<2x32xf32>
    %87 = arith.addf %85, %86 : vector<2x32xf32>
    %88 = math.tanh %87 : vector<2x32xf32>
    %89 = arith.mulf %83, %88 : vector<2x32xf32>
    %90 = vector.extract_strided_slice %14 {offsets = [0, 4, 0], sizes = [2, 1, 128], strides = [1, 1, 1]} : vector<2x8x128xf32> to vector<2x1x128xf32>
    %91 = vector.shape_cast %90 : vector<2x1x128xf32> to vector<2x128xf32>
    %cst_19 = arith.constant dense<0.000000e+00> : vector<2x128xf32>
    %92 = tpu.matmul %89, %12, %cst_19 {dimension_numbers = #tpu.dot_dimension_numbers<[1], [0], [0], [1], [0, 0, 1, 1], [], []>, precision = #tpu.contract_precision<fp32>} : vector<2x32xf32>, vector<32x128xf32>, vector<2x128xf32> -> vector<2x128xf32>
    %93 = arith.addf %91, %92 : vector<2x128xf32>
    %94 = vector.broadcast %8 : vector<1x128xf32> to vector<2x128xf32>
    %95 = arith.mulf %93, %94 : vector<2x128xf32>
    %96 = math.tanh %95 : vector<2x128xf32>
    %cst_20 = arith.constant 5.000000e-01 : f32
    %97 = vector.broadcast %cst_20 : f32 to vector<2x128xf32>
    %98 = arith.mulf %97, %96 : vector<2x128xf32>
    %cst_21 = arith.constant 5.000000e-01 : f32
    %99 = vector.broadcast %cst_21 : f32 to vector<2x128xf32>
    %100 = arith.addf %98, %99 : vector<2x128xf32>
    %101 = vector.extract_strided_slice %100 {offsets = [0, 0], sizes = [2, 32], strides = [1, 1]} : vector<2x128xf32> to vector<2x32xf32>
    %102 = vector.extract_strided_slice %96 {offsets = [0, 64], sizes = [2, 32], strides = [1, 1]} : vector<2x128xf32> to vector<2x32xf32>
    %103 = vector.extract_strided_slice %100 {offsets = [0, 96], sizes = [2, 32], strides = [1, 1]} : vector<2x128xf32> to vector<2x32xf32>
    %104 = vector.extract_strided_slice %100 {offsets = [0, 32], sizes = [2, 32], strides = [1, 1]} : vector<2x128xf32> to vector<2x32xf32>
    %105 = arith.mulf %104, %87 : vector<2x32xf32>
    %106 = arith.mulf %101, %102 : vector<2x32xf32>
    %107 = arith.addf %105, %106 : vector<2x32xf32>
    %108 = math.tanh %107 : vector<2x32xf32>
    %109 = arith.mulf %103, %108 : vector<2x32xf32>
    %110 = vector.extract_strided_slice %14 {offsets = [0, 5, 0], sizes = [2, 1, 128], strides = [1, 1, 1]} : vector<2x8x128xf32> to vector<2x1x128xf32>
    %111 = vector.shape_cast %110 : vector<2x1x128xf32> to vector<2x128xf32>
    %cst_22 = arith.constant dense<0.000000e+00> : vector<2x128xf32>
    %112 = tpu.matmul %109, %12, %cst_22 {dimension_numbers = #tpu.dot_dimension_numbers<[1], [0], [0], [1], [0, 0, 1, 1], [], []>, precision = #tpu.contract_precision<fp32>} : vector<2x32xf32>, vector<32x128xf32>, vector<2x128xf32> -> vector<2x128xf32>
    %113 = arith.addf %111, %112 : vector<2x128xf32>
    %114 = vector.broadcast %8 : vector<1x128xf32> to vector<2x128xf32>
    %115 = arith.mulf %113, %114 : vector<2x128xf32>
    %116 = math.tanh %115 : vector<2x128xf32>
    %cst_23 = arith.constant 5.000000e-01 : f32
    %117 = vector.broadcast %cst_23 : f32 to vector<2x128xf32>
    %118 = arith.mulf %117, %116 : vector<2x128xf32>
    %cst_24 = arith.constant 5.000000e-01 : f32
    %119 = vector.broadcast %cst_24 : f32 to vector<2x128xf32>
    %120 = arith.addf %118, %119 : vector<2x128xf32>
    %121 = vector.extract_strided_slice %120 {offsets = [0, 0], sizes = [2, 32], strides = [1, 1]} : vector<2x128xf32> to vector<2x32xf32>
    %122 = vector.extract_strided_slice %116 {offsets = [0, 64], sizes = [2, 32], strides = [1, 1]} : vector<2x128xf32> to vector<2x32xf32>
    %123 = vector.extract_strided_slice %120 {offsets = [0, 96], sizes = [2, 32], strides = [1, 1]} : vector<2x128xf32> to vector<2x32xf32>
    %124 = vector.extract_strided_slice %120 {offsets = [0, 32], sizes = [2, 32], strides = [1, 1]} : vector<2x128xf32> to vector<2x32xf32>
    %125 = arith.mulf %124, %107 : vector<2x32xf32>
    %126 = arith.mulf %121, %122 : vector<2x32xf32>
    %127 = arith.addf %125, %126 : vector<2x32xf32>
    %128 = math.tanh %127 : vector<2x32xf32>
    %129 = arith.mulf %123, %128 : vector<2x32xf32>
    %130 = vector.extract_strided_slice %14 {offsets = [0, 6, 0], sizes = [2, 1, 128], strides = [1, 1, 1]} : vector<2x8x128xf32> to vector<2x1x128xf32>
    %131 = vector.shape_cast %130 : vector<2x1x128xf32> to vector<2x128xf32>
    %cst_25 = arith.constant dense<0.000000e+00> : vector<2x128xf32>
    %132 = tpu.matmul %129, %12, %cst_25 {dimension_numbers = #tpu.dot_dimension_numbers<[1], [0], [0], [1], [0, 0, 1, 1], [], []>, precision = #tpu.contract_precision<fp32>} : vector<2x32xf32>, vector<32x128xf32>, vector<2x128xf32> -> vector<2x128xf32>
    %133 = arith.addf %131, %132 : vector<2x128xf32>
    %134 = vector.broadcast %8 : vector<1x128xf32> to vector<2x128xf32>
    %135 = arith.mulf %133, %134 : vector<2x128xf32>
    %136 = math.tanh %135 : vector<2x128xf32>
    %cst_26 = arith.constant 5.000000e-01 : f32
    %137 = vector.broadcast %cst_26 : f32 to vector<2x128xf32>
    %138 = arith.mulf %137, %136 : vector<2x128xf32>
    %cst_27 = arith.constant 5.000000e-01 : f32
    %139 = vector.broadcast %cst_27 : f32 to vector<2x128xf32>
    %140 = arith.addf %138, %139 : vector<2x128xf32>
    %141 = vector.extract_strided_slice %140 {offsets = [0, 0], sizes = [2, 32], strides = [1, 1]} : vector<2x128xf32> to vector<2x32xf32>
    %142 = vector.extract_strided_slice %136 {offsets = [0, 64], sizes = [2, 32], strides = [1, 1]} : vector<2x128xf32> to vector<2x32xf32>
    %143 = vector.extract_strided_slice %140 {offsets = [0, 96], sizes = [2, 32], strides = [1, 1]} : vector<2x128xf32> to vector<2x32xf32>
    %144 = vector.extract_strided_slice %140 {offsets = [0, 32], sizes = [2, 32], strides = [1, 1]} : vector<2x128xf32> to vector<2x32xf32>
    %145 = arith.mulf %144, %127 : vector<2x32xf32>
    %146 = arith.mulf %141, %142 : vector<2x32xf32>
    %147 = arith.addf %145, %146 : vector<2x32xf32>
    %148 = math.tanh %147 : vector<2x32xf32>
    %149 = arith.mulf %143, %148 : vector<2x32xf32>
    %150 = vector.extract_strided_slice %14 {offsets = [0, 7, 0], sizes = [2, 1, 128], strides = [1, 1, 1]} : vector<2x8x128xf32> to vector<2x1x128xf32>
    %151 = vector.shape_cast %150 : vector<2x1x128xf32> to vector<2x128xf32>
    %cst_28 = arith.constant dense<0.000000e+00> : vector<2x128xf32>
    %152 = tpu.matmul %149, %12, %cst_28 {dimension_numbers = #tpu.dot_dimension_numbers<[1], [0], [0], [1], [0, 0, 1, 1], [], []>, precision = #tpu.contract_precision<fp32>} : vector<2x32xf32>, vector<32x128xf32>, vector<2x128xf32> -> vector<2x128xf32>
    %153 = arith.addf %151, %152 : vector<2x128xf32>
    %154 = vector.broadcast %8 : vector<1x128xf32> to vector<2x128xf32>
    %155 = arith.mulf %153, %154 : vector<2x128xf32>
    %156 = math.tanh %155 : vector<2x128xf32>
    %cst_29 = arith.constant 5.000000e-01 : f32
    %157 = vector.broadcast %cst_29 : f32 to vector<2x128xf32>
    %158 = arith.mulf %157, %156 : vector<2x128xf32>
    %cst_30 = arith.constant 5.000000e-01 : f32
    %159 = vector.broadcast %cst_30 : f32 to vector<2x128xf32>
    %160 = arith.addf %158, %159 : vector<2x128xf32>
    %161 = vector.extract_strided_slice %160 {offsets = [0, 0], sizes = [2, 32], strides = [1, 1]} : vector<2x128xf32> to vector<2x32xf32>
    %162 = vector.extract_strided_slice %156 {offsets = [0, 64], sizes = [2, 32], strides = [1, 1]} : vector<2x128xf32> to vector<2x32xf32>
    %163 = vector.extract_strided_slice %160 {offsets = [0, 96], sizes = [2, 32], strides = [1, 1]} : vector<2x128xf32> to vector<2x32xf32>
    %164 = vector.extract_strided_slice %160 {offsets = [0, 32], sizes = [2, 32], strides = [1, 1]} : vector<2x128xf32> to vector<2x32xf32>
    %165 = arith.mulf %164, %147 : vector<2x32xf32>
    %166 = arith.mulf %161, %162 : vector<2x32xf32>
    %167 = arith.addf %165, %166 : vector<2x32xf32>
    %168 = math.tanh %167 : vector<2x32xf32>
    %169 = arith.mulf %163, %168 : vector<2x32xf32>
    %170 = vector.shape_cast %29 : vector<2x32xf32> to vector<1x2x32xf32>
    %171 = vector.shape_cast %49 : vector<2x32xf32> to vector<1x2x32xf32>
    %172 = vector.shape_cast %69 : vector<2x32xf32> to vector<1x2x32xf32>
    %173 = vector.shape_cast %89 : vector<2x32xf32> to vector<1x2x32xf32>
    %174 = vector.shape_cast %109 : vector<2x32xf32> to vector<1x2x32xf32>
    %175 = vector.shape_cast %129 : vector<2x32xf32> to vector<1x2x32xf32>
    %176 = vector.shape_cast %149 : vector<2x32xf32> to vector<1x2x32xf32>
    %177 = vector.shape_cast %169 : vector<2x32xf32> to vector<1x2x32xf32>
    %178 = tpu.concatenate %170, %171, %172, %173, %174, %175, %176, %177 in 0 : vector<1x2x32xf32>, vector<1x2x32xf32>, vector<1x2x32xf32>, vector<1x2x32xf32>, vector<1x2x32xf32>, vector<1x2x32xf32>, vector<1x2x32xf32>, vector<1x2x32xf32> -> vector<8x2x32xf32>
    %179 = vector.shape_cast %178 : vector<8x2x32xf32> to vector<16x32xf32>
    %c0_31 = arith.constant 0 : index
    %c0_32 = arith.constant 0 : index
    %180 = vector.load %arg3[%c0_31, %c0_32] : memref<32x128xf32, #tpu.memory_space<vmem>>, vector<32x128xf32>
    %c0_33 = arith.constant 0 : index
    %c0_34 = arith.constant 0 : index
    %181 = vector.load %arg4[%c0_33, %c0_34] : memref<32x128xf32, #tpu.memory_space<vmem>>, vector<32x128xf32>
    %cst_35 = arith.constant dense<0.000000e+00> : vector<16x128xf32>
    %182 = tpu.matmul %179, %180, %cst_35 {dimension_numbers = #tpu.dot_dimension_numbers<[1], [0], [0], [1], [0, 0, 1, 1], [], []>, precision = #tpu.contract_precision<fp32>} : vector<16x32xf32>, vector<32x128xf32>, vector<16x128xf32> -> vector<16x128xf32>
    %183 = vector.extract_strided_slice %182 {offsets = [0, 0], sizes = [2, 128], strides = [1, 1]} : vector<16x128xf32> to vector<2x128xf32>
    %184 = vector.broadcast %8 : vector<1x128xf32> to vector<2x128xf32>
    %185 = arith.mulf %183, %184 : vector<2x128xf32>
    %186 = math.tanh %185 : vector<2x128xf32>
    %cst_36 = arith.constant 5.000000e-01 : f32
    %187 = vector.broadcast %cst_36 : f32 to vector<2x128xf32>
    %188 = arith.mulf %187, %186 : vector<2x128xf32>
    %cst_37 = arith.constant 5.000000e-01 : f32
    %189 = vector.broadcast %cst_37 : f32 to vector<2x128xf32>
    %190 = arith.addf %188, %189 : vector<2x128xf32>
    %191 = vector.extract_strided_slice %190 {offsets = [0, 0], sizes = [2, 32], strides = [1, 1]} : vector<2x128xf32> to vector<2x32xf32>
    %192 = vector.extract_strided_slice %186 {offsets = [0, 64], sizes = [2, 32], strides = [1, 1]} : vector<2x128xf32> to vector<2x32xf32>
    %193 = vector.extract_strided_slice %190 {offsets = [0, 96], sizes = [2, 32], strides = [1, 1]} : vector<2x128xf32> to vector<2x32xf32>
    %194 = arith.mulf %191, %192 : vector<2x32xf32>
    %195 = math.tanh %194 : vector<2x32xf32>
    %196 = arith.mulf %193, %195 : vector<2x32xf32>
    %197 = vector.extract_strided_slice %182 {offsets = [2, 0], sizes = [2, 128], strides = [1, 1]} : vector<16x128xf32> to vector<2x128xf32>
    %cst_38 = arith.constant dense<0.000000e+00> : vector<2x128xf32>
    %198 = tpu.matmul %196, %181, %cst_38 {dimension_numbers = #tpu.dot_dimension_numbers<[1], [0], [0], [1], [0, 0, 1, 1], [], []>, precision = #tpu.contract_precision<fp32>} : vector<2x32xf32>, vector<32x128xf32>, vector<2x128xf32> -> vector<2x128xf32>
    %199 = arith.addf %197, %198 : vector<2x128xf32>
    %200 = vector.broadcast %8 : vector<1x128xf32> to vector<2x128xf32>
    %201 = arith.mulf %199, %200 : vector<2x128xf32>
    %202 = math.tanh %201 : vector<2x128xf32>
    %cst_39 = arith.constant 5.000000e-01 : f32
    %203 = vector.broadcast %cst_39 : f32 to vector<2x128xf32>
    %204 = arith.mulf %203, %202 : vector<2x128xf32>
    %cst_40 = arith.constant 5.000000e-01 : f32
    %205 = vector.broadcast %cst_40 : f32 to vector<2x128xf32>
    %206 = arith.addf %204, %205 : vector<2x128xf32>
    %207 = vector.extract_strided_slice %206 {offsets = [0, 0], sizes = [2, 32], strides = [1, 1]} : vector<2x128xf32> to vector<2x32xf32>
    %208 = vector.extract_strided_slice %202 {offsets = [0, 64], sizes = [2, 32], strides = [1, 1]} : vector<2x128xf32> to vector<2x32xf32>
    %209 = vector.extract_strided_slice %206 {offsets = [0, 96], sizes = [2, 32], strides = [1, 1]} : vector<2x128xf32> to vector<2x32xf32>
    %210 = vector.extract_strided_slice %206 {offsets = [0, 32], sizes = [2, 32], strides = [1, 1]} : vector<2x128xf32> to vector<2x32xf32>
    %211 = arith.mulf %210, %194 : vector<2x32xf32>
    %212 = arith.mulf %207, %208 : vector<2x32xf32>
    %213 = arith.addf %211, %212 : vector<2x32xf32>
    %214 = math.tanh %213 : vector<2x32xf32>
    %215 = arith.mulf %209, %214 : vector<2x32xf32>
    %216 = vector.extract_strided_slice %182 {offsets = [4, 0], sizes = [2, 128], strides = [1, 1]} : vector<16x128xf32> to vector<2x128xf32>
    %cst_41 = arith.constant dense<0.000000e+00> : vector<2x128xf32>
    %217 = tpu.matmul %215, %181, %cst_41 {dimension_numbers = #tpu.dot_dimension_numbers<[1], [0], [0], [1], [0, 0, 1, 1], [], []>, precision = #tpu.contract_precision<fp32>} : vector<2x32xf32>, vector<32x128xf32>, vector<2x128xf32> -> vector<2x128xf32>
    %218 = arith.addf %216, %217 : vector<2x128xf32>
    %219 = vector.broadcast %8 : vector<1x128xf32> to vector<2x128xf32>
    %220 = arith.mulf %218, %219 : vector<2x128xf32>
    %221 = math.tanh %220 : vector<2x128xf32>
    %cst_42 = arith.constant 5.000000e-01 : f32
    %222 = vector.broadcast %cst_42 : f32 to vector<2x128xf32>
    %223 = arith.mulf %222, %221 : vector<2x128xf32>
    %cst_43 = arith.constant 5.000000e-01 : f32
    %224 = vector.broadcast %cst_43 : f32 to vector<2x128xf32>
    %225 = arith.addf %223, %224 : vector<2x128xf32>
    %226 = vector.extract_strided_slice %225 {offsets = [0, 0], sizes = [2, 32], strides = [1, 1]} : vector<2x128xf32> to vector<2x32xf32>
    %227 = vector.extract_strided_slice %221 {offsets = [0, 64], sizes = [2, 32], strides = [1, 1]} : vector<2x128xf32> to vector<2x32xf32>
    %228 = vector.extract_strided_slice %225 {offsets = [0, 96], sizes = [2, 32], strides = [1, 1]} : vector<2x128xf32> to vector<2x32xf32>
    %229 = vector.extract_strided_slice %225 {offsets = [0, 32], sizes = [2, 32], strides = [1, 1]} : vector<2x128xf32> to vector<2x32xf32>
    %230 = arith.mulf %229, %213 : vector<2x32xf32>
    %231 = arith.mulf %226, %227 : vector<2x32xf32>
    %232 = arith.addf %230, %231 : vector<2x32xf32>
    %233 = math.tanh %232 : vector<2x32xf32>
    %234 = arith.mulf %228, %233 : vector<2x32xf32>
    %235 = vector.extract_strided_slice %182 {offsets = [6, 0], sizes = [2, 128], strides = [1, 1]} : vector<16x128xf32> to vector<2x128xf32>
    %cst_44 = arith.constant dense<0.000000e+00> : vector<2x128xf32>
    %236 = tpu.matmul %234, %181, %cst_44 {dimension_numbers = #tpu.dot_dimension_numbers<[1], [0], [0], [1], [0, 0, 1, 1], [], []>, precision = #tpu.contract_precision<fp32>} : vector<2x32xf32>, vector<32x128xf32>, vector<2x128xf32> -> vector<2x128xf32>
    %237 = arith.addf %235, %236 : vector<2x128xf32>
    %238 = vector.broadcast %8 : vector<1x128xf32> to vector<2x128xf32>
    %239 = arith.mulf %237, %238 : vector<2x128xf32>
    %240 = math.tanh %239 : vector<2x128xf32>
    %cst_45 = arith.constant 5.000000e-01 : f32
    %241 = vector.broadcast %cst_45 : f32 to vector<2x128xf32>
    %242 = arith.mulf %241, %240 : vector<2x128xf32>
    %cst_46 = arith.constant 5.000000e-01 : f32
    %243 = vector.broadcast %cst_46 : f32 to vector<2x128xf32>
    %244 = arith.addf %242, %243 : vector<2x128xf32>
    %245 = vector.extract_strided_slice %244 {offsets = [0, 0], sizes = [2, 32], strides = [1, 1]} : vector<2x128xf32> to vector<2x32xf32>
    %246 = vector.extract_strided_slice %240 {offsets = [0, 64], sizes = [2, 32], strides = [1, 1]} : vector<2x128xf32> to vector<2x32xf32>
    %247 = vector.extract_strided_slice %244 {offsets = [0, 96], sizes = [2, 32], strides = [1, 1]} : vector<2x128xf32> to vector<2x32xf32>
    %248 = vector.extract_strided_slice %244 {offsets = [0, 32], sizes = [2, 32], strides = [1, 1]} : vector<2x128xf32> to vector<2x32xf32>
    %249 = arith.mulf %248, %232 : vector<2x32xf32>
    %250 = arith.mulf %245, %246 : vector<2x32xf32>
    %251 = arith.addf %249, %250 : vector<2x32xf32>
    %252 = math.tanh %251 : vector<2x32xf32>
    %253 = arith.mulf %247, %252 : vector<2x32xf32>
    %254 = vector.extract_strided_slice %182 {offsets = [8, 0], sizes = [2, 128], strides = [1, 1]} : vector<16x128xf32> to vector<2x128xf32>
    %cst_47 = arith.constant dense<0.000000e+00> : vector<2x128xf32>
    %255 = tpu.matmul %253, %181, %cst_47 {dimension_numbers = #tpu.dot_dimension_numbers<[1], [0], [0], [1], [0, 0, 1, 1], [], []>, precision = #tpu.contract_precision<fp32>} : vector<2x32xf32>, vector<32x128xf32>, vector<2x128xf32> -> vector<2x128xf32>
    %256 = arith.addf %254, %255 : vector<2x128xf32>
    %257 = vector.broadcast %8 : vector<1x128xf32> to vector<2x128xf32>
    %258 = arith.mulf %256, %257 : vector<2x128xf32>
    %259 = math.tanh %258 : vector<2x128xf32>
    %cst_48 = arith.constant 5.000000e-01 : f32
    %260 = vector.broadcast %cst_48 : f32 to vector<2x128xf32>
    %261 = arith.mulf %260, %259 : vector<2x128xf32>
    %cst_49 = arith.constant 5.000000e-01 : f32
    %262 = vector.broadcast %cst_49 : f32 to vector<2x128xf32>
    %263 = arith.addf %261, %262 : vector<2x128xf32>
    %264 = vector.extract_strided_slice %263 {offsets = [0, 0], sizes = [2, 32], strides = [1, 1]} : vector<2x128xf32> to vector<2x32xf32>
    %265 = vector.extract_strided_slice %259 {offsets = [0, 64], sizes = [2, 32], strides = [1, 1]} : vector<2x128xf32> to vector<2x32xf32>
    %266 = vector.extract_strided_slice %263 {offsets = [0, 96], sizes = [2, 32], strides = [1, 1]} : vector<2x128xf32> to vector<2x32xf32>
    %267 = vector.extract_strided_slice %263 {offsets = [0, 32], sizes = [2, 32], strides = [1, 1]} : vector<2x128xf32> to vector<2x32xf32>
    %268 = arith.mulf %267, %251 : vector<2x32xf32>
    %269 = arith.mulf %264, %265 : vector<2x32xf32>
    %270 = arith.addf %268, %269 : vector<2x32xf32>
    %271 = math.tanh %270 : vector<2x32xf32>
    %272 = arith.mulf %266, %271 : vector<2x32xf32>
    %273 = vector.extract_strided_slice %182 {offsets = [10, 0], sizes = [2, 128], strides = [1, 1]} : vector<16x128xf32> to vector<2x128xf32>
    %cst_50 = arith.constant dense<0.000000e+00> : vector<2x128xf32>
    %274 = tpu.matmul %272, %181, %cst_50 {dimension_numbers = #tpu.dot_dimension_numbers<[1], [0], [0], [1], [0, 0, 1, 1], [], []>, precision = #tpu.contract_precision<fp32>} : vector<2x32xf32>, vector<32x128xf32>, vector<2x128xf32> -> vector<2x128xf32>
    %275 = arith.addf %273, %274 : vector<2x128xf32>
    %276 = vector.broadcast %8 : vector<1x128xf32> to vector<2x128xf32>
    %277 = arith.mulf %275, %276 : vector<2x128xf32>
    %278 = math.tanh %277 : vector<2x128xf32>
    %cst_51 = arith.constant 5.000000e-01 : f32
    %279 = vector.broadcast %cst_51 : f32 to vector<2x128xf32>
    %280 = arith.mulf %279, %278 : vector<2x128xf32>
    %cst_52 = arith.constant 5.000000e-01 : f32
    %281 = vector.broadcast %cst_52 : f32 to vector<2x128xf32>
    %282 = arith.addf %280, %281 : vector<2x128xf32>
    %283 = vector.extract_strided_slice %282 {offsets = [0, 0], sizes = [2, 32], strides = [1, 1]} : vector<2x128xf32> to vector<2x32xf32>
    %284 = vector.extract_strided_slice %278 {offsets = [0, 64], sizes = [2, 32], strides = [1, 1]} : vector<2x128xf32> to vector<2x32xf32>
    %285 = vector.extract_strided_slice %282 {offsets = [0, 96], sizes = [2, 32], strides = [1, 1]} : vector<2x128xf32> to vector<2x32xf32>
    %286 = vector.extract_strided_slice %282 {offsets = [0, 32], sizes = [2, 32], strides = [1, 1]} : vector<2x128xf32> to vector<2x32xf32>
    %287 = arith.mulf %286, %270 : vector<2x32xf32>
    %288 = arith.mulf %283, %284 : vector<2x32xf32>
    %289 = arith.addf %287, %288 : vector<2x32xf32>
    %290 = math.tanh %289 : vector<2x32xf32>
    %291 = arith.mulf %285, %290 : vector<2x32xf32>
    %292 = vector.extract_strided_slice %182 {offsets = [12, 0], sizes = [2, 128], strides = [1, 1]} : vector<16x128xf32> to vector<2x128xf32>
    %cst_53 = arith.constant dense<0.000000e+00> : vector<2x128xf32>
    %293 = tpu.matmul %291, %181, %cst_53 {dimension_numbers = #tpu.dot_dimension_numbers<[1], [0], [0], [1], [0, 0, 1, 1], [], []>, precision = #tpu.contract_precision<fp32>} : vector<2x32xf32>, vector<32x128xf32>, vector<2x128xf32> -> vector<2x128xf32>
    %294 = arith.addf %292, %293 : vector<2x128xf32>
    %295 = vector.broadcast %8 : vector<1x128xf32> to vector<2x128xf32>
    %296 = arith.mulf %294, %295 : vector<2x128xf32>
    %297 = math.tanh %296 : vector<2x128xf32>
    %cst_54 = arith.constant 5.000000e-01 : f32
    %298 = vector.broadcast %cst_54 : f32 to vector<2x128xf32>
    %299 = arith.mulf %298, %297 : vector<2x128xf32>
    %cst_55 = arith.constant 5.000000e-01 : f32
    %300 = vector.broadcast %cst_55 : f32 to vector<2x128xf32>
    %301 = arith.addf %299, %300 : vector<2x128xf32>
    %302 = vector.extract_strided_slice %301 {offsets = [0, 0], sizes = [2, 32], strides = [1, 1]} : vector<2x128xf32> to vector<2x32xf32>
    %303 = vector.extract_strided_slice %297 {offsets = [0, 64], sizes = [2, 32], strides = [1, 1]} : vector<2x128xf32> to vector<2x32xf32>
    %304 = vector.extract_strided_slice %301 {offsets = [0, 96], sizes = [2, 32], strides = [1, 1]} : vector<2x128xf32> to vector<2x32xf32>
    %305 = vector.extract_strided_slice %301 {offsets = [0, 32], sizes = [2, 32], strides = [1, 1]} : vector<2x128xf32> to vector<2x32xf32>
    %306 = arith.mulf %305, %289 : vector<2x32xf32>
    %307 = arith.mulf %302, %303 : vector<2x32xf32>
    %308 = arith.addf %306, %307 : vector<2x32xf32>
    %309 = math.tanh %308 : vector<2x32xf32>
    %310 = arith.mulf %304, %309 : vector<2x32xf32>
    %311 = vector.extract_strided_slice %182 {offsets = [14, 0], sizes = [2, 128], strides = [1, 1]} : vector<16x128xf32> to vector<2x128xf32>
    %cst_56 = arith.constant dense<0.000000e+00> : vector<2x128xf32>
    %312 = tpu.matmul %310, %181, %cst_56 {dimension_numbers = #tpu.dot_dimension_numbers<[1], [0], [0], [1], [0, 0, 1, 1], [], []>, precision = #tpu.contract_precision<fp32>} : vector<2x32xf32>, vector<32x128xf32>, vector<2x128xf32> -> vector<2x128xf32>
    %313 = arith.addf %311, %312 : vector<2x128xf32>
    %314 = vector.broadcast %8 : vector<1x128xf32> to vector<2x128xf32>
    %315 = arith.mulf %313, %314 : vector<2x128xf32>
    %316 = math.tanh %315 : vector<2x128xf32>
    %cst_57 = arith.constant 5.000000e-01 : f32
    %317 = vector.broadcast %cst_57 : f32 to vector<2x128xf32>
    %318 = arith.mulf %317, %316 : vector<2x128xf32>
    %cst_58 = arith.constant 5.000000e-01 : f32
    %319 = vector.broadcast %cst_58 : f32 to vector<2x128xf32>
    %320 = arith.addf %318, %319 : vector<2x128xf32>
    %321 = vector.extract_strided_slice %320 {offsets = [0, 0], sizes = [2, 32], strides = [1, 1]} : vector<2x128xf32> to vector<2x32xf32>
    %322 = vector.extract_strided_slice %316 {offsets = [0, 64], sizes = [2, 32], strides = [1, 1]} : vector<2x128xf32> to vector<2x32xf32>
    %323 = vector.extract_strided_slice %320 {offsets = [0, 96], sizes = [2, 32], strides = [1, 1]} : vector<2x128xf32> to vector<2x32xf32>
    %324 = vector.extract_strided_slice %320 {offsets = [0, 32], sizes = [2, 32], strides = [1, 1]} : vector<2x128xf32> to vector<2x32xf32>
    %325 = arith.mulf %324, %308 : vector<2x32xf32>
    %326 = arith.mulf %321, %322 : vector<2x32xf32>
    %327 = arith.addf %325, %326 : vector<2x32xf32>
    %328 = math.tanh %327 : vector<2x32xf32>
    %329 = arith.mulf %323, %328 : vector<2x32xf32>
    %330 = tpu.concatenate %196, %215, %234, %253, %272, %291, %310, %329 in 1 : vector<2x32xf32>, vector<2x32xf32>, vector<2x32xf32>, vector<2x32xf32>, vector<2x32xf32>, vector<2x32xf32>, vector<2x32xf32>, vector<2x32xf32> -> vector<2x256xf32>
    %cst_59 = arith.constant 5.000000e-01 : f32
    %331 = vector.broadcast %cst_59 : f32 to vector<2x256xf32>
    %332 = arith.mulf %331, %330 : vector<2x256xf32>
    %333 = math.tanh %332 : vector<2x256xf32>
    %cst_60 = arith.constant 5.000000e-01 : f32
    %334 = vector.broadcast %cst_60 : f32 to vector<2x256xf32>
    %335 = arith.mulf %334, %333 : vector<2x256xf32>
    %cst_61 = arith.constant 5.000000e-01 : f32
    %336 = vector.broadcast %cst_61 : f32 to vector<2x256xf32>
    %337 = arith.addf %335, %336 : vector<2x256xf32>
    %c0_62 = arith.constant 0 : index
    %c0_63 = arith.constant 0 : index
    %338 = vector.load %arg5[%c0_62, %c0_63] : memref<2x256xf32, #tpu.memory_space<vmem>>, vector<2x256xf32>
    tpu.vector_store %arg5[%c0_62, %c0_63], %337 {strides = array<i32>} : memref<2x256xf32, #tpu.memory_space<vmem>>, vector<2x256xf32>,
    return
  }
}

</mosaic_0001>

<llo_original>
// kernel: rnn1_forward.1
$region0: #{rnn1_forward.1}
  #allocation0 [shape = 'u32[]', space=smem, size = 0x4, offset = 0x4, fixed_abs, tag = 'smem constant byte address 0x4 - core index']
  #allocation1 [shape = 'u32[72,128]{1,0:T(1,128)}', space=vmem, size = 0x9000, scoped, tag = 'internal scratch']
  %s0 = inlined_call_operand.hbm [shape: f32[2,8,16], index: 0, kind: input, shape index: {}]
  %s1 = inlined_call_operand.hbm [shape: f32[16,128], index: 1, kind: input, shape index: {}]
  %s2 = inlined_call_operand.hbm [shape: f32[32,128], index: 2, kind: input, shape index: {}]
  %s3 = inlined_call_operand.hbm [shape: f32[32,128], index: 3, kind: input, shape index: {}]
  %s4 = inlined_call_operand.hbm [shape: f32[32,128], index: 4, kind: input, shape index: {}]
  %s5 = inlined_call_operand.vmem [shape: f32[2,256], index: 5, kind: output, shape index: {}]
  %s6 = sld [smem:[#allocation0]]
  $region50: #{rnn1_forward.1} parent=0
    _
  %s8 = ssub.s32 1, %s6
  %s9 = scalar_select 0, %s8, %s6
  $region1: #{rnn1_forward.1} parent=0
    #allocation2 [shape = 'u8[8192]{0}', space=vmem, size = 0x2000, scoped, tag = 'input window, operand 0, single buffered']
    #allocation3 [shape = 's32[1]{0}', space=sflag, size = 0x4, scoped, tag = 'scoped memory for rnn1_forward.1']
    #allocation4 [shape = 'u8[8192]{0}', space=vmem, size = 0x2000, scoped, tag = 'input window, operand 1, single buffered']
    #allocation5 [shape = 's32[1]{0}', space=sflag, size = 0x4, scoped, tag = 'scoped memory for rnn1_forward.1']
    #allocation6 [shape = 'u8[16384]{0}', space=vmem, size = 0x4000, scoped, tag = 'input window, operand 2, single buffered']
    #allocation7 [shape = 'u8[16384]{0}', space=vmem, size = 0x4000, scoped, tag = 'input window, operand 3, single buffered']
    #allocation8 [shape = 's32[1]{0}', space=sflag, size = 0x4, scoped, tag = 'scoped memory for rnn1_forward.1']
    #allocation9 [shape = 'u8[16384]{0}', space=vmem, size = 0x4000, scoped, tag = 'input window, operand 4, single buffered']
    %10 = vsyncpa [#allocation3], 0
    %11 = vsyncpa [#allocation5], 0
    %12 = vsyncpa [#allocation8], 0
    // Predicated region
    $region2: #{rnn1_forward.1} parent=1 // pred_check
      _
    $region3: #{rnn1_forward.1} parent=1 // pred_check_branch
      %14 = sbr.rel (0) target = $region5
    $region4: #{rnn1_forward.1} parent=1 // pred_region
      %16 = vsyncadd [#allocation3], 0
      %s17 = sshll.u32 %s0, 4
      %s18 = int_to_ptr.hbm [resolvable:$true] %s17
      %s19 = sshll.u32 [#allocation2], 4
      %s20 = int_to_ptr.vmem [resolvable:$true] %s19
      %25 = dma.hbm_to_vmem [thread:$0]  %s18, 256, %s20, [#allocation3], 128, 128, 8
    $region5: #{rnn1_forward.1} parent=1 // pred_fallthru
      _
    // Predicated region
    $region6: #{rnn1_forward.1} parent=1 // pred_check
      _
    $region7: #{rnn1_forward.1} parent=1 // pred_check_branch
      %27 = sbr.rel (0) target = $region9
    $region8: #{rnn1_forward.1} parent=1 // pred_region
      %29 = vsyncadd [#allocation5], 0
      %s30 = sshll.u32 %s1, 4
      %s31 = int_to_ptr.hbm [resolvable:$true] %s30
      %s32 = sshll.u32 [#allocation4], 4
      %s33 = int_to_ptr.vmem [resolvable:$true] %s32
      %38 = dma.hbm_to_vmem [thread:$0]  %s31, 256, %s33, [#allocation5], 128, 128, 8
    $region9: #{rnn1_forward.1} parent=1 // pred_fallthru
      _
    // Predicated region
    $region10: #{rnn1_forward.1} parent=1 // pred_check
      _
    $region11: #{rnn1_forward.1} parent=1 // pred_check_branch
      %40 = sbr.rel (0) target = $region13
    $region12: #{rnn1_forward.1} parent=1 // pred_region
      %42 = vsyncadd [#allocation5], 0
      %s43 = sshll.u32 %s2, 4
      %s44 = int_to_ptr.hbm [resolvable:$true] %s43
      %s45 = sshll.u32 [#allocation6], 4
      %s46 = int_to_ptr.vmem [resolvable:$true] %s45
      %51 = dma.hbm_to_vmem [thread:$0]  %s44, 512, %s46, [#allocation5], 128, 128, 8
    $region13: #{rnn1_forward.1} parent=1 // pred_fallthru
      _
    // Predicated region
    $region14: #{rnn1_forward.1} parent=1 // pred_check
      _
    $region15: #{rnn1_forward.1} parent=1 // pred_check_branch
      %53 = sbr.rel (0) target = $region17
    $region16: #{rnn1_forward.1} parent=1 // pred_region
      %55 = vsyncadd [#allocation8], 0
      %s56 = sshll.u32 %s3, 4
      %s57 = int_to_ptr.hbm [resolvable:$true] %s56
      %s58 = sshll.u32 [#allocation7], 4
      %s59 = int_to_ptr.vmem [resolvable:$true] %s58
      %64 = dma.hbm_to_vmem [thread:$0]  %s57, 512, %s59, [#allocation8], 128, 128, 8
    $region17: #{rnn1_forward.1} parent=1 // pred_fallthru
      _
    // Predicated region
    $region18: #{rnn1_forward.1} parent=1 // pred_check
      _
    $region19: #{rnn1_forward.1} parent=1 // pred_check_branch
      %66 = sbr.rel (0) target = $region21
    $region20: #{rnn1_forward.1} parent=1 // pred_region
      %68 = vsyncadd [#allocation8], 0
      %s69 = sshll.u32 %s4, 4
      %s70 = int_to_ptr.hbm [resolvable:$true] %s69
      %s71 = sshll.u32 [#allocation9], 4
      %s72 = int_to_ptr.vmem [resolvable:$true] %s71
      %77 = dma.hbm_to_vmem [thread:$0]  %s70, 512, %s72, [#allocation8], 128, 128, 8
    $region21: #{rnn1_forward.1} parent=1 // pred_fallthru
      _
    // Predicated region
    $region22: #{rnn1_forward.1} parent=1 // pred_check
      _
    $region23: #{rnn1_forward.1} parent=1 // pred_check_branch
      %79 = sbr.rel (0) target = $region25
    $region24: #{rnn1_forward.1} parent=1 // pred_region
      %81 = dma.done [#allocation3], 256
    $region25: #{rnn1_forward.1} parent=1 // pred_fallthru
      _
    // Predicated region
    $region26: #{rnn1_forward.1} parent=1 // pred_check
      _
    $region27: #{rnn1_forward.1} parent=1 // pred_check_branch
      %83 = sbr.rel (0) target = $region29
    $region28: #{rnn1_forward.1} parent=1 // pred_region
      %85 = dma.done [#allocation5], 256
    $region29: #{rnn1_forward.1} parent=1 // pred_fallthru
      _
    // Predicated region
    $region30: #{rnn1_forward.1} parent=1 // pred_check
      _
    $region31: #{rnn1_forward.1} parent=1 // pred_check_branch
      %87 = sbr.rel (0) target = $region33
    $region32: #{rnn1_forward.1} parent=1 // pred_region
      %89 = dma.done [#allocation5], 512
    $region33: #{rnn1_forward.1} parent=1 // pred_fallthru
      _
    // Predicated region
    $region34: #{rnn1_forward.1} parent=1 // pred_check
      _
    $region35: #{rnn1_forward.1} parent=1 // pred_check_branch
      %91 = sbr.rel (0) target = $region37
    $region36: #{rnn1_forward.1} parent=1 // pred_region
      %93 = dma.done [#allocation8], 512
    $region37: #{rnn1_forward.1} parent=1 // pred_fallthru
      _
    // Predicated region
    $region38: #{rnn1_forward.1} parent=1 // pred_check
      _
    $region39: #{rnn1_forward.1} parent=1 // pred_check_branch
      %95 = sbr.rel (0) target = $region41
    $region40: #{rnn1_forward.1} parent=1 // pred_region
      %97 = dma.done [#allocation8], 512
    $region41: #{rnn1_forward.1} parent=1 // pred_fallthru
      _
    %v98 = vlaneseq
    %v99 = vand.u32 %v98, 127
    %vm100 = vcmp.ge.s32.totalorder %v99, 64
    %vm101 = vcmp.lt.s32.totalorder %v99, 96
    %vm102 = vmand %vm100, %vm101
    %v103 = vsel %vm102, 1.0, 0.5
    %v104 = vld [vmem:[#allocation2] sm:$0xff]
    %v105 = vld [vmem:[#allocation2 + $0x8] sm:$0xff]
    %v106 = vld [vmem:[#allocation4] sm:$0xff]
    %v107 = vld [vmem:[#allocation4 + $0x8] sm:$0xff]
    %v108 = vld [vmem:[#allocation6] sm:$0xff]
    %v109 = vld [vmem:[#allocation6 + $0x8] sm:$0xff]
    %v110 = vld [vmem:[#allocation6 + $0x10] sm:$0xff]
    %v111 = vld [vmem:[#allocation6 + $0x18] sm:$0xff]
    %vm112 = vcmask 130048
    %v114 = vsel %vm112, %v104, 0
    %v117 = vsel %vm112, %v105, 0
    %119 = vmatpush.msra.mxu0 0.0
    %120 = vmatpush.msra.mxu0 0.0
    %121 = vmatpush.msra.mxu0 0.0
    %122 = vmatpush.msra.mxu0 0.0
    %123 = vmatpush.msra.mxu0 0.0
    %124 = vmatpush.msra.mxu0 0.0
    %125 = vmatpush.msra.mxu0 0.0
    %126 = vmatpush.msra.mxu0 0.0
    %127 = vmatpush.msra.mxu0 0.0
    %128 = vmatpush.msra.mxu0 0.0
    %129 = vmatpush.msra.mxu0 0.0
    %130 = vmatpush.msra.mxu0 0.0
    %131 = vmatpush.msra.mxu0 0.0
    %132 = vmatpush.msra.mxu0 0.0
    %v133 = vand.u32 %v107, 4294901760
    %134 = vmatpush.msra.mxu0 %v133
    %v135 = vand.u32 %v106, 4294901760
    %136 = vmatpush.msra.mxu0 %v135
    %v137 = vand.u32 %v114, 4294901760
    %v138 = vsub.f32 %v114, %v137
    %v139 = vand.u32 %v138, 4294901760
    %v140 = vsub.f32 %v138, %v139
    %v141 = vand.u32 %v140, 4294901760
    %142 = vmatmul.f32.gmra.mxu0 %v141
    %v143 = vpop.f32.mrf.mxu0
    %v144 = vadd.f32 0.0, %v143
    %v145 = vand.u32 %v117, 4294901760
    %v146 = vsub.f32 %v117, %v145
    %v147 = vand.u32 %v146, 4294901760
    %v148 = vsub.f32 %v146, %v147
    %v149 = vand.u32 %v148, 4294901760
    %150 = vmatmul.f32.gmra.mxu0 %v149
    %v151 = vpop.f32.mrf.mxu0
    %v152 = vadd.f32 0.0, %v151
    %153 = vdwg.mxu0
    %154 = vmatpush.msra.mxu0 0.0
    %155 = vmatpush.msra.mxu0 0.0
    %156 = vmatpush.msra.mxu0 0.0
    %157 = vmatpush.msra.mxu0 0.0
    %158 = vmatpush.msra.mxu0 0.0
    %159 = vmatpush.msra.mxu0 0.0
    %160 = vmatpush.msra.mxu0 0.0
    %161 = vmatpush.msra.mxu0 0.0
    %162 = vmatpush.msra.mxu0 0.0
    %163 = vmatpush.msra.mxu0 0.0
    %164 = vmatpush.msra.mxu0 0.0
    %165 = vmatpush.msra.mxu0 0.0
    %166 = vmatpush.msra.mxu0 0.0
    %167 = vmatpush.msra.mxu0 0.0
    %v168 = vand.u32 %v107, 4294901760
    %v169 = vsub.f32 %v107, %v168
    %v170 = vand.u32 %v169, 4294901760
    %v171 = vsub.f32 %v169, %v170
    %v172 = vand.u32 %v171, 4294901760
    %173 = vmatpush.msra.mxu0 %v172
    %v174 = vand.u32 %v106, 4294901760
    %v175 = vsub.f32 %v106, %v174
    %v176 = vand.u32 %v175, 4294901760
    %v177 = vsub.f32 %v175, %v176
    %v178 = vand.u32 %v177, 4294901760
    %179 = vmatpush.msra.mxu0 %v178
    %v180 = vand.u32 %v114, 4294901760
    %181 = vmatmul.f32.gmra.mxu0 %v180
    %v182 = vpop.f32.mrf.mxu0
    %v183 = vadd.f32 %v144, %v182
    %v184 = vand.u32 %v117, 4294901760
    %185 = vmatmul.f32.gmra.mxu0 %v184
    %v186 = vpop.f32.mrf.mxu0
    %v187 = vadd.f32 %v152, %v186
    %188 = vdwg.mxu0
    %189 = vmatpush.msra.mxu0 0.0
    %190 = vmatpush.msra.mxu0 0.0
    %191 = vmatpush.msra.mxu0 0.0
    %192 = vmatpush.msra.mxu0 0.0
    %193 = vmatpush.msra.mxu0 0.0
    %194 = vmatpush.msra.mxu0 0.0
    %195 = vmatpush.msra.mxu0 0.0
    %196 = vmatpush.msra.mxu0 0.0
    %197 = vmatpush.msra.mxu0 0.0
    %198 = vmatpush.msra.mxu0 0.0
    %199 = vmatpush.msra.mxu0 0.0
    %200 = vmatpush.msra.mxu0 0.0
    %201 = vmatpush.msra.mxu0 0.0
    %202 = vmatpush.msra.mxu0 0.0
    %v203 = vand.u32 %v107, 4294901760
    %v204 = vsub.f32 %v107, %v203
    %205 = vmatpush.msra.mxu0 %v204
    %v206 = vand.u32 %v106, 4294901760
    %v207 = vsub.f32 %v106, %v206
    %208 = vmatpush.msra.mxu0 %v207
    %v209 = vand.u32 %v114, 4294901760
    %v210 = vsub.f32 %v114, %v209
    %211 = vmatmul.f32.gmra.mxu0 %v210
    %v212 = vpop.f32.mrf.mxu0
    %v213 = vadd.f32 %v183, %v212
    %v214 = vand.u32 %v117, 4294901760
    %v215 = vsub.f32 %v117, %v214
    %216 = vmatmul.f32.gmra.mxu0 %v215
    %v217 = vpop.f32.mrf.mxu0
    %v218 = vadd.f32 %v187, %v217
    %219 = vdwg.mxu0
    %220 = vmatpush.msra.mxu0 0.0
    %221 = vmatpush.msra.mxu0 0.0
    %222 = vmatpush.msra.mxu0 0.0
    %223 = vmatpush.msra.mxu0 0.0
    %224 = vmatpush.msra.mxu0 0.0
    %225 = vmatpush.msra.mxu0 0.0
    %226 = vmatpush.msra.mxu0 0.0
    %227 = vmatpush.msra.mxu0 0.0
    %228 = vmatpush.msra.mxu0 0.0
    %229 = vmatpush.msra.mxu0 0.0
    %230 = vmatpush.msra.mxu0 0.0
    %231 = vmatpush.msra.mxu0 0.0
    %232 = vmatpush.msra.mxu0 0.0
    %233 = vmatpush.msra.mxu0 0.0
    %v234 = vand.u32 %v107, 4294901760
    %235 = vmatpush.msra.mxu0 %v234
    %v236 = vand.u32 %v106, 4294901760
    %237 = vmatpush.msra.mxu0 %v236
    %v238 = vand.u32 %v114, 4294901760
    %v239 = vsub.f32 %v114, %v238
    %v240 = vand.u32 %v239, 4294901760
    %241 = vmatmul.f32.gmra.mxu0 %v240
    %v242 = vpop.f32.mrf.mxu0
    %v243 = vadd.f32 %v213, %v242
    %v244 = vand.u32 %v117, 4294901760
    %v245 = vsub.f32 %v117, %v244
    %v246 = vand.u32 %v245, 4294901760
    %247 = vmatmul.f32.gmra.mxu0 %v246
    %v248 = vpop.f32.mrf.mxu0
    %v249 = vadd.f32 %v218, %v248
    %250 = vdwg.mxu0
    %251 = vmatpush.msra.mxu0 0.0
    %252 = vmatpush.msra.mxu0 0.0
    %253 = vmatpush.msra.mxu0 0.0
    %254 = vmatpush.msra.mxu0 0.0
    %255 = vmatpush.msra.mxu0 0.0
    %256 = vmatpush.msra.mxu0 0.0
    %257 = vmatpush.msra.mxu0 0.0
    %258 = vmatpush.msra.mxu0 0.0
    %259 = vmatpush.msra.mxu0 0.0
    %260 = vmatpush.msra.mxu0 0.0
    %261 = vmatpush.msra.mxu0 0.0
    %262 = vmatpush.msra.mxu0 0.0
    %263 = vmatpush.msra.mxu0 0.0
    %264 = vmatpush.msra.mxu0 0.0
    %v265 = vand.u32 %v107, 4294901760
    %v266 = vsub.f32 %v107, %v265
    %v267 = vand.u32 %v266, 4294901760
    %268 = vmatpush.msra.mxu0 %v267
    %v269 = vand.u32 %v106, 4294901760
    %v270 = vsub.f32 %v106, %v269
    %v271 = vand.u32 %v270, 4294901760
    %272 = vmatpush.msra.mxu0 %v271
    %v273 = vand.u32 %v114, 4294901760
    %274 = vmatmul.f32.gmra.mxu0 %v273
    %v275 = vpop.f32.mrf.mxu0
    %v276 = vadd.f32 %v243, %v275
    %v277 = vand.u32 %v117, 4294901760
    %278 = vmatmul.f32.gmra.mxu0 %v277
    %v279 = vpop.f32.mrf.mxu0
    %v280 = vadd.f32 %v249, %v279
    %281 = vdwg.mxu0
    %282 = vmatpush.msra.mxu0 0.0
    %283 = vmatpush.msra.mxu0 0.0
    %284 = vmatpush.msra.mxu0 0.0
    %285 = vmatpush.msra.mxu0 0.0
    %286 = vmatpush.msra.mxu0 0.0
    %287 = vmatpush.msra.mxu0 0.0
    %288 = vmatpush.msra.mxu0 0.0
    %289 = vmatpush.msra.mxu0 0.0
    %290 = vmatpush.msra.mxu0 0.0
    %291 = vmatpush.msra.mxu0 0.0
    %292 = vmatpush.msra.mxu0 0.0
    %293 = vmatpush.msra.mxu0 0.0
    %294 = vmatpush.msra.mxu0 0.0
    %295 = vmatpush.msra.mxu0 0.0
    %v296 = vand.u32 %v107, 4294901760
    %297 = vmatpush.msra.mxu0 %v296
    %v298 = vand.u32 %v106, 4294901760
    %299 = vmatpush.msra.mxu0 %v298
    %v300 = vand.u32 %v114, 4294901760
    %301 = vmatmul.f32.gmra.mxu0 %v300
    %v302 = vpop.f32.mrf.mxu0
    %v303 = vadd.f32 %v276, %v302
    %v304 = vand.u32 %v117, 4294901760
    %305 = vmatmul.f32.gmra.mxu0 %v304
    %v306 = vpop.f32.mrf.mxu0
    %v307 = vadd.f32 %v280, %v306
    %308 = vdwg.mxu0
    %v309 = vmul.f32 %v303, %v103
    %v310 = vmul.f32 %v307, %v103
    %v311 = vtanh.pop %v309
    %v312 = vtanh.pop %v310
    %v313 = vmul.f32 %v311, 0.5
    %v314 = vmul.f32 %v312, 0.5
    %v315 = vadd.f32 %v313, 0.5
    %v316 = vadd.f32 %v314, 0.5
    %319 = vrot.lane.b32.xlu0 %v311, 64
    %v320 = vpop.permute.xlu0 %319
    %321 = vrot.lane.b32.xlu0 %v312, 64
    %v322 = vpop.permute.xlu0 %321
    %v325 = vmul.f32 %v315, %v320
    %v326 = vmul.f32 %v316, %v322
    %v327 = vtanh.pop %v325
    %v328 = vtanh.pop %v326
    %331 = vrot.lane.b32.xlu0 %v327, 96
    %v332 = vpop.permute.xlu0 %331
    %333 = vrot.lane.b32.xlu0 %v328, 96
    %v334 = vpop.permute.xlu0 %333
    %v337 = vmul.f32 %v315, %v332
    %v338 = vmul.f32 %v316, %v334
    %v341 = vrot.slane %v338, 7
    %vm342 = vcmask 1041409
    %v343 = vsel %vm342, %v341, %v337
    %344 = vrot.lane.b32.xlu0 %v343, 32
    %v345 = vpop.permute.xlu0 %344
    %vm346 = vcmask 261120
    %v347 = vsel %vm346, %v345, 0
    %349 = vmatpush.msra.mxu0 0.0
    %350 = vmatpush.msra.mxu0 0.0
    %351 = vmatpush.msra.mxu0 0.0
    %352 = vmatpush.msra.mxu0 0.0
    %353 = vmatpush.msra.mxu0 0.0
    %354 = vmatpush.msra.mxu0 0.0
    %355 = vmatpush.msra.mxu0 0.0
    %356 = vmatpush.msra.mxu0 0.0
    %357 = vmatpush.msra.mxu0 0.0
    %358 = vmatpush.msra.mxu0 0.0
    %359 = vmatpush.msra.mxu0 0.0
    %360 = vmatpush.msra.mxu0 0.0
    %v361 = vand.u32 %v111, 4294901760
    %362 = vmatpush.msra.mxu0 %v361
    %v363 = vand.u32 %v110, 4294901760
    %364 = vmatpush.msra.mxu0 %v363
    %v365 = vand.u32 %v109, 4294901760
    %366 = vmatpush.msra.mxu0 %v365
    %v367 = vand.u32 %v108, 4294901760
    %368 = vmatpush.msra.mxu0 %v367
    %v369 = vand.u32 %v347, 4294901760
    %v370 = vsub.f32 %v347, %v369
    %v371 = vand.u32 %v370, 4294901760
    %v372 = vsub.f32 %v370, %v371
    %v373 = vand.u32 %v372, 4294901760
    %374 = vmatmul.f32.gmra.mxu0 %v373
    %v375 = vpop.f32.mrf.mxu0
    %v376 = vadd.f32 0.0, %v375
    %377 = vdwg.mxu0
    %378 = vmatpush.msra.mxu0 0.0
    %379 = vmatpush.msra.mxu0 0.0
    %380 = vmatpush.msra.mxu0 0.0
    %381 = vmatpush.msra.mxu0 0.0
    %382 = vmatpush.msra.mxu0 0.0
    %383 = vmatpush.msra.mxu0 0.0
    %384 = vmatpush.msra.mxu0 0.0
    %385 = vmatpush.msra.mxu0 0.0
    %386 = vmatpush.msra.mxu0 0.0
    %387 = vmatpush.msra.mxu0 0.0
    %388 = vmatpush.msra.mxu0 0.0
    %389 = vmatpush.msra.mxu0 0.0
    %v390 = vand.u32 %v111, 4294901760
    %v391 = vsub.f32 %v111, %v390
    %v392 = vand.u32 %v391, 4294901760
    %v393 = vsub.f32 %v391, %v392
    %v394 = vand.u32 %v393, 4294901760
    %395 = vmatpush.msra.mxu0 %v394
    %v396 = vand.u32 %v110, 4294901760
    %v397 = vsub.f32 %v110, %v396
    %v398 = vand.u32 %v397, 4294901760
    %v399 = vsub.f32 %v397, %v398
    %v400 = vand.u32 %v399, 4294901760
    %401 = vmatpush.msra.mxu0 %v400
    %v402 = vand.u32 %v109, 4294901760
    %v403 = vsub.f32 %v109, %v402
    %v404 = vand.u32 %v403, 4294901760
    %v405 = vsub.f32 %v403, %v404
    %v406 = vand.u32 %v405, 4294901760
    %407 = vmatpush.msra.mxu0 %v406
    %v408 = vand.u32 %v108, 4294901760
    %v409 = vsub.f32 %v108, %v408
    %v410 = vand.u32 %v409, 4294901760
    %v411 = vsub.f32 %v409, %v410
    %v412 = vand.u32 %v411, 4294901760
    %413 = vmatpush.msra.mxu0 %v412
    %v414 = vand.u32 %v347, 4294901760
    %415 = vmatmul.f32.gmra.mxu0 %v414
    %v416 = vpop.f32.mrf.mxu0
    %v417 = vadd.f32 %v376, %v416
    %418 = vdwg.mxu0
    %419 = vmatpush.msra.mxu0 0.0
    %420 = vmatpush.msra.mxu0 0.0
    %421 = vmatpush.msra.mxu0 0.0
    %422 = vmatpush.msra.mxu0 0.0
    %423 = vmatpush.msra.mxu0 0.0
    %424 = vmatpush.msra.mxu0 0.0
    %425 = vmatpush.msra.mxu0 0.0
    %426 = vmatpush.msra.mxu0 0.0
    %427 = vmatpush.msra.mxu0 0.0
    %428 = vmatpush.msra.mxu0 0.0
    %429 = vmatpush.msra.mxu0 0.0
    %430 = vmatpush.msra.mxu0 0.0
    %v431 = vand.u32 %v111, 4294901760
    %v432 = vsub.f32 %v111, %v431
    %433 = vmatpush.msra.mxu0 %v432
    %v434 = vand.u32 %v110, 4294901760
    %v435 = vsub.f32 %v110, %v434
    %436 = vmatpush.msra.mxu0 %v435
    %v437 = vand.u32 %v109, 4294901760
    %v438 = vsub.f32 %v109, %v437
    %439 = vmatpush.msra.mxu0 %v438
    %v440 = vand.u32 %v108, 4294901760
    %v441 = vsub.f32 %v108, %v440
    %442 = vmatpush.msra.mxu0 %v441
    %v443 = vand.u32 %v347, 4294901760
    %v444 = vsub.f32 %v347, %v443
    %445 = vmatmul.f32.gmra.mxu0 %v444
    %v446 = vpop.f32.mrf.mxu0
    %v447 = vadd.f32 %v417, %v446
    %448 = vdwg.mxu0
    %449 = vmatpush.msra.mxu0 0.0
    %450 = vmatpush.msra.mxu0 0.0
    %451 = vmatpush.msra.mxu0 0.0
    %452 = vmatpush.msra.mxu0 0.0
    %453 = vmatpush.msra.mxu0 0.0
    %454 = vmatpush.msra.mxu0 0.0
    %455 = vmatpush.msra.mxu0 0.0
    %456 = vmatpush.msra.mxu0 0.0
    %457 = vmatpush.msra.mxu0 0.0
    %458 = vmatpush.msra.mxu0 0.0
    %459 = vmatpush.msra.mxu0 0.0
    %460 = vmatpush.msra.mxu0 0.0
    %v461 = vand.u32 %v111, 4294901760
    %462 = vmatpush.msra.mxu0 %v461
    %v463 = vand.u32 %v110, 4294901760
    %464 = vmatpush.msra.mxu0 %v463
    %v465 = vand.u32 %v109, 4294901760
    %466 = vmatpush.msra.mxu0 %v465
    %v467 = vand.u32 %v108, 4294901760
    %468 = vmatpush.msra.mxu0 %v467
    %v469 = vand.u32 %v347, 4294901760
    %v470 = vsub.f32 %v347, %v469
    %v471 = vand.u32 %v470, 4294901760
    %472 = vmatmul.f32.gmra.mxu0 %v471
    %v473 = vpop.f32.mrf.mxu0
    %v474 = vadd.f32 %v447, %v473
    %475 = vdwg.mxu0
    %476 = vmatpush.msra.mxu0 0.0
    %477 = vmatpush.msra.mxu0 0.0
    %478 = vmatpush.msra.mxu0 0.0
    %479 = vmatpush.msra.mxu0 0.0
    %480 = vmatpush.msra.mxu0 0.0
    %481 = vmatpush.msra.mxu0 0.0
    %482 = vmatpush.msra.mxu0 0.0
    %483 = vmatpush.msra.mxu0 0.0
    %484 = vmatpush.msra.mxu0 0.0
    %485 = vmatpush.msra.mxu0 0.0
    %486 = vmatpush.msra.mxu0 0.0
    %487 = vmatpush.msra.mxu0 0.0
    %v488 = vand.u32 %v111, 4294901760
    %v489 = vsub.f32 %v111, %v488
    %v490 = vand.u32 %v489, 4294901760
    %491 = vmatpush.msra.mxu0 %v490
    %v492 = vand.u32 %v110, 4294901760
    %v493 = vsub.f32 %v110, %v492
    %v494 = vand.u32 %v493, 4294901760
    %495 = vmatpush.msra.mxu0 %v494
    %v496 = vand.u32 %v109, 4294901760
    %v497 = vsub.f32 %v109, %v496
    %v498 = vand.u32 %v497, 4294901760
    %499 = vmatpush.msra.mxu0 %v498
    %v500 = vand.u32 %v108, 4294901760
    %v501 = vsub.f32 %v108, %v500
    %v502 = vand.u32 %v501, 4294901760
    %503 = vmatpush.msra.mxu0 %v502
    %v504 = vand.u32 %v347, 4294901760
    %505 = vmatmul.f32.gmra.mxu0 %v504
    %v506 = vpop.f32.mrf.mxu0
    %v507 = vadd.f32 %v474, %v506
    %508 = vdwg.mxu0
    %509 = vmatpush.msra.mxu0 0.0
    %510 = vmatpush.msra.mxu0 0.0
    %511 = vmatpush.msra.mxu0 0.0
    %512 = vmatpush.msra.mxu0 0.0
    %513 = vmatpush.msra.mxu0 0.0
    %514 = vmatpush.msra.mxu0 0.0
    %515 = vmatpush.msra.mxu0 0.0
    %516 = vmatpush.msra.mxu0 0.0
    %517 = vmatpush.msra.mxu0 0.0
    %518 = vmatpush.msra.mxu0 0.0
    %519 = vmatpush.msra.mxu0 0.0
    %520 = vmatpush.msra.mxu0 0.0
    %v521 = vand.u32 %v111, 4294901760
    %522 = vmatpush.msra.mxu0 %v521
    %v523 = vand.u32 %v110, 4294901760
    %524 = vmatpush.msra.mxu0 %v523
    %v525 = vand.u32 %v109, 4294901760
    %526 = vmatpush.msra.mxu0 %v525
    %v527 = vand.u32 %v108, 4294901760
    %528 = vmatpush.msra.mxu0 %v527
    %v529 = vand.u32 %v347, 4294901760
    %530 = vmatmul.f32.gmra.mxu0 %v529
    %v531 = vpop.f32.mrf.mxu0
    %v532 = vadd.f32 %v507, %v531
    %533 = vdwg.mxu0
    %v535 = vrot.slane %v532, 7
    %v538 = vadd.f32 %v303, %v535
    %v539 = vadd.f32 %v307, %v532
    %v540 = vmul.f32 %v538, %v103
    %v541 = vmul.f32 %v539, %v103
    %v542 = vtanh.pop %v540
    %v543 = vtanh.pop %v541
    %v544 = vmul.f32 %v542, 0.5
    %v545 = vmul.f32 %v543, 0.5
    %v546 = vadd.f32 %v544, 0.5
    %v547 = vadd.f32 %v545, 0.5
    %v550 = vrot.slane %v325, 7
    %v551 = vrot.slane %v326, 7
    %552 = vrot.lane.b32.xlu0 %v550, 32
    %v553 = vpop.permute.xlu0 %552
    %554 = vrot.lane.b32.xlu0 %v551, 32
    %v555 = vpop.permute.xlu0 %554
    %v558 = vmul.f32 %v546, %v553
    %v559 = vmul.f32 %v547, %v555
    %562 = vrot.lane.b32.xlu0 %v542, 64
    %v563 = vpop.permute.xlu0 %562
    %564 = vrot.lane.b32.xlu0 %v543, 64
    %v565 = vpop.permute.xlu0 %564
    %v568 = vmul.f32 %v546, %v563
    %v569 = vmul.f32 %v547, %v565
    %572 = vrot.lane.b32.xlu0 %v568, 32
    %v573 = vpop.permute.xlu0 %572
    %574 = vrot.lane.b32.xlu0 %v569, 32
    %v575 = vpop.permute.xlu0 %574
    %v578 = vadd.f32 %v558, %v573
    %v579 = vadd.f32 %v559, %v575
    %v580 = vtanh.pop %v578
    %v581 = vtanh.pop %v579
    %584 = vrot.lane.b32.xlu0 %v580, 64
    %v585 = vpop.permute.xlu0 %584
    %586 = vrot.lane.b32.xlu0 %v581, 64
    %v587 = vpop.permute.xlu0 %586
    %v590 = vmul.f32 %v546, %v585
    %v591 = vmul.f32 %v547, %v587
    %v594 = vrot.slane %v590, 1
    %v595 = vsel %vm342, %v591, %v594
    %596 = vrot.lane.b32.xlu0 %v595, 32
    %v597 = vpop.permute.xlu0 %596
    %v598 = vsel %vm346, %v597, 0
    %600 = vmatpush.msra.mxu0 0.0
    %601 = vmatpush.msra.mxu0 0.0
    %602 = vmatpush.msra.mxu0 0.0
    %603 = vmatpush.msra.mxu0 0.0
    %604 = vmatpush.msra.mxu0 0.0
    %605 = vmatpush.msra.mxu0 0.0
    %606 = vmatpush.msra.mxu0 0.0
    %607 = vmatpush.msra.mxu0 0.0
    %608 = vmatpush.msra.mxu0 0.0
    %609 = vmatpush.msra.mxu0 0.0
    %610 = vmatpush.msra.mxu0 0.0
    %611 = vmatpush.msra.mxu0 0.0
    %v612 = vand.u32 %v111, 4294901760
    %613 = vmatpush.msra.mxu0 %v612
    %v614 = vand.u32 %v110, 4294901760
    %615 = vmatpush.msra.mxu0 %v614
    %v616 = vand.u32 %v109, 4294901760
    %617 = vmatpush.msra.mxu0 %v616
    %v618 = vand.u32 %v108, 4294901760
    %619 = vmatpush.msra.mxu0 %v618
    %v620 = vand.u32 %v598, 4294901760
    %v621 = vsub.f32 %v598, %v620
    %v622 = vand.u32 %v621, 4294901760
    %v623 = vsub.f32 %v621, %v622
    %v624 = vand.u32 %v623, 4294901760
    %625 = vmatmul.f32.gmra.mxu0 %v624
    %v626 = vpop.f32.mrf.mxu0
    %v627 = vadd.f32 0.0, %v626
    %628 = vdwg.mxu0
    %629 = vmatpush.msra.mxu0 0.0
    %630 = vmatpush.msra.mxu0 0.0
    %631 = vmatpush.msra.mxu0 0.0
    %632 = vmatpush.msra.mxu0 0.0
    %633 = vmatpush.msra.mxu0 0.0
    %634 = vmatpush.msra.mxu0 0.0
    %635 = vmatpush.msra.mxu0 0.0
    %636 = vmatpush.msra.mxu0 0.0
    %637 = vmatpush.msra.mxu0 0.0
    %638 = vmatpush.msra.mxu0 0.0
    %639 = vmatpush.msra.mxu0 0.0
    %640 = vmatpush.msra.mxu0 0.0
    %v641 = vand.u32 %v111, 4294901760
    %v642 = vsub.f32 %v111, %v641
    %v643 = vand.u32 %v642, 4294901760
    %v644 = vsub.f32 %v642, %v643
    %v645 = vand.u32 %v644, 4294901760
    %646 = vmatpush.msra.mxu0 %v645
    %v647 = vand.u32 %v110, 4294901760
    %v648 = vsub.f32 %v110, %v647
    %v649 = vand.u32 %v648, 4294901760
    %v650 = vsub.f32 %v648, %v649
    %v651 = vand.u32 %v650, 4294901760
    %652 = vmatpush.msra.mxu0 %v651
    %v653 = vand.u32 %v109, 4294901760
    %v654 = vsub.f32 %v109, %v653
    %v655 = vand.u32 %v654, 4294901760
    %v656 = vsub.f32 %v654, %v655
    %v657 = vand.u32 %v656, 4294901760
    %658 = vmatpush.msra.mxu0 %v657
    %v659 = vand.u32 %v108, 4294901760
    %v660 = vsub.f32 %v108, %v659
    %v661 = vand.u32 %v660, 4294901760
    %v662 = vsub.f32 %v660, %v661
    %v663 = vand.u32 %v662, 4294901760
    %664 = vmatpush.msra.mxu0 %v663
    %v665 = vand.u32 %v598, 4294901760
    %666 = vmatmul.f32.gmra.mxu0 %v665
    %v667 = vpop.f32.mrf.mxu0
    %v668 = vadd.f32 %v627, %v667
    %669 = vdwg.mxu0
    %670 = vmatpush.msra.mxu0 0.0
    %671 = vmatpush.msra.mxu0 0.0
    %672 = vmatpush.msra.mxu0 0.0
    %673 = vmatpush.msra.mxu0 0.0
    %674 = vmatpush.msra.mxu0 0.0
    %675 = vmatpush.msra.mxu0 0.0
    %676 = vmatpush.msra.mxu0 0.0
    %677 = vmatpush.msra.mxu0 0.0
    %678 = vmatpush.msra.mxu0 0.0
    %679 = vmatpush.msra.mxu0 0.0
    %680 = vmatpush.msra.mxu0 0.0
    %681 = vmatpush.msra.mxu0 0.0
    %v682 = vand.u32 %v111, 4294901760
    %v683 = vsub.f32 %v111, %v682
    %684 = vmatpush.msra.mxu0 %v683
    %v685 = vand.u32 %v110, 4294901760
    %v686 = vsub.f32 %v110, %v685
    %687 = vmatpush.msra.mxu0 %v686
    %v688 = vand.u32 %v109, 4294901760
    %v689 = vsub.f32 %v109, %v688
    %690 = vmatpush.msra.mxu0 %v689
    %v691 = vand.u32 %v108, 4294901760
    %v692 = vsub.f32 %v108, %v691
    %693 = vmatpush.msra.mxu0 %v692
    %v694 = vand.u32 %v598, 4294901760
    %v695 = vsub.f32 %v598, %v694
    %696 = vmatmul.f32.gmra.mxu0 %v695
    %v697 = vpop.f32.mrf.mxu0
    %v698 = vadd.f32 %v668, %v697
    %699 = vdwg.mxu0
    %700 = vmatpush.msra.mxu0 0.0
    %701 = vmatpush.msra.mxu0 0.0
    %702 = vmatpush.msra.mxu0 0.0
    %703 = vmatpush.msra.mxu0 0.0
    %704 = vmatpush.msra.mxu0 0.0
    %705 = vmatpush.msra.mxu0 0.0
    %706 = vmatpush.msra.mxu0 0.0
    %707 = vmatpush.msra.mxu0 0.0
    %708 = vmatpush.msra.mxu0 0.0
    %709 = vmatpush.msra.mxu0 0.0
    %710 = vmatpush.msra.mxu0 0.0
    %711 = vmatpush.msra.mxu0 0.0
    %v712 = vand.u32 %v111, 4294901760
    %713 = vmatpush.msra.mxu0 %v712
    %v714 = vand.u32 %v110, 4294901760
    %715 = vmatpush.msra.mxu0 %v714
    %v716 = vand.u32 %v109, 4294901760
    %717 = vmatpush.msra.mxu0 %v716
    %v718 = vand.u32 %v108, 4294901760
    %719 = vmatpush.msra.mxu0 %v718
    %v720 = vand.u32 %v598, 4294901760
    %v721 = vsub.f32 %v598, %v720
    %v722 = vand.u32 %v721, 4294901760
    %723 = vmatmul.f32.gmra.mxu0 %v722
    %v724 = vpop.f32.mrf.mxu0
    %v725 = vadd.f32 %v698, %v724
    %726 = vdwg.mxu0
    %727 = vmatpush.msra.mxu0 0.0
    %728 = vmatpush.msra.mxu0 0.0
    %729 = vmatpush.msra.mxu0 0.0
    %730 = vmatpush.msra.mxu0 0.0
    %731 = vmatpush.msra.mxu0 0.0
    %732 = vmatpush.msra.mxu0 0.0
    %733 = vmatpush.msra.mxu0 0.0
    %734 = vmatpush.msra.mxu0 0.0
    %735 = vmatpush.msra.mxu0 0.0
    %736 = vmatpush.msra.mxu0 0.0
    %737 = vmatpush.msra.mxu0 0.0
    %738 = vmatpush.msra.mxu0 0.0
    %v739 = vand.u32 %v111, 4294901760
    %v740 = vsub.f32 %v111, %v739
    %v741 = vand.u32 %v740, 4294901760
    %742 = vmatpush.msra.mxu0 %v741
    %v743 = vand.u32 %v110, 4294901760
    %v744 = vsub.f32 %v110, %v743
    %v745 = vand.u32 %v744, 4294901760
    %746 = vmatpush.msra.mxu0 %v745
    %v747 = vand.u32 %v109, 4294901760
    %v748 = vsub.f32 %v109, %v747
    %v749 = vand.u32 %v748, 4294901760
    %750 = vmatpush.msra.mxu0 %v749
    %v751 = vand.u32 %v108, 4294901760
    %v752 = vsub.f32 %v108, %v751
    %v753 = vand.u32 %v752, 4294901760
    %754 = vmatpush.msra.mxu0 %v753
    %v755 = vand.u32 %v598, 4294901760
    %756 = vmatmul.f32.gmra.mxu0 %v755
    %v757 = vpop.f32.mrf.mxu0
    %v758 = vadd.f32 %v725, %v757
    %759 = vdwg.mxu0
    %760 = vmatpush.msra.mxu0 0.0
    %761 = vmatpush.msra.mxu0 0.0
    %762 = vmatpush.msra.mxu0 0.0
    %763 = vmatpush.msra.mxu0 0.0
    %764 = vmatpush.msra.mxu0 0.0
    %765 = vmatpush.msra.mxu0 0.0
    %766 = vmatpush.msra.mxu0 0.0
    %767 = vmatpush.msra.mxu0 0.0
    %768 = vmatpush.msra.mxu0 0.0
    %769 = vmatpush.msra.mxu0 0.0
    %770 = vmatpush.msra.mxu0 0.0
    %771 = vmatpush.msra.mxu0 0.0
    %v772 = vand.u32 %v111, 4294901760
    %773 = vmatpush.msra.mxu0 %v772
    %v774 = vand.u32 %v110, 4294901760
    %775 = vmatpush.msra.mxu0 %v774
    %v776 = vand.u32 %v109, 4294901760
    %777 = vmatpush.msra.mxu0 %v776
    %v778 = vand.u32 %v108, 4294901760
    %779 = vmatpush.msra.mxu0 %v778
    %v780 = vand.u32 %v598, 4294901760
    %781 = vmatmul.f32.gmra.mxu0 %v780
    %v782 = vpop.f32.mrf.mxu0
    %v783 = vadd.f32 %v758, %v782
    %784 = vdwg.mxu0
    %v786 = vrot.slane %v783, 6
    %v787 = vrot.slane %v783, 7
    %v790 = vadd.f32 %v303, %v786
    %v791 = vadd.f32 %v307, %v787
    %v792 = vmul.f32 %v790, %v103
    %v793 = vmul.f32 %v791, %v103
    %v794 = vtanh.pop %v792
    %v795 = vtanh.pop %v793
    %v796 = vmul.f32 %v794, 0.5
    %v797 = vmul.f32 %v795, 0.5
    %v798 = vadd.f32 %v796, 0.5
    %v799 = vadd.f32 %v797, 0.5
    %v802 = vrot.slane %v578, 7
    %v803 = vrot.slane %v579, 7
    %v806 = vmul.f32 %v798, %v802
    %v807 = vmul.f32 %v799, %v803
    %810 = vrot.lane.b32.xlu0 %v794, 64
    %v811 = vpop.permute.xlu0 %810
    %812 = vrot.lane.b32.xlu0 %v795, 64
    %v813 = vpop.permute.xlu0 %812
    %v816 = vmul.f32 %v798, %v811
    %v817 = vmul.f32 %v799, %v813
    %820 = vrot.lane.b32.xlu0 %v816, 32
    %v821 = vpop.permute.xlu0 %820
    %822 = vrot.lane.b32.xlu0 %v817, 32
    %v823 = vpop.permute.xlu0 %822
    %v826 = vadd.f32 %v806, %v821
    %v827 = vadd.f32 %v807, %v823
    %v828 = vtanh.pop %v826
    %v829 = vtanh.pop %v827
    %832 = vrot.lane.b32.xlu0 %v828, 64
    %v833 = vpop.permute.xlu0 %832
    %834 = vrot.lane.b32.xlu0 %v829, 64
    %v835 = vpop.permute.xlu0 %834
    %v838 = vmul.f32 %v798, %v833
    %v839 = vmul.f32 %v799, %v835
    %v842 = vrot.slane %v838, 2
    %v843 = vrot.slane %v839, 1
    %v844 = vsel %vm342, %v843, %v842
    %845 = vrot.lane.b32.xlu0 %v844, 32
    %v846 = vpop.permute.xlu0 %845
    %v847 = vsel %vm346, %v846, 0
    %849 = vmatpush.msra.mxu0 0.0
    %850 = vmatpush.msra.mxu0 0.0
    %851 = vmatpush.msra.mxu0 0.0
    %852 = vmatpush.msra.mxu0 0.0
    %853 = vmatpush.msra.mxu0 0.0
    %854 = vmatpush.msra.mxu0 0.0
    %855 = vmatpush.msra.mxu0 0.0
    %856 = vmatpush.msra.mxu0 0.0
    %857 = vmatpush.msra.mxu0 0.0
    %858 = vmatpush.msra.mxu0 0.0
    %859 = vmatpush.msra.mxu0 0.0
    %860 = vmatpush.msra.mxu0 0.0
    %v861 = vand.u32 %v111, 4294901760
    %862 = vmatpush.msra.mxu0 %v861
    %v863 = vand.u32 %v110, 4294901760
    %864 = vmatpush.msra.mxu0 %v863
    %v865 = vand.u32 %v109, 4294901760
    %866 = vmatpush.msra.mxu0 %v865
    %v867 = vand.u32 %v108, 4294901760
    %868 = vmatpush.msra.mxu0 %v867
    %v869 = vand.u32 %v847, 4294901760
    %v870 = vsub.f32 %v847, %v869
    %v871 = vand.u32 %v870, 4294901760
    %v872 = vsub.f32 %v870, %v871
    %v873 = vand.u32 %v872, 4294901760
    %874 = vmatmul.f32.gmra.mxu0 %v873
    %v875 = vpop.f32.mrf.mxu0
    %v876 = vadd.f32 0.0, %v875
    %877 = vdwg.mxu0
    %878 = vmatpush.msra.mxu0 0.0
    %879 = vmatpush.msra.mxu0 0.0
    %880 = vmatpush.msra.mxu0 0.0
    %881 = vmatpush.msra.mxu0 0.0
    %882 = vmatpush.msra.mxu0 0.0
    %883 = vmatpush.msra.mxu0 0.0
    %884 = vmatpush.msra.mxu0 0.0
    %885 = vmatpush.msra.mxu0 0.0
    %886 = vmatpush.msra.mxu0 0.0
    %887 = vmatpush.msra.mxu0 0.0
    %888 = vmatpush.msra.mxu0 0.0
    %889 = vmatpush.msra.mxu0 0.0
    %v890 = vand.u32 %v111, 4294901760
    %v891 = vsub.f32 %v111, %v890
    %v892 = vand.u32 %v891, 4294901760
    %v893 = vsub.f32 %v891, %v892
    %v894 = vand.u32 %v893, 4294901760
    %895 = vmatpush.msra.mxu0 %v894
    %v896 = vand.u32 %v110, 4294901760
    %v897 = vsub.f32 %v110, %v896
    %v898 = vand.u32 %v897, 4294901760
    %v899 = vsub.f32 %v897, %v898
    %v900 = vand.u32 %v899, 4294901760
    %901 = vmatpush.msra.mxu0 %v900
    %v902 = vand.u32 %v109, 4294901760
    %v903 = vsub.f32 %v109, %v902
    %v904 = vand.u32 %v903, 4294901760
    %v905 = vsub.f32 %v903, %v904
    %v906 = vand.u32 %v905, 4294901760
    %907 = vmatpush.msra.mxu0 %v906
    %v908 = vand.u32 %v108, 4294901760
    %v909 = vsub.f32 %v108, %v908
    %v910 = vand.u32 %v909, 4294901760
    %v911 = vsub.f32 %v909, %v910
    %v912 = vand.u32 %v911, 4294901760
    %913 = vmatpush.msra.mxu0 %v912
    %v914 = vand.u32 %v847, 4294901760
    %915 = vmatmul.f32.gmra.mxu0 %v914
    %v916 = vpop.f32.mrf.mxu0
    %v917 = vadd.f32 %v876, %v916
    %918 = vdwg.mxu0
    %919 = vmatpush.msra.mxu0 0.0
    %920 = vmatpush.msra.mxu0 0.0
    %921 = vmatpush.msra.mxu0 0.0
    %922 = vmatpush.msra.mxu0 0.0
    %923 = vmatpush.msra.mxu0 0.0
    %924 = vmatpush.msra.mxu0 0.0
    %925 = vmatpush.msra.mxu0 0.0
    %926 = vmatpush.msra.mxu0 0.0
    %927 = vmatpush.msra.mxu0 0.0
    %928 = vmatpush.msra.mxu0 0.0
    %929 = vmatpush.msra.mxu0 0.0
    %930 = vmatpush.msra.mxu0 0.0
    %v931 = vand.u32 %v111, 4294901760
    %v932 = vsub.f32 %v111, %v931
    %933 = vmatpush.msra.mxu0 %v932
    %v934 = vand.u32 %v110, 4294901760
    %v935 = vsub.f32 %v110, %v934
    %936 = vmatpush.msra.mxu0 %v935
    %v937 = vand.u32 %v109, 4294901760
    %v938 = vsub.f32 %v109, %v937
    %939 = vmatpush.msra.mxu0 %v938
    %v940 = vand.u32 %v108, 4294901760
    %v941 = vsub.f32 %v108, %v940
    %942 = vmatpush.msra.mxu0 %v941
    %v943 = vand.u32 %v847, 4294901760
    %v944 = vsub.f32 %v847, %v943
    %945 = vmatmul.f32.gmra.mxu0 %v944
    %v946 = vpop.f32.mrf.mxu0
    %v947 = vadd.f32 %v917, %v946
    %948 = vdwg.mxu0
    %949 = vmatpush.msra.mxu0 0.0
    %950 = vmatpush.msra.mxu0 0.0
    %951 = vmatpush.msra.mxu0 0.0
    %952 = vmatpush.msra.mxu0 0.0
    %953 = vmatpush.msra.mxu0 0.0
    %954 = vmatpush.msra.mxu0 0.0
    %955 = vmatpush.msra.mxu0 0.0
    %956 = vmatpush.msra.mxu0 0.0
    %957 = vmatpush.msra.mxu0 0.0
    %958 = vmatpush.msra.mxu0 0.0
    %959 = vmatpush.msra.mxu0 0.0
    %960 = vmatpush.msra.mxu0 0.0
    %v961 = vand.u32 %v111, 4294901760
    %962 = vmatpush.msra.mxu0 %v961
    %v963 = vand.u32 %v110, 4294901760
    %964 = vmatpush.msra.mxu0 %v963
    %v965 = vand.u32 %v109, 4294901760
    %966 = vmatpush.msra.mxu0 %v965
    %v967 = vand.u32 %v108, 4294901760
    %968 = vmatpush.msra.mxu0 %v967
    %v969 = vand.u32 %v847, 4294901760
    %v970 = vsub.f32 %v847, %v969
    %v971 = vand.u32 %v970, 4294901760
    %972 = vmatmul.f32.gmra.mxu0 %v971
    %v973 = vpop.f32.mrf.mxu0
    %v974 = vadd.f32 %v947, %v973
    %975 = vdwg.mxu0
    %976 = vmatpush.msra.mxu0 0.0
    %977 = vmatpush.msra.mxu0 0.0
    %978 = vmatpush.msra.mxu0 0.0
    %979 = vmatpush.msra.mxu0 0.0
    %980 = vmatpush.msra.mxu0 0.0
    %981 = vmatpush.msra.mxu0 0.0
    %982 = vmatpush.msra.mxu0 0.0
    %983 = vmatpush.msra.mxu0 0.0
    %984 = vmatpush.msra.mxu0 0.0
    %985 = vmatpush.msra.mxu0 0.0
    %986 = vmatpush.msra.mxu0 0.0
    %987 = vmatpush.msra.mxu0 0.0
    %v988 = vand.u32 %v111, 4294901760
    %v989 = vsub.f32 %v111, %v988
    %v990 = vand.u32 %v989, 4294901760
    %991 = vmatpush.msra.mxu0 %v990
    %v992 = vand.u32 %v110, 4294901760
    %v993 = vsub.f32 %v110, %v992
    %v994 = vand.u32 %v993, 4294901760
    %995 = vmatpush.msra.mxu0 %v994
    %v996 = vand.u32 %v109, 4294901760
    %v997 = vsub.f32 %v109, %v996
    %v998 = vand.u32 %v997, 4294901760
    %999 = vmatpush.msra.mxu0 %v998
    %v1000 = vand.u32 %v108, 4294901760
    %v1001 = vsub.f32 %v108, %v1000
    %v1002 = vand.u32 %v1001, 4294901760
    %1003 = vmatpush.msra.mxu0 %v1002
    %v1004 = vand.u32 %v847, 4294901760
    %1005 = vmatmul.f32.gmra.mxu0 %v1004
    %v1006 = vpop.f32.mrf.mxu0
    %v1007 = vadd.f32 %v974, %v1006
    %1008 = vdwg.mxu0
    %1009 = vmatpush.msra.mxu0 0.0
    %1010 = vmatpush.msra.mxu0 0.0
    %1011 = vmatpush.msra.mxu0 0.0
    %1012 = vmatpush.msra.mxu0 0.0
    %1013 = vmatpush.msra.mxu0 0.0
    %1014 = vmatpush.msra.mxu0 0.0
    %1015 = vmatpush.msra.mxu0 0.0
    %1016 = vmatpush.msra.mxu0 0.0
    %1017 = vmatpush.msra.mxu0 0.0
    %1018 = vmatpush.msra.mxu0 0.0
    %1019 = vmatpush.msra.mxu0 0.0
    %1020 = vmatpush.msra.mxu0 0.0
    %v1021 = vand.u32 %v111, 4294901760
    %1022 = vmatpush.msra.mxu0 %v1021
    %v1023 = vand.u32 %v110, 4294901760
    %1024 = vmatpush.msra.mxu0 %v1023
    %v1025 = vand.u32 %v109, 4294901760
    %1026 = vmatpush.msra.mxu0 %v1025
    %v1027 = vand.u32 %v108, 4294901760
    %1028 = vmatpush.msra.mxu0 %v1027
    %v1029 = vand.u32 %v847, 4294901760
    %1030 = vmatmul.f32.gmra.mxu0 %v1029
    %v1031 = vpop.f32.mrf.mxu0
    %v1032 = vadd.f32 %v1007, %v1031
    %1033 = vdwg.mxu0
    %v1035 = vrot.slane %v1032, 5
    %v1036 = vrot.slane %v1032, 6
    %v1039 = vadd.f32 %v303, %v1035
    %v1040 = vadd.f32 %v307, %v1036
    %v1041 = vmul.f32 %v1039, %v103
    %v1042 = vmul.f32 %v1040, %v103
    %v1043 = vtanh.pop %v1041
    %v1044 = vtanh.pop %v1042
    %v1045 = vmul.f32 %v1043, 0.5
    %v1046 = vmul.f32 %v1044, 0.5
    %v1047 = vadd.f32 %v1045, 0.5
    %v1048 = vadd.f32 %v1046, 0.5
    %v1051 = vrot.slane %v826, 7
    %v1052 = vrot.slane %v827, 7
    %v1055 = vmul.f32 %v1047, %v1051
    %v1056 = vmul.f32 %v1048, %v1052
    %1059 = vrot.lane.b32.xlu0 %v1043, 64
    %v1060 = vpop.permute.xlu0 %1059
    %1061 = vrot.lane.b32.xlu0 %v1044, 64
    %v1062 = vpop.permute.xlu0 %1061
    %v1065 = vmul.f32 %v1047, %v1060
    %v1066 = vmul.f32 %v1048, %v1062
    %1069 = vrot.lane.b32.xlu0 %v1065, 32
    %v1070 = vpop.permute.xlu0 %1069
    %1071 = vrot.lane.b32.xlu0 %v1066, 32
    %v1072 = vpop.permute.xlu0 %1071
    %v1075 = vadd.f32 %v1055, %v1070
    %v1076 = vadd.f32 %v1056, %v1072
    %v1077 = vtanh.pop %v1075
    %v1078 = vtanh.pop %v1076
    %1081 = vrot.lane.b32.xlu0 %v1077, 64
    %v1082 = vpop.permute.xlu0 %1081
    %1083 = vrot.lane.b32.xlu0 %v1078, 64
    %v1084 = vpop.permute.xlu0 %1083
    %v1087 = vmul.f32 %v1047, %v1082
    %v1088 = vmul.f32 %v1048, %v1084
    %v1091 = vrot.slane %v1087, 3
    %v1092 = vrot.slane %v1088, 2
    %v1093 = vsel %vm342, %v1092, %v1091
    %1094 = vrot.lane.b32.xlu0 %v1093, 32
    %v1095 = vpop.permute.xlu0 %1094
    %v1096 = vsel %vm346, %v1095, 0
    %1098 = vmatpush.msra.mxu0 0.0
    %1099 = vmatpush.msra.mxu0 0.0
    %1100 = vmatpush.msra.mxu0 0.0
    %1101 = vmatpush.msra.mxu0 0.0
    %1102 = vmatpush.msra.mxu0 0.0
    %1103 = vmatpush.msra.mxu0 0.0
    %1104 = vmatpush.msra.mxu0 0.0
    %1105 = vmatpush.msra.mxu0 0.0
    %1106 = vmatpush.msra.mxu0 0.0
    %1107 = vmatpush.msra.mxu0 0.0
    %1108 = vmatpush.msra.mxu0 0.0
    %1109 = vmatpush.msra.mxu0 0.0
    %v1110 = vand.u32 %v111, 4294901760
    %1111 = vmatpush.msra.mxu0 %v1110
    %v1112 = vand.u32 %v110, 4294901760
    %1113 = vmatpush.msra.mxu0 %v1112
    %v1114 = vand.u32 %v109, 4294901760
    %1115 = vmatpush.msra.mxu0 %v1114
    %v1116 = vand.u32 %v108, 4294901760
    %1117 = vmatpush.msra.mxu0 %v1116
    %v1118 = vand.u32 %v1096, 4294901760
    %v1119 = vsub.f32 %v1096, %v1118
    %v1120 = vand.u32 %v1119, 4294901760
    %v1121 = vsub.f32 %v1119, %v1120
    %v1122 = vand.u32 %v1121, 4294901760
    %1123 = vmatmul.f32.gmra.mxu0 %v1122
    %v1124 = vpop.f32.mrf.mxu0
    %v1125 = vadd.f32 0.0, %v1124
    %1126 = vdwg.mxu0
    %1127 = vmatpush.msra.mxu0 0.0
    %1128 = vmatpush.msra.mxu0 0.0
    %1129 = vmatpush.msra.mxu0 0.0
    %1130 = vmatpush.msra.mxu0 0.0
    %1131 = vmatpush.msra.mxu0 0.0
    %1132 = vmatpush.msra.mxu0 0.0
    %1133 = vmatpush.msra.mxu0 0.0
    %1134 = vmatpush.msra.mxu0 0.0
    %1135 = vmatpush.msra.mxu0 0.0
    %1136 = vmatpush.msra.mxu0 0.0
    %1137 = vmatpush.msra.mxu0 0.0
    %1138 = vmatpush.msra.mxu0 0.0
    %v1139 = vand.u32 %v111, 4294901760
    %v1140 = vsub.f32 %v111, %v1139
    %v1141 = vand.u32 %v1140, 4294901760
    %v1142 = vsub.f32 %v1140, %v1141
    %v1143 = vand.u32 %v1142, 4294901760
    %1144 = vmatpush.msra.mxu0 %v1143
    %v1145 = vand.u32 %v110, 4294901760
    %v1146 = vsub.f32 %v110, %v1145
    %v1147 = vand.u32 %v1146, 4294901760
    %v1148 = vsub.f32 %v1146, %v1147
    %v1149 = vand.u32 %v1148, 4294901760
    %1150 = vmatpush.msra.mxu0 %v1149
    %v1151 = vand.u32 %v109, 4294901760
    %v1152 = vsub.f32 %v109, %v1151
    %v1153 = vand.u32 %v1152, 4294901760
    %v1154 = vsub.f32 %v1152, %v1153
    %v1155 = vand.u32 %v1154, 4294901760
    %1156 = vmatpush.msra.mxu0 %v1155
    %v1157 = vand.u32 %v108, 4294901760
    %v1158 = vsub.f32 %v108, %v1157
    %v1159 = vand.u32 %v1158, 4294901760
    %v1160 = vsub.f32 %v1158, %v1159
    %v1161 = vand.u32 %v1160, 4294901760
    %1162 = vmatpush.msra.mxu0 %v1161
    %v1163 = vand.u32 %v1096, 4294901760
    %1164 = vmatmul.f32.gmra.mxu0 %v1163
    %v1165 = vpop.f32.mrf.mxu0
    %v1166 = vadd.f32 %v1125, %v1165
    %1167 = vdwg.mxu0
    %1168 = vmatpush.msra.mxu0 0.0
    %1169 = vmatpush.msra.mxu0 0.0
    %1170 = vmatpush.msra.mxu0 0.0
    %1171 = vmatpush.msra.mxu0 0.0
    %1172 = vmatpush.msra.mxu0 0.0
    %1173 = vmatpush.msra.mxu0 0.0
    %1174 = vmatpush.msra.mxu0 0.0
    %1175 = vmatpush.msra.mxu0 0.0
    %1176 = vmatpush.msra.mxu0 0.0
    %1177 = vmatpush.msra.mxu0 0.0
    %1178 = vmatpush.msra.mxu0 0.0
    %1179 = vmatpush.msra.mxu0 0.0
    %v1180 = vand.u32 %v111, 4294901760
    %v1181 = vsub.f32 %v111, %v1180
    %1182 = vmatpush.msra.mxu0 %v1181
    %v1183 = vand.u32 %v110, 4294901760
    %v1184 = vsub.f32 %v110, %v1183
    %1185 = vmatpush.msra.mxu0 %v1184
    %v1186 = vand.u32 %v109, 4294901760
    %v1187 = vsub.f32 %v109, %v1186
    %1188 = vmatpush.msra.mxu0 %v1187
    %v1189 = vand.u32 %v108, 4294901760
    %v1190 = vsub.f32 %v108, %v1189
    %1191 = vmatpush.msra.mxu0 %v1190
    %v1192 = vand.u32 %v1096, 4294901760
    %v1193 = vsub.f32 %v1096, %v1192
    %1194 = vmatmul.f32.gmra.mxu0 %v1193
    %v1195 = vpop.f32.mrf.mxu0
    %v1196 = vadd.f32 %v1166, %v1195
    %1197 = vdwg.mxu0
    %1198 = vmatpush.msra.mxu0 0.0
    %1199 = vmatpush.msra.mxu0 0.0
    %1200 = vmatpush.msra.mxu0 0.0
    %1201 = vmatpush.msra.mxu0 0.0
    %1202 = vmatpush.msra.mxu0 0.0
    %1203 = vmatpush.msra.mxu0 0.0
    %1204 = vmatpush.msra.mxu0 0.0
    %1205 = vmatpush.msra.mxu0 0.0
    %1206 = vmatpush.msra.mxu0 0.0
    %1207 = vmatpush.msra.mxu0 0.0
    %1208 = vmatpush.msra.mxu0 0.0
    %1209 = vmatpush.msra.mxu0 0.0
    %v1210 = vand.u32 %v111, 4294901760
    %1211 = vmatpush.msra.mxu0 %v1210
    %v1212 = vand.u32 %v110, 4294901760
    %1213 = vmatpush.msra.mxu0 %v1212
    %v1214 = vand.u32 %v109, 4294901760
    %1215 = vmatpush.msra.mxu0 %v1214
    %v1216 = vand.u32 %v108, 4294901760
    %1217 = vmatpush.msra.mxu0 %v1216
    %v1218 = vand.u32 %v1096, 4294901760
    %v1219 = vsub.f32 %v1096, %v1218
    %v1220 = vand.u32 %v1219, 4294901760
    %1221 = vmatmul.f32.gmra.mxu0 %v1220
    %v1222 = vpop.f32.mrf.mxu0
    %v1223 = vadd.f32 %v1196, %v1222
    %1224 = vdwg.mxu0
    %1225 = vmatpush.msra.mxu0 0.0
    %1226 = vmatpush.msra.mxu0 0.0
    %1227 = vmatpush.msra.mxu0 0.0
    %1228 = vmatpush.msra.mxu0 0.0
    %1229 = vmatpush.msra.mxu0 0.0
    %1230 = vmatpush.msra.mxu0 0.0
    %1231 = vmatpush.msra.mxu0 0.0
    %1232 = vmatpush.msra.mxu0 0.0
    %1233 = vmatpush.msra.mxu0 0.0
    %1234 = vmatpush.msra.mxu0 0.0
    %1235 = vmatpush.msra.mxu0 0.0
    %1236 = vmatpush.msra.mxu0 0.0
    %v1237 = vand.u32 %v111, 4294901760
    %v1238 = vsub.f32 %v111, %v1237
    %v1239 = vand.u32 %v1238, 4294901760
    %1240 = vmatpush.msra.mxu0 %v1239
    %v1241 = vand.u32 %v110, 4294901760
    %v1242 = vsub.f32 %v110, %v1241
    %v1243 = vand.u32 %v1242, 4294901760
    %1244 = vmatpush.msra.mxu0 %v1243
    %v1245 = vand.u32 %v109, 4294901760
    %v1246 = vsub.f32 %v109, %v1245
    %v1247 = vand.u32 %v1246, 4294901760
    %1248 = vmatpush.msra.mxu0 %v1247
    %v1249 = vand.u32 %v108, 4294901760
    %v1250 = vsub.f32 %v108, %v1249
    %v1251 = vand.u32 %v1250, 4294901760
    %1252 = vmatpush.msra.mxu0 %v1251
    %v1253 = vand.u32 %v1096, 4294901760
    %1254 = vmatmul.f32.gmra.mxu0 %v1253
    %v1255 = vpop.f32.mrf.mxu0
    %v1256 = vadd.f32 %v1223, %v1255
    %1257 = vdwg.mxu0
    %1258 = vmatpush.msra.mxu0 0.0
    %1259 = vmatpush.msra.mxu0 0.0
    %1260 = vmatpush.msra.mxu0 0.0
    %1261 = vmatpush.msra.mxu0 0.0
    %1262 = vmatpush.msra.mxu0 0.0
    %1263 = vmatpush.msra.mxu0 0.0
    %1264 = vmatpush.msra.mxu0 0.0
    %1265 = vmatpush.msra.mxu0 0.0
    %1266 = vmatpush.msra.mxu0 0.0
    %1267 = vmatpush.msra.mxu0 0.0
    %1268 = vmatpush.msra.mxu0 0.0
    %1269 = vmatpush.msra.mxu0 0.0
    %v1270 = vand.u32 %v111, 4294901760
    %1271 = vmatpush.msra.mxu0 %v1270
    %v1272 = vand.u32 %v110, 4294901760
    %1273 = vmatpush.msra.mxu0 %v1272
    %v1274 = vand.u32 %v109, 4294901760
    %1275 = vmatpush.msra.mxu0 %v1274
    %v1276 = vand.u32 %v108, 4294901760
    %1277 = vmatpush.msra.mxu0 %v1276
    %v1278 = vand.u32 %v1096, 4294901760
    %1279 = vmatmul.f32.gmra.mxu0 %v1278
    %v1280 = vpop.f32.mrf.mxu0
    %v1281 = vadd.f32 %v1256, %v1280
    %1282 = vdwg.mxu0
    %v1284 = vrot.slane %v1281, 4
    %v1285 = vrot.slane %v1281, 5
    %v1288 = vadd.f32 %v303, %v1284
    %v1289 = vadd.f32 %v307, %v1285
    %v1290 = vmul.f32 %v1288, %v103
    %v1291 = vmul.f32 %v1289, %v103
    %v1292 = vtanh.pop %v1290
    %v1293 = vtanh.pop %v1291
    %v1294 = vmul.f32 %v1292, 0.5
    %v1295 = vmul.f32 %v1293, 0.5
    %v1296 = vadd.f32 %v1294, 0.5
    %v1297 = vadd.f32 %v1295, 0.5
    %v1300 = vrot.slane %v1075, 7
    %v1301 = vrot.slane %v1076, 7
    %v1304 = vmul.f32 %v1296, %v1300
    %v1305 = vmul.f32 %v1297, %v1301
    %1308 = vrot.lane.b32.xlu0 %v1292, 64
    %v1309 = vpop.permute.xlu0 %1308
    %1310 = vrot.lane.b32.xlu0 %v1293, 64
    %v1311 = vpop.permute.xlu0 %1310
    %v1314 = vmul.f32 %v1296, %v1309
    %v1315 = vmul.f32 %v1297, %v1311
    %1318 = vrot.lane.b32.xlu0 %v1314, 32
    %v1319 = vpop.permute.xlu0 %1318
    %1320 = vrot.lane.b32.xlu0 %v1315, 32
    %v1321 = vpop.permute.xlu0 %1320
    %v1324 = vadd.f32 %v1304, %v1319
    %v1325 = vadd.f32 %v1305, %v1321
    %v1326 = vtanh.pop %v1324
    %v1327 = vtanh.pop %v1325
    %1330 = vrot.lane.b32.xlu0 %v1326, 64
    %v1331 = vpop.permute.xlu0 %1330
    %1332 = vrot.lane.b32.xlu0 %v1327, 64
    %v1333 = vpop.permute.xlu0 %1332
    %v1336 = vmul.f32 %v1296, %v1331
    %v1337 = vmul.f32 %v1297, %v1333
    %v1340 = vrot.slane %v1336, 4
    %v1341 = vrot.slane %v1337, 3
    %v1342 = vsel %vm342, %v1341, %v1340
    %1343 = vrot.lane.b32.xlu0 %v1342, 32
    %v1344 = vpop.permute.xlu0 %1343
    %v1345 = vsel %vm346, %v1344, 0
    %1347 = vmatpush.msra.mxu0 0.0
    %1348 = vmatpush.msra.mxu0 0.0
    %1349 = vmatpush.msra.mxu0 0.0
    %1350 = vmatpush.msra.mxu0 0.0
    %1351 = vmatpush.msra.mxu0 0.0
    %1352 = vmatpush.msra.mxu0 0.0
    %1353 = vmatpush.msra.mxu0 0.0
    %1354 = vmatpush.msra.mxu0 0.0
    %1355 = vmatpush.msra.mxu0 0.0
    %1356 = vmatpush.msra.mxu0 0.0
    %1357 = vmatpush.msra.mxu0 0.0
    %1358 = vmatpush.msra.mxu0 0.0
    %v1359 = vand.u32 %v111, 4294901760
    %1360 = vmatpush.msra.mxu0 %v1359
    %v1361 = vand.u32 %v110, 4294901760
    %1362 = vmatpush.msra.mxu0 %v1361
    %v1363 = vand.u32 %v109, 4294901760
    %1364 = vmatpush.msra.mxu0 %v1363
    %v1365 = vand.u32 %v108, 4294901760
    %1366 = vmatpush.msra.mxu0 %v1365
    %v1367 = vand.u32 %v1345, 4294901760
    %v1368 = vsub.f32 %v1345, %v1367
    %v1369 = vand.u32 %v1368, 4294901760
    %v1370 = vsub.f32 %v1368, %v1369
    %v1371 = vand.u32 %v1370, 4294901760
    %1372 = vmatmul.f32.gmra.mxu0 %v1371
    %v1373 = vpop.f32.mrf.mxu0
    %v1374 = vadd.f32 0.0, %v1373
    %1375 = vdwg.mxu0
    %1376 = vmatpush.msra.mxu0 0.0
    %1377 = vmatpush.msra.mxu0 0.0
    %1378 = vmatpush.msra.mxu0 0.0
    %1379 = vmatpush.msra.mxu0 0.0
    %1380 = vmatpush.msra.mxu0 0.0
    %1381 = vmatpush.msra.mxu0 0.0
    %1382 = vmatpush.msra.mxu0 0.0
    %1383 = vmatpush.msra.mxu0 0.0
    %1384 = vmatpush.msra.mxu0 0.0
    %1385 = vmatpush.msra.mxu0 0.0
    %1386 = vmatpush.msra.mxu0 0.0
    %1387 = vmatpush.msra.mxu0 0.0
    %v1388 = vand.u32 %v111, 4294901760
    %v1389 = vsub.f32 %v111, %v1388
    %v1390 = vand.u32 %v1389, 4294901760
    %v1391 = vsub.f32 %v1389, %v1390
    %v1392 = vand.u32 %v1391, 4294901760
    %1393 = vmatpush.msra.mxu0 %v1392
    %v1394 = vand.u32 %v110, 4294901760
    %v1395 = vsub.f32 %v110, %v1394
    %v1396 = vand.u32 %v1395, 4294901760
    %v1397 = vsub.f32 %v1395, %v1396
    %v1398 = vand.u32 %v1397, 4294901760
    %1399 = vmatpush.msra.mxu0 %v1398
    %v1400 = vand.u32 %v109, 4294901760
    %v1401 = vsub.f32 %v109, %v1400
    %v1402 = vand.u32 %v1401, 4294901760
    %v1403 = vsub.f32 %v1401, %v1402
    %v1404 = vand.u32 %v1403, 4294901760
    %1405 = vmatpush.msra.mxu0 %v1404
    %v1406 = vand.u32 %v108, 4294901760
    %v1407 = vsub.f32 %v108, %v1406
    %v1408 = vand.u32 %v1407, 4294901760
    %v1409 = vsub.f32 %v1407, %v1408
    %v1410 = vand.u32 %v1409, 4294901760
    %1411 = vmatpush.msra.mxu0 %v1410
    %v1412 = vand.u32 %v1345, 4294901760
    %1413 = vmatmul.f32.gmra.mxu0 %v1412
    %v1414 = vpop.f32.mrf.mxu0
    %v1415 = vadd.f32 %v1374, %v1414
    %1416 = vdwg.mxu0
    %1417 = vmatpush.msra.mxu0 0.0
    %1418 = vmatpush.msra.mxu0 0.0
    %1419 = vmatpush.msra.mxu0 0.0
    %1420 = vmatpush.msra.mxu0 0.0
    %1421 = vmatpush.msra.mxu0 0.0
    %1422 = vmatpush.msra.mxu0 0.0
    %1423 = vmatpush.msra.mxu0 0.0
    %1424 = vmatpush.msra.mxu0 0.0
    %1425 = vmatpush.msra.mxu0 0.0
    %1426 = vmatpush.msra.mxu0 0.0
    %1427 = vmatpush.msra.mxu0 0.0
    %1428 = vmatpush.msra.mxu0 0.0
    %v1429 = vand.u32 %v111, 4294901760
    %v1430 = vsub.f32 %v111, %v1429
    %1431 = vmatpush.msra.mxu0 %v1430
    %v1432 = vand.u32 %v110, 4294901760
    %v1433 = vsub.f32 %v110, %v1432
    %1434 = vmatpush.msra.mxu0 %v1433
    %v1435 = vand.u32 %v109, 4294901760
    %v1436 = vsub.f32 %v109, %v1435
    %1437 = vmatpush.msra.mxu0 %v1436
    %v1438 = vand.u32 %v108, 4294901760
    %v1439 = vsub.f32 %v108, %v1438
    %1440 = vmatpush.msra.mxu0 %v1439
    %v1441 = vand.u32 %v1345, 4294901760
    %v1442 = vsub.f32 %v1345, %v1441
    %1443 = vmatmul.f32.gmra.mxu0 %v1442
    %v1444 = vpop.f32.mrf.mxu0
    %v1445 = vadd.f32 %v1415, %v1444
    %1446 = vdwg.mxu0
    %1447 = vmatpush.msra.mxu0 0.0
    %1448 = vmatpush.msra.mxu0 0.0
    %1449 = vmatpush.msra.mxu0 0.0
    %1450 = vmatpush.msra.mxu0 0.0
    %1451 = vmatpush.msra.mxu0 0.0
    %1452 = vmatpush.msra.mxu0 0.0
    %1453 = vmatpush.msra.mxu0 0.0
    %1454 = vmatpush.msra.mxu0 0.0
    %1455 = vmatpush.msra.mxu0 0.0
    %1456 = vmatpush.msra.mxu0 0.0
    %1457 = vmatpush.msra.mxu0 0.0
    %1458 = vmatpush.msra.mxu0 0.0
    %v1459 = vand.u32 %v111, 4294901760
    %1460 = vmatpush.msra.mxu0 %v1459
    %v1461 = vand.u32 %v110, 4294901760
    %1462 = vmatpush.msra.mxu0 %v1461
    %v1463 = vand.u32 %v109, 4294901760
    %1464 = vmatpush.msra.mxu0 %v1463
    %v1465 = vand.u32 %v108, 4294901760
    %1466 = vmatpush.msra.mxu0 %v1465
    %v1467 = vand.u32 %v1345, 4294901760
    %v1468 = vsub.f32 %v1345, %v1467
    %v1469 = vand.u32 %v1468, 4294901760
    %1470 = vmatmul.f32.gmra.mxu0 %v1469
    %v1471 = vpop.f32.mrf.mxu0
    %v1472 = vadd.f32 %v1445, %v1471
    %1473 = vdwg.mxu0
    %1474 = vmatpush.msra.mxu0 0.0
    %1475 = vmatpush.msra.mxu0 0.0
    %1476 = vmatpush.msra.mxu0 0.0
    %1477 = vmatpush.msra.mxu0 0.0
    %1478 = vmatpush.msra.mxu0 0.0
    %1479 = vmatpush.msra.mxu0 0.0
    %1480 = vmatpush.msra.mxu0 0.0
    %1481 = vmatpush.msra.mxu0 0.0
    %1482 = vmatpush.msra.mxu0 0.0
    %1483 = vmatpush.msra.mxu0 0.0
    %1484 = vmatpush.msra.mxu0 0.0
    %1485 = vmatpush.msra.mxu0 0.0
    %v1486 = vand.u32 %v111, 4294901760
    %v1487 = vsub.f32 %v111, %v1486
    %v1488 = vand.u32 %v1487, 4294901760
    %1489 = vmatpush.msra.mxu0 %v1488
    %v1490 = vand.u32 %v110, 4294901760
    %v1491 = vsub.f32 %v110, %v1490
    %v1492 = vand.u32 %v1491, 4294901760
    %1493 = vmatpush.msra.mxu0 %v1492
    %v1494 = vand.u32 %v109, 4294901760
    %v1495 = vsub.f32 %v109, %v1494
    %v1496 = vand.u32 %v1495, 4294901760
    %1497 = vmatpush.msra.mxu0 %v1496
    %v1498 = vand.u32 %v108, 4294901760
    %v1499 = vsub.f32 %v108, %v1498
    %v1500 = vand.u32 %v1499, 4294901760
    %1501 = vmatpush.msra.mxu0 %v1500
    %v1502 = vand.u32 %v1345, 4294901760
    %1503 = vmatmul.f32.gmra.mxu0 %v1502
    %v1504 = vpop.f32.mrf.mxu0
    %v1505 = vadd.f32 %v1472, %v1504
    %1506 = vdwg.mxu0
    %1507 = vmatpush.msra.mxu0 0.0
    %1508 = vmatpush.msra.mxu0 0.0
    %1509 = vmatpush.msra.mxu0 0.0
    %1510 = vmatpush.msra.mxu0 0.0
    %1511 = vmatpush.msra.mxu0 0.0
    %1512 = vmatpush.msra.mxu0 0.0
    %1513 = vmatpush.msra.mxu0 0.0
    %1514 = vmatpush.msra.mxu0 0.0
    %1515 = vmatpush.msra.mxu0 0.0
    %1516 = vmatpush.msra.mxu0 0.0
    %1517 = vmatpush.msra.mxu0 0.0
    %1518 = vmatpush.msra.mxu0 0.0
    %v1519 = vand.u32 %v111, 4294901760
    %1520 = vmatpush.msra.mxu0 %v1519
    %v1521 = vand.u32 %v110, 4294901760
    %1522 = vmatpush.msra.mxu0 %v1521
    %v1523 = vand.u32 %v109, 4294901760
    %1524 = vmatpush.msra.mxu0 %v1523
    %v1525 = vand.u32 %v108, 4294901760
    %1526 = vmatpush.msra.mxu0 %v1525
    %v1527 = vand.u32 %v1345, 4294901760
    %1528 = vmatmul.f32.gmra.mxu0 %v1527
    %v1529 = vpop.f32.mrf.mxu0
    %v1530 = vadd.f32 %v1505, %v1529
    %1531 = vdwg.mxu0
    %v1533 = vrot.slane %v1530, 3
    %v1534 = vrot.slane %v1530, 4
    %v1537 = vadd.f32 %v303, %v1533
    %v1538 = vadd.f32 %v307, %v1534
    %v1539 = vmul.f32 %v1537, %v103
    %v1540 = vmul.f32 %v1538, %v103
    %v1541 = vtanh.pop %v1539
    %v1542 = vtanh.pop %v1540
    %v1543 = vmul.f32 %v1541, 0.5
    %v1544 = vmul.f32 %v1542, 0.5
    %v1545 = vadd.f32 %v1543, 0.5
    %v1546 = vadd.f32 %v1544, 0.5
    %v1549 = vrot.slane %v1324, 7
    %v1550 = vrot.slane %v1325, 7
    %v1553 = vmul.f32 %v1545, %v1549
    %v1554 = vmul.f32 %v1546, %v1550
    %1557 = vrot.lane.b32.xlu0 %v1541, 64
    %v1558 = vpop.permute.xlu0 %1557
    %1559 = vrot.lane.b32.xlu0 %v1542, 64
    %v1560 = vpop.permute.xlu0 %1559
    %v1563 = vmul.f32 %v1545, %v1558
    %v1564 = vmul.f32 %v1546, %v1560
    %1567 = vrot.lane.b32.xlu0 %v1563, 32
    %v1568 = vpop.permute.xlu0 %1567
    %1569 = vrot.lane.b32.xlu0 %v1564, 32
    %v1570 = vpop.permute.xlu0 %1569
    %v1573 = vadd.f32 %v1553, %v1568
    %v1574 = vadd.f32 %v1554, %v1570
    %v1575 = vtanh.pop %v1573
    %v1576 = vtanh.pop %v1574
    %1579 = vrot.lane.b32.xlu0 %v1575, 64
    %v1580 = vpop.permute.xlu0 %1579
    %1581 = vrot.lane.b32.xlu0 %v1576, 64
    %v1582 = vpop.permute.xlu0 %1581
    %v1585 = vmul.f32 %v1545, %v1580
    %v1586 = vmul.f32 %v1546, %v1582
    %v1589 = vrot.slane %v1585, 5
    %v1590 = vrot.slane %v1586, 4
    %v1591 = vsel %vm342, %v1590, %v1589
    %1592 = vrot.lane.b32.xlu0 %v1591, 32
    %v1593 = vpop.permute.xlu0 %1592
    %v1594 = vsel %vm346, %v1593, 0
    %1596 = vmatpush.msra.mxu0 0.0
    %1597 = vmatpush.msra.mxu0 0.0
    %1598 = vmatpush.msra.mxu0 0.0
    %1599 = vmatpush.msra.mxu0 0.0
    %1600 = vmatpush.msra.mxu0 0.0
    %1601 = vmatpush.msra.mxu0 0.0
    %1602 = vmatpush.msra.mxu0 0.0
    %1603 = vmatpush.msra.mxu0 0.0
    %1604 = vmatpush.msra.mxu0 0.0
    %1605 = vmatpush.msra.mxu0 0.0
    %1606 = vmatpush.msra.mxu0 0.0
    %1607 = vmatpush.msra.mxu0 0.0
    %v1608 = vand.u32 %v111, 4294901760
    %1609 = vmatpush.msra.mxu0 %v1608
    %v1610 = vand.u32 %v110, 4294901760
    %1611 = vmatpush.msra.mxu0 %v1610
    %v1612 = vand.u32 %v109, 4294901760
    %1613 = vmatpush.msra.mxu0 %v1612
    %v1614 = vand.u32 %v108, 4294901760
    %1615 = vmatpush.msra.mxu0 %v1614
    %v1616 = vand.u32 %v1594, 4294901760
    %v1617 = vsub.f32 %v1594, %v1616
    %v1618 = vand.u32 %v1617, 4294901760
    %v1619 = vsub.f32 %v1617, %v1618
    %v1620 = vand.u32 %v1619, 4294901760
    %1621 = vmatmul.f32.gmra.mxu0 %v1620
    %v1622 = vpop.f32.mrf.mxu0
    %v1623 = vadd.f32 0.0, %v1622
    %1624 = vdwg.mxu0
    %1625 = vmatpush.msra.mxu0 0.0
    %1626 = vmatpush.msra.mxu0 0.0
    %1627 = vmatpush.msra.mxu0 0.0
    %1628 = vmatpush.msra.mxu0 0.0
    %1629 = vmatpush.msra.mxu0 0.0
    %1630 = vmatpush.msra.mxu0 0.0
    %1631 = vmatpush.msra.mxu0 0.0
    %1632 = vmatpush.msra.mxu0 0.0
    %1633 = vmatpush.msra.mxu0 0.0
    %1634 = vmatpush.msra.mxu0 0.0
    %1635 = vmatpush.msra.mxu0 0.0
    %1636 = vmatpush.msra.mxu0 0.0
    %v1637 = vand.u32 %v111, 4294901760
    %v1638 = vsub.f32 %v111, %v1637
    %v1639 = vand.u32 %v1638, 4294901760
    %v1640 = vsub.f32 %v1638, %v1639
    %v1641 = vand.u32 %v1640, 4294901760
    %1642 = vmatpush.msra.mxu0 %v1641
    %v1643 = vand.u32 %v110, 4294901760
    %v1644 = vsub.f32 %v110, %v1643
    %v1645 = vand.u32 %v1644, 4294901760
    %v1646 = vsub.f32 %v1644, %v1645
    %v1647 = vand.u32 %v1646, 4294901760
    %1648 = vmatpush.msra.mxu0 %v1647
    %v1649 = vand.u32 %v109, 4294901760
    %v1650 = vsub.f32 %v109, %v1649
    %v1651 = vand.u32 %v1650, 4294901760
    %v1652 = vsub.f32 %v1650, %v1651
    %v1653 = vand.u32 %v1652, 4294901760
    %1654 = vmatpush.msra.mxu0 %v1653
    %v1655 = vand.u32 %v108, 4294901760
    %v1656 = vsub.f32 %v108, %v1655
    %v1657 = vand.u32 %v1656, 4294901760
    %v1658 = vsub.f32 %v1656, %v1657
    %v1659 = vand.u32 %v1658, 4294901760
    %1660 = vmatpush.msra.mxu0 %v1659
    %v1661 = vand.u32 %v1594, 4294901760
    %1662 = vmatmul.f32.gmra.mxu0 %v1661
    %v1663 = vpop.f32.mrf.mxu0
    %v1664 = vadd.f32 %v1623, %v1663
    %1665 = vdwg.mxu0
    %1666 = vmatpush.msra.mxu0 0.0
    %1667 = vmatpush.msra.mxu0 0.0
    %1668 = vmatpush.msra.mxu0 0.0
    %1669 = vmatpush.msra.mxu0 0.0
    %1670 = vmatpush.msra.mxu0 0.0
    %1671 = vmatpush.msra.mxu0 0.0
    %1672 = vmatpush.msra.mxu0 0.0
    %1673 = vmatpush.msra.mxu0 0.0
    %1674 = vmatpush.msra.mxu0 0.0
    %1675 = vmatpush.msra.mxu0 0.0
    %1676 = vmatpush.msra.mxu0 0.0
    %1677 = vmatpush.msra.mxu0 0.0
    %v1678 = vand.u32 %v111, 4294901760
    %v1679 = vsub.f32 %v111, %v1678
    %1680 = vmatpush.msra.mxu0 %v1679
    %v1681 = vand.u32 %v110, 4294901760
    %v1682 = vsub.f32 %v110, %v1681
    %1683 = vmatpush.msra.mxu0 %v1682
    %v1684 = vand.u32 %v109, 4294901760
    %v1685 = vsub.f32 %v109, %v1684
    %1686 = vmatpush.msra.mxu0 %v1685
    %v1687 = vand.u32 %v108, 4294901760
    %v1688 = vsub.f32 %v108, %v1687
    %1689 = vmatpush.msra.mxu0 %v1688
    %v1690 = vand.u32 %v1594, 4294901760
    %v1691 = vsub.f32 %v1594, %v1690
    %1692 = vmatmul.f32.gmra.mxu0 %v1691
    %v1693 = vpop.f32.mrf.mxu0
    %v1694 = vadd.f32 %v1664, %v1693
    %1695 = vdwg.mxu0
    %1696 = vmatpush.msra.mxu0 0.0
    %1697 = vmatpush.msra.mxu0 0.0
    %1698 = vmatpush.msra.mxu0 0.0
    %1699 = vmatpush.msra.mxu0 0.0
    %1700 = vmatpush.msra.mxu0 0.0
    %1701 = vmatpush.msra.mxu0 0.0
    %1702 = vmatpush.msra.mxu0 0.0
    %1703 = vmatpush.msra.mxu0 0.0
    %1704 = vmatpush.msra.mxu0 0.0
    %1705 = vmatpush.msra.mxu0 0.0
    %1706 = vmatpush.msra.mxu0 0.0
    %1707 = vmatpush.msra.mxu0 0.0
    %v1708 = vand.u32 %v111, 4294901760
    %1709 = vmatpush.msra.mxu0 %v1708
    %v1710 = vand.u32 %v110, 4294901760
    %1711 = vmatpush.msra.mxu0 %v1710
    %v1712 = vand.u32 %v109, 4294901760
    %1713 = vmatpush.msra.mxu0 %v1712
    %v1714 = vand.u32 %v108, 4294901760
    %1715 = vmatpush.msra.mxu0 %v1714
    %v1716 = vand.u32 %v1594, 4294901760
    %v1717 = vsub.f32 %v1594, %v1716
    %v1718 = vand.u32 %v1717, 4294901760
    %1719 = vmatmul.f32.gmra.mxu0 %v1718
    %v1720 = vpop.f32.mrf.mxu0
    %v1721 = vadd.f32 %v1694, %v1720
    %1722 = vdwg.mxu0
    %1723 = vmatpush.msra.mxu0 0.0
    %1724 = vmatpush.msra.mxu0 0.0
    %1725 = vmatpush.msra.mxu0 0.0
    %1726 = vmatpush.msra.mxu0 0.0
    %1727 = vmatpush.msra.mxu0 0.0
    %1728 = vmatpush.msra.mxu0 0.0
    %1729 = vmatpush.msra.mxu0 0.0
    %1730 = vmatpush.msra.mxu0 0.0
    %1731 = vmatpush.msra.mxu0 0.0
    %1732 = vmatpush.msra.mxu0 0.0
    %1733 = vmatpush.msra.mxu0 0.0
    %1734 = vmatpush.msra.mxu0 0.0
    %v1735 = vand.u32 %v111, 4294901760
    %v1736 = vsub.f32 %v111, %v1735
    %v1737 = vand.u32 %v1736, 4294901760
    %1738 = vmatpush.msra.mxu0 %v1737
    %v1739 = vand.u32 %v110, 4294901760
    %v1740 = vsub.f32 %v110, %v1739
    %v1741 = vand.u32 %v1740, 4294901760
    %1742 = vmatpush.msra.mxu0 %v1741
    %v1743 = vand.u32 %v109, 4294901760
    %v1744 = vsub.f32 %v109, %v1743
    %v1745 = vand.u32 %v1744, 4294901760
    %1746 = vmatpush.msra.mxu0 %v1745
    %v1747 = vand.u32 %v108, 4294901760
    %v1748 = vsub.f32 %v108, %v1747
    %v1749 = vand.u32 %v1748, 4294901760
    %1750 = vmatpush.msra.mxu0 %v1749
    %v1751 = vand.u32 %v1594, 4294901760
    %1752 = vmatmul.f32.gmra.mxu0 %v1751
    %v1753 = vpop.f32.mrf.mxu0
    %v1754 = vadd.f32 %v1721, %v1753
    %1755 = vdwg.mxu0
    %1756 = vmatpush.msra.mxu0 0.0
    %1757 = vmatpush.msra.mxu0 0.0
    %1758 = vmatpush.msra.mxu0 0.0
    %1759 = vmatpush.msra.mxu0 0.0
    %1760 = vmatpush.msra.mxu0 0.0
    %1761 = vmatpush.msra.mxu0 0.0
    %1762 = vmatpush.msra.mxu0 0.0
    %1763 = vmatpush.msra.mxu0 0.0
    %1764 = vmatpush.msra.mxu0 0.0
    %1765 = vmatpush.msra.mxu0 0.0
    %1766 = vmatpush.msra.mxu0 0.0
    %1767 = vmatpush.msra.mxu0 0.0
    %v1768 = vand.u32 %v111, 4294901760
    %1769 = vmatpush.msra.mxu0 %v1768
    %v1770 = vand.u32 %v110, 4294901760
    %1771 = vmatpush.msra.mxu0 %v1770
    %v1772 = vand.u32 %v109, 4294901760
    %1773 = vmatpush.msra.mxu0 %v1772
    %v1774 = vand.u32 %v108, 4294901760
    %1775 = vmatpush.msra.mxu0 %v1774
    %v1776 = vand.u32 %v1594, 4294901760
    %1777 = vmatmul.f32.gmra.mxu0 %v1776
    %v1778 = vpop.f32.mrf.mxu0
    %v1779 = vadd.f32 %v1754, %v1778
    %1780 = vdwg.mxu0
    %v1782 = vrot.slane %v1779, 2
    %v1783 = vrot.slane %v1779, 3
    %v1786 = vadd.f32 %v303, %v1782
    %v1787 = vadd.f32 %v307, %v1783
    %v1788 = vmul.f32 %v1786, %v103
    %v1789 = vmul.f32 %v1787, %v103
    %v1790 = vtanh.pop %v1788
    %v1791 = vtanh.pop %v1789
    %v1792 = vmul.f32 %v1790, 0.5
    %v1793 = vmul.f32 %v1791, 0.5
    %v1794 = vadd.f32 %v1792, 0.5
    %v1795 = vadd.f32 %v1793, 0.5
    %v1798 = vrot.slane %v1573, 7
    %v1799 = vrot.slane %v1574, 7
    %v1802 = vmul.f32 %v1794, %v1798
    %v1803 = vmul.f32 %v1795, %v1799
    %1806 = vrot.lane.b32.xlu0 %v1790, 64
    %v1807 = vpop.permute.xlu0 %1806
    %1808 = vrot.lane.b32.xlu0 %v1791, 64
    %v1809 = vpop.permute.xlu0 %1808
    %v1812 = vmul.f32 %v1794, %v1807
    %v1813 = vmul.f32 %v1795, %v1809
    %1816 = vrot.lane.b32.xlu0 %v1812, 32
    %v1817 = vpop.permute.xlu0 %1816
    %1818 = vrot.lane.b32.xlu0 %v1813, 32
    %v1819 = vpop.permute.xlu0 %1818
    %v1822 = vadd.f32 %v1802, %v1817
    %v1823 = vadd.f32 %v1803, %v1819
    %v1824 = vtanh.pop %v1822
    %v1825 = vtanh.pop %v1823
    %1828 = vrot.lane.b32.xlu0 %v1824, 64
    %v1829 = vpop.permute.xlu0 %1828
    %1830 = vrot.lane.b32.xlu0 %v1825, 64
    %v1831 = vpop.permute.xlu0 %1830
    %v1834 = vmul.f32 %v1794, %v1829
    %v1835 = vmul.f32 %v1795, %v1831
    %v1838 = vrot.slane %v1834, 6
    %v1839 = vrot.slane %v1835, 5
    %v1840 = vsel %vm342, %v1839, %v1838
    %1841 = vrot.lane.b32.xlu0 %v1840, 32
    %v1842 = vpop.permute.xlu0 %1841
    %v1843 = vsel %vm346, %v1842, 0
    %1845 = vmatpush.msra.mxu0 0.0
    %1846 = vmatpush.msra.mxu0 0.0
    %1847 = vmatpush.msra.mxu0 0.0
    %1848 = vmatpush.msra.mxu0 0.0
    %1849 = vmatpush.msra.mxu0 0.0
    %1850 = vmatpush.msra.mxu0 0.0
    %1851 = vmatpush.msra.mxu0 0.0
    %1852 = vmatpush.msra.mxu0 0.0
    %1853 = vmatpush.msra.mxu0 0.0
    %1854 = vmatpush.msra.mxu0 0.0
    %1855 = vmatpush.msra.mxu0 0.0
    %1856 = vmatpush.msra.mxu0 0.0
    %v1857 = vand.u32 %v111, 4294901760
    %1858 = vmatpush.msra.mxu0 %v1857
    %v1859 = vand.u32 %v110, 4294901760
    %1860 = vmatpush.msra.mxu0 %v1859
    %v1861 = vand.u32 %v109, 4294901760
    %1862 = vmatpush.msra.mxu0 %v1861
    %v1863 = vand.u32 %v108, 4294901760
    %1864 = vmatpush.msra.mxu0 %v1863
    %v1865 = vand.u32 %v1843, 4294901760
    %v1866 = vsub.f32 %v1843, %v1865
    %v1867 = vand.u32 %v1866, 4294901760
    %v1868 = vsub.f32 %v1866, %v1867
    %v1869 = vand.u32 %v1868, 4294901760
    %1870 = vmatmul.f32.gmra.mxu0 %v1869
    %v1871 = vpop.f32.mrf.mxu0
    %v1872 = vadd.f32 0.0, %v1871
    %1873 = vdwg.mxu0
    %1874 = vmatpush.msra.mxu0 0.0
    %1875 = vmatpush.msra.mxu0 0.0
    %1876 = vmatpush.msra.mxu0 0.0
    %1877 = vmatpush.msra.mxu0 0.0
    %1878 = vmatpush.msra.mxu0 0.0
    %1879 = vmatpush.msra.mxu0 0.0
    %1880 = vmatpush.msra.mxu0 0.0
    %1881 = vmatpush.msra.mxu0 0.0
    %1882 = vmatpush.msra.mxu0 0.0
    %1883 = vmatpush.msra.mxu0 0.0
    %1884 = vmatpush.msra.mxu0 0.0
    %1885 = vmatpush.msra.mxu0 0.0
    %v1886 = vand.u32 %v111, 4294901760
    %v1887 = vsub.f32 %v111, %v1886
    %v1888 = vand.u32 %v1887, 4294901760
    %v1889 = vsub.f32 %v1887, %v1888
    %v1890 = vand.u32 %v1889, 4294901760
    %1891 = vmatpush.msra.mxu0 %v1890
    %v1892 = vand.u32 %v110, 4294901760
    %v1893 = vsub.f32 %v110, %v1892
    %v1894 = vand.u32 %v1893, 4294901760
    %v1895 = vsub.f32 %v1893, %v1894
    %v1896 = vand.u32 %v1895, 4294901760
    %1897 = vmatpush.msra.mxu0 %v1896
    %v1898 = vand.u32 %v109, 4294901760
    %v1899 = vsub.f32 %v109, %v1898
    %v1900 = vand.u32 %v1899, 4294901760
    %v1901 = vsub.f32 %v1899, %v1900
    %v1902 = vand.u32 %v1901, 4294901760
    %1903 = vmatpush.msra.mxu0 %v1902
    %v1904 = vand.u32 %v108, 4294901760
    %v1905 = vsub.f32 %v108, %v1904
    %v1906 = vand.u32 %v1905, 4294901760
    %v1907 = vsub.f32 %v1905, %v1906
    %v1908 = vand.u32 %v1907, 4294901760
    %1909 = vmatpush.msra.mxu0 %v1908
    %v1910 = vand.u32 %v1843, 4294901760
    %1911 = vmatmul.f32.gmra.mxu0 %v1910
    %v1912 = vpop.f32.mrf.mxu0
    %v1913 = vadd.f32 %v1872, %v1912
    %1914 = vdwg.mxu0
    %1915 = vmatpush.msra.mxu0 0.0
    %1916 = vmatpush.msra.mxu0 0.0
    %1917 = vmatpush.msra.mxu0 0.0
    %1918 = vmatpush.msra.mxu0 0.0
    %1919 = vmatpush.msra.mxu0 0.0
    %1920 = vmatpush.msra.mxu0 0.0
    %1921 = vmatpush.msra.mxu0 0.0
    %1922 = vmatpush.msra.mxu0 0.0
    %1923 = vmatpush.msra.mxu0 0.0
    %1924 = vmatpush.msra.mxu0 0.0
    %1925 = vmatpush.msra.mxu0 0.0
    %1926 = vmatpush.msra.mxu0 0.0
    %v1927 = vand.u32 %v111, 4294901760
    %v1928 = vsub.f32 %v111, %v1927
    %1929 = vmatpush.msra.mxu0 %v1928
    %v1930 = vand.u32 %v110, 4294901760
    %v1931 = vsub.f32 %v110, %v1930
    %1932 = vmatpush.msra.mxu0 %v1931
    %v1933 = vand.u32 %v109, 4294901760
    %v1934 = vsub.f32 %v109, %v1933
    %1935 = vmatpush.msra.mxu0 %v1934
    %v1936 = vand.u32 %v108, 4294901760
    %v1937 = vsub.f32 %v108, %v1936
    %1938 = vmatpush.msra.mxu0 %v1937
    %v1939 = vand.u32 %v1843, 4294901760
    %v1940 = vsub.f32 %v1843, %v1939
    %1941 = vmatmul.f32.gmra.mxu0 %v1940
    %v1942 = vpop.f32.mrf.mxu0
    %v1943 = vadd.f32 %v1913, %v1942
    %1944 = vdwg.mxu0
    %1945 = vmatpush.msra.mxu0 0.0
    %1946 = vmatpush.msra.mxu0 0.0
    %1947 = vmatpush.msra.mxu0 0.0
    %1948 = vmatpush.msra.mxu0 0.0
    %1949 = vmatpush.msra.mxu0 0.0
    %1950 = vmatpush.msra.mxu0 0.0
    %1951 = vmatpush.msra.mxu0 0.0
    %1952 = vmatpush.msra.mxu0 0.0
    %1953 = vmatpush.msra.mxu0 0.0
    %1954 = vmatpush.msra.mxu0 0.0
    %1955 = vmatpush.msra.mxu0 0.0
    %1956 = vmatpush.msra.mxu0 0.0
    %v1957 = vand.u32 %v111, 4294901760
    %1958 = vmatpush.msra.mxu0 %v1957
    %v1959 = vand.u32 %v110, 4294901760
    %1960 = vmatpush.msra.mxu0 %v1959
    %v1961 = vand.u32 %v109, 4294901760
    %1962 = vmatpush.msra.mxu0 %v1961
    %v1963 = vand.u32 %v108, 4294901760
    %1964 = vmatpush.msra.mxu0 %v1963
    %v1965 = vand.u32 %v1843, 4294901760
    %v1966 = vsub.f32 %v1843, %v1965
    %v1967 = vand.u32 %v1966, 4294901760
    %1968 = vmatmul.f32.gmra.mxu0 %v1967
    %v1969 = vpop.f32.mrf.mxu0
    %v1970 = vadd.f32 %v1943, %v1969
    %1971 = vdwg.mxu0
    %1972 = vmatpush.msra.mxu0 0.0
    %1973 = vmatpush.msra.mxu0 0.0
    %1974 = vmatpush.msra.mxu0 0.0
    %1975 = vmatpush.msra.mxu0 0.0
    %1976 = vmatpush.msra.mxu0 0.0
    %1977 = vmatpush.msra.mxu0 0.0
    %1978 = vmatpush.msra.mxu0 0.0
    %1979 = vmatpush.msra.mxu0 0.0
    %1980 = vmatpush.msra.mxu0 0.0
    %1981 = vmatpush.msra.mxu0 0.0
    %1982 = vmatpush.msra.mxu0 0.0
    %1983 = vmatpush.msra.mxu0 0.0
    %v1984 = vand.u32 %v111, 4294901760
    %v1985 = vsub.f32 %v111, %v1984
    %v1986 = vand.u32 %v1985, 4294901760
    %1987 = vmatpush.msra.mxu0 %v1986
    %v1988 = vand.u32 %v110, 4294901760
    %v1989 = vsub.f32 %v110, %v1988
    %v1990 = vand.u32 %v1989, 4294901760
    %1991 = vmatpush.msra.mxu0 %v1990
    %v1992 = vand.u32 %v109, 4294901760
    %v1993 = vsub.f32 %v109, %v1992
    %v1994 = vand.u32 %v1993, 4294901760
    %1995 = vmatpush.msra.mxu0 %v1994
    %v1996 = vand.u32 %v108, 4294901760
    %v1997 = vsub.f32 %v108, %v1996
    %v1998 = vand.u32 %v1997, 4294901760
    %1999 = vmatpush.msra.mxu0 %v1998
    %v2000 = vand.u32 %v1843, 4294901760
    %2001 = vmatmul.f32.gmra.mxu0 %v2000
    %v2002 = vpop.f32.mrf.mxu0
    %v2003 = vadd.f32 %v1970, %v2002
    %2004 = vdwg.mxu0
    %2005 = vmatpush.msra.mxu0 0.0
    %2006 = vmatpush.msra.mxu0 0.0
    %2007 = vmatpush.msra.mxu0 0.0
    %2008 = vmatpush.msra.mxu0 0.0
    %2009 = vmatpush.msra.mxu0 0.0
    %2010 = vmatpush.msra.mxu0 0.0
    %2011 = vmatpush.msra.mxu0 0.0
    %2012 = vmatpush.msra.mxu0 0.0
    %2013 = vmatpush.msra.mxu0 0.0
    %2014 = vmatpush.msra.mxu0 0.0
    %2015 = vmatpush.msra.mxu0 0.0
    %2016 = vmatpush.msra.mxu0 0.0
    %v2017 = vand.u32 %v111, 4294901760
    %2018 = vmatpush.msra.mxu0 %v2017
    %v2019 = vand.u32 %v110, 4294901760
    %2020 = vmatpush.msra.mxu0 %v2019
    %v2021 = vand.u32 %v109, 4294901760
    %2022 = vmatpush.msra.mxu0 %v2021
    %v2023 = vand.u32 %v108, 4294901760
    %2024 = vmatpush.msra.mxu0 %v2023
    %v2025 = vand.u32 %v1843, 4294901760
    %2026 = vmatmul.f32.gmra.mxu0 %v2025
    %v2027 = vpop.f32.mrf.mxu0
    %v2028 = vadd.f32 %v2003, %v2027
    %2029 = vdwg.mxu0
    %v2031 = vrot.slane %v2028, 1
    %v2032 = vrot.slane %v2028, 2
    %v2035 = vadd.f32 %v303, %v2031
    %v2036 = vadd.f32 %v307, %v2032
    %v2037 = vmul.f32 %v2035, %v103
    %v2038 = vmul.f32 %v2036, %v103
    %v2039 = vtanh.pop %v2037
    %v2040 = vtanh.pop %v2038
    %v2041 = vmul.f32 %v2039, 0.5
    %v2042 = vmul.f32 %v2040, 0.5
    %v2043 = vadd.f32 %v2041, 0.5
    %v2044 = vadd.f32 %v2042, 0.5
    %v2047 = vrot.slane %v1822, 7
    %v2048 = vrot.slane %v1823, 7
    %v2051 = vmul.f32 %v2043, %v2047
    %v2052 = vmul.f32 %v2044, %v2048
    %2055 = vrot.lane.b32.xlu0 %v2039, 64
    %v2056 = vpop.permute.xlu0 %2055
    %2057 = vrot.lane.b32.xlu0 %v2040, 64
    %v2058 = vpop.permute.xlu0 %2057
    %v2061 = vmul.f32 %v2043, %v2056
    %v2062 = vmul.f32 %v2044, %v2058
    %2065 = vrot.lane.b32.xlu0 %v2061, 32
    %v2066 = vpop.permute.xlu0 %2065
    %2067 = vrot.lane.b32.xlu0 %v2062, 32
    %v2068 = vpop.permute.xlu0 %2067
    %v2071 = vadd.f32 %v2051, %v2066
    %v2072 = vadd.f32 %v2052, %v2068
    %v2073 = vtanh.pop %v2071
    %v2074 = vtanh.pop %v2072
    %2077 = vrot.lane.b32.xlu0 %v2073, 64
    %v2078 = vpop.permute.xlu0 %2077
    %2079 = vrot.lane.b32.xlu0 %v2074, 64
    %v2080 = vpop.permute.xlu0 %2079
    %v2083 = vmul.f32 %v2043, %v2078
    %v2084 = vmul.f32 %v2044, %v2080
    %v2085 = vrot.slane %v591, 1
    %v2086 = vrot.slane %v839, 2
    %v2087 = vrot.slane %v1088, 3
    %v2088 = vrot.slane %v1337, 4
    %v2089 = vrot.slane %v1586, 5
    %v2090 = vrot.slane %v1835, 6
    %v2093 = vrot.slane %v2083, 7
    %v2094 = vrot.slane %v2084, 7
    %v2095 = vld [vmem:[#allocation7] sm:$0xff]
    %v2096 = vld [vmem:[#allocation7 + $0x8] sm:$0xff]
    %v2097 = vld [vmem:[#allocation7 + $0x10] sm:$0xff]
    %v2098 = vld [vmem:[#allocation7 + $0x18] sm:$0xff]
    %v2099 = vld [vmem:[#allocation9] sm:$0xff]
    %v2100 = vld [vmem:[#allocation9 + $0x8] sm:$0xff]
    %v2101 = vld [vmem:[#allocation9 + $0x10] sm:$0xff]
    %v2102 = vld [vmem:[#allocation9 + $0x18] sm:$0xff]
    %v2103 = vrot.slane %v594, 6
    %vm2104 = vcmask 1042434
    %v2105 = vsel %vm2104, %v2103, %v343
    %v2106 = vrot.slane %v2085, 5
    %vm2107 = vcmask 1043459
    %v2108 = vsel %vm2107, %v2106, %v2105
    %v2109 = vrot.slane %v842, 4
    %vm2110 = vcmask 1044484
    %v2111 = vsel %vm2110, %v2109, %v2108
    %v2112 = vrot.slane %v2086, 3
    %vm2113 = vcmask 1045509
    %v2114 = vsel %vm2113, %v2112, %v2111
    %v2115 = vrot.slane %v1091, 2
    %vm2116 = vcmask 1046534
    %v2117 = vsel %vm2116, %v2115, %v2114
    %v2118 = vrot.slane %v2087, 1
    %vm2119 = vcmask 1047559
    %v2120 = vsel %vm2119, %v2118, %v2117
    %v2121 = vrot.slane %v2088, 7
    %v2122 = vsel %vm342, %v2121, %v1340
    %v2123 = vrot.slane %v1589, 6
    %v2124 = vsel %vm2104, %v2123, %v2122
    %v2125 = vrot.slane %v2089, 5
    %v2126 = vsel %vm2107, %v2125, %v2124
    %v2127 = vrot.slane %v1838, 4
    %v2128 = vsel %vm2110, %v2127, %v2126
    %v2129 = vrot.slane %v2090, 3
    %v2130 = vsel %vm2113, %v2129, %v2128
    %v2131 = vrot.slane %v2093, 2
    %v2132 = vsel %vm2116, %v2131, %v2130
    %v2133 = vrot.slane %v2094, 1
    %v2134 = vsel %vm2119, %v2133, %v2132
    %2135 = vrot.lane.b32.xlu0 %v2120, 32
    %v2136 = vpop.permute.xlu0 %2135
    %2137 = vrot.lane.b32.xlu0 %v2134, 32
    %v2138 = vpop.permute.xlu0 %2137
    %v2139 = vsel %vm346, %v2136, 0
    %v2141 = vsel %vm346, %v2138, 0
    %2143 = vmatpush.msra.mxu0 0.0
    %2144 = vmatpush.msra.mxu0 0.0
    %2145 = vmatpush.msra.mxu0 0.0
    %2146 = vmatpush.msra.mxu0 0.0
    %2147 = vmatpush.msra.mxu0 0.0
    %2148 = vmatpush.msra.mxu0 0.0
    %2149 = vmatpush.msra.mxu0 0.0
    %2150 = vmatpush.msra.mxu0 0.0
    %2151 = vmatpush.msra.mxu0 0.0
    %2152 = vmatpush.msra.mxu0 0.0
    %2153 = vmatpush.msra.mxu0 0.0
    %2154 = vmatpush.msra.mxu0 0.0
    %v2155 = vand.u32 %v2098, 4294901760
    %2156 = vmatpush.msra.mxu0 %v2155
    %v2157 = vand.u32 %v2097, 4294901760
    %2158 = vmatpush.msra.mxu0 %v2157
    %v2159 = vand.u32 %v2096, 4294901760
    %2160 = vmatpush.msra.mxu0 %v2159
    %v2161 = vand.u32 %v2095, 4294901760
    %2162 = vmatpush.msra.mxu0 %v2161
    %v2163 = vand.u32 %v2139, 4294901760
    %v2164 = vsub.f32 %v2139, %v2163
    %v2165 = vand.u32 %v2164, 4294901760
    %v2166 = vsub.f32 %v2164, %v2165
    %v2167 = vand.u32 %v2166, 4294901760
    %2168 = vmatmul.f32.gmra.mxu0 %v2167
    %v2169 = vpop.f32.mrf.mxu0
    %v2170 = vadd.f32 0.0, %v2169
    %v2171 = vand.u32 %v2141, 4294901760
    %v2172 = vsub.f32 %v2141, %v2171
    %v2173 = vand.u32 %v2172, 4294901760
    %v2174 = vsub.f32 %v2172, %v2173
    %v2175 = vand.u32 %v2174, 4294901760
    %2176 = vmatmul.f32.gmra.mxu0 %v2175
    %v2177 = vpop.f32.mrf.mxu0
    %v2178 = vadd.f32 0.0, %v2177
    %2179 = vdwg.mxu0
    %2180 = vmatpush.msra.mxu0 0.0
    %2181 = vmatpush.msra.mxu0 0.0
    %2182 = vmatpush.msra.mxu0 0.0
    %2183 = vmatpush.msra.mxu0 0.0
    %2184 = vmatpush.msra.mxu0 0.0
    %2185 = vmatpush.msra.mxu0 0.0
    %2186 = vmatpush.msra.mxu0 0.0
    %2187 = vmatpush.msra.mxu0 0.0
    %2188 = vmatpush.msra.mxu0 0.0
    %2189 = vmatpush.msra.mxu0 0.0
    %2190 = vmatpush.msra.mxu0 0.0
    %2191 = vmatpush.msra.mxu0 0.0
    %v2192 = vand.u32 %v2098, 4294901760
    %v2193 = vsub.f32 %v2098, %v2192
    %v2194 = vand.u32 %v2193, 4294901760
    %v2195 = vsub.f32 %v2193, %v2194
    %v2196 = vand.u32 %v2195, 4294901760
    %2197 = vmatpush.msra.mxu0 %v2196
    %v2198 = vand.u32 %v2097, 4294901760
    %v2199 = vsub.f32 %v2097, %v2198
    %v2200 = vand.u32 %v2199, 4294901760
    %v2201 = vsub.f32 %v2199, %v2200
    %v2202 = vand.u32 %v2201, 4294901760
    %2203 = vmatpush.msra.mxu0 %v2202
    %v2204 = vand.u32 %v2096, 4294901760
    %v2205 = vsub.f32 %v2096, %v2204
    %v2206 = vand.u32 %v2205, 4294901760
    %v2207 = vsub.f32 %v2205, %v2206
    %v2208 = vand.u32 %v2207, 4294901760
    %2209 = vmatpush.msra.mxu0 %v2208
    %v2210 = vand.u32 %v2095, 4294901760
    %v2211 = vsub.f32 %v2095, %v2210
    %v2212 = vand.u32 %v2211, 4294901760
    %v2213 = vsub.f32 %v2211, %v2212
    %v2214 = vand.u32 %v2213, 4294901760
    %2215 = vmatpush.msra.mxu0 %v2214
    %v2216 = vand.u32 %v2139, 4294901760
    %2217 = vmatmul.f32.gmra.mxu0 %v2216
    %v2218 = vpop.f32.mrf.mxu0
    %v2219 = vadd.f32 %v2170, %v2218
    %v2220 = vand.u32 %v2141, 4294901760
    %2221 = vmatmul.f32.gmra.mxu0 %v2220
    %v2222 = vpop.f32.mrf.mxu0
    %v2223 = vadd.f32 %v2178, %v2222
    %2224 = vdwg.mxu0
    %2225 = vmatpush.msra.mxu0 0.0
    %2226 = vmatpush.msra.mxu0 0.0
    %2227 = vmatpush.msra.mxu0 0.0
    %2228 = vmatpush.msra.mxu0 0.0
    %2229 = vmatpush.msra.mxu0 0.0
    %2230 = vmatpush.msra.mxu0 0.0
    %2231 = vmatpush.msra.mxu0 0.0
    %2232 = vmatpush.msra.mxu0 0.0
    %2233 = vmatpush.msra.mxu0 0.0
    %2234 = vmatpush.msra.mxu0 0.0
    %2235 = vmatpush.msra.mxu0 0.0
    %2236 = vmatpush.msra.mxu0 0.0
    %v2237 = vand.u32 %v2098, 4294901760
    %v2238 = vsub.f32 %v2098, %v2237
    %2239 = vmatpush.msra.mxu0 %v2238
    %v2240 = vand.u32 %v2097, 4294901760
    %v2241 = vsub.f32 %v2097, %v2240
    %2242 = vmatpush.msra.mxu0 %v2241
    %v2243 = vand.u32 %v2096, 4294901760
    %v2244 = vsub.f32 %v2096, %v2243
    %2245 = vmatpush.msra.mxu0 %v2244
    %v2246 = vand.u32 %v2095, 4294901760
    %v2247 = vsub.f32 %v2095, %v2246
    %2248 = vmatpush.msra.mxu0 %v2247
    %v2249 = vand.u32 %v2139, 4294901760
    %v2250 = vsub.f32 %v2139, %v2249
    %2251 = vmatmul.f32.gmra.mxu0 %v2250
    %v2252 = vpop.f32.mrf.mxu0
    %v2253 = vadd.f32 %v2219, %v2252
    %v2254 = vand.u32 %v2141, 4294901760
    %v2255 = vsub.f32 %v2141, %v2254
    %2256 = vmatmul.f32.gmra.mxu0 %v2255
    %v2257 = vpop.f32.mrf.mxu0
    %v2258 = vadd.f32 %v2223, %v2257
    %2259 = vdwg.mxu0
    %2260 = vmatpush.msra.mxu0 0.0
    %2261 = vmatpush.msra.mxu0 0.0
    %2262 = vmatpush.msra.mxu0 0.0
    %2263 = vmatpush.msra.mxu0 0.0
    %2264 = vmatpush.msra.mxu0 0.0
    %2265 = vmatpush.msra.mxu0 0.0
    %2266 = vmatpush.msra.mxu0 0.0
    %2267 = vmatpush.msra.mxu0 0.0
    %2268 = vmatpush.msra.mxu0 0.0
    %2269 = vmatpush.msra.mxu0 0.0
    %2270 = vmatpush.msra.mxu0 0.0
    %2271 = vmatpush.msra.mxu0 0.0
    %v2272 = vand.u32 %v2098, 4294901760
    %2273 = vmatpush.msra.mxu0 %v2272
    %v2274 = vand.u32 %v2097, 4294901760
    %2275 = vmatpush.msra.mxu0 %v2274
    %v2276 = vand.u32 %v2096, 4294901760
    %2277 = vmatpush.msra.mxu0 %v2276
    %v2278 = vand.u32 %v2095, 4294901760
    %2279 = vmatpush.msra.mxu0 %v2278
    %v2280 = vand.u32 %v2139, 4294901760
    %v2281 = vsub.f32 %v2139, %v2280
    %v2282 = vand.u32 %v2281, 4294901760
    %2283 = vmatmul.f32.gmra.mxu0 %v2282
    %v2284 = vpop.f32.mrf.mxu0
    %v2285 = vadd.f32 %v2253, %v2284
    %v2286 = vand.u32 %v2141, 4294901760
    %v2287 = vsub.f32 %v2141, %v2286
    %v2288 = vand.u32 %v2287, 4294901760
    %2289 = vmatmul.f32.gmra.mxu0 %v2288
    %v2290 = vpop.f32.mrf.mxu0
    %v2291 = vadd.f32 %v2258, %v2290
    %2292 = vdwg.mxu0
    %2293 = vmatpush.msra.mxu0 0.0
    %2294 = vmatpush.msra.mxu0 0.0
    %2295 = vmatpush.msra.mxu0 0.0
    %2296 = vmatpush.msra.mxu0 0.0
    %2297 = vmatpush.msra.mxu0 0.0
    %2298 = vmatpush.msra.mxu0 0.0
    %2299 = vmatpush.msra.mxu0 0.0
    %2300 = vmatpush.msra.mxu0 0.0
    %2301 = vmatpush.msra.mxu0 0.0
    %2302 = vmatpush.msra.mxu0 0.0
    %2303 = vmatpush.msra.mxu0 0.0
    %2304 = vmatpush.msra.mxu0 0.0
    %v2305 = vand.u32 %v2098, 4294901760
    %v2306 = vsub.f32 %v2098, %v2305
    %v2307 = vand.u32 %v2306, 4294901760
    %2308 = vmatpush.msra.mxu0 %v2307
    %v2309 = vand.u32 %v2097, 4294901760
    %v2310 = vsub.f32 %v2097, %v2309
    %v2311 = vand.u32 %v2310, 4294901760
    %2312 = vmatpush.msra.mxu0 %v2311
    %v2313 = vand.u32 %v2096, 4294901760
    %v2314 = vsub.f32 %v2096, %v2313
    %v2315 = vand.u32 %v2314, 4294901760
    %2316 = vmatpush.msra.mxu0 %v2315
    %v2317 = vand.u32 %v2095, 4294901760
    %v2318 = vsub.f32 %v2095, %v2317
    %v2319 = vand.u32 %v2318, 4294901760
    %2320 = vmatpush.msra.mxu0 %v2319
    %v2321 = vand.u32 %v2139, 4294901760
    %2322 = vmatmul.f32.gmra.mxu0 %v2321
    %v2323 = vpop.f32.mrf.mxu0
    %v2324 = vadd.f32 %v2285, %v2323
    %v2325 = vand.u32 %v2141, 4294901760
    %2326 = vmatmul.f32.gmra.mxu0 %v2325
    %v2327 = vpop.f32.mrf.mxu0
    %v2328 = vadd.f32 %v2291, %v2327
    %2329 = vdwg.mxu0
    %2330 = vmatpush.msra.mxu0 0.0
    %2331 = vmatpush.msra.mxu0 0.0
    %2332 = vmatpush.msra.mxu0 0.0
    %2333 = vmatpush.msra.mxu0 0.0
    %2334 = vmatpush.msra.mxu0 0.0
    %2335 = vmatpush.msra.mxu0 0.0
    %2336 = vmatpush.msra.mxu0 0.0
    %2337 = vmatpush.msra.mxu0 0.0
    %2338 = vmatpush.msra.mxu0 0.0
    %2339 = vmatpush.msra.mxu0 0.0
    %2340 = vmatpush.msra.mxu0 0.0
    %2341 = vmatpush.msra.mxu0 0.0
    %v2342 = vand.u32 %v2098, 4294901760
    %2343 = vmatpush.msra.mxu0 %v2342
    %v2344 = vand.u32 %v2097, 4294901760
    %2345 = vmatpush.msra.mxu0 %v2344
    %v2346 = vand.u32 %v2096, 4294901760
    %2347 = vmatpush.msra.mxu0 %v2346
    %v2348 = vand.u32 %v2095, 4294901760
    %2349 = vmatpush.msra.mxu0 %v2348
    %v2350 = vand.u32 %v2139, 4294901760
    %2351 = vmatmul.f32.gmra.mxu0 %v2350
    %v2352 = vpop.f32.mrf.mxu0
    %v2353 = vadd.f32 %v2324, %v2352
    %v2354 = vand.u32 %v2141, 4294901760
    %2355 = vmatmul.f32.gmra.mxu0 %v2354
    %v2356 = vpop.f32.mrf.mxu0
    %v2357 = vadd.f32 %v2328, %v2356
    %2358 = vdwg.mxu0
    %v2359 = vmul.f32 %v2353, %v103
    %v2360 = vtanh.pop %v2359
    %v2361 = vmul.f32 %v2360, 0.5
    %v2362 = vadd.f32 %v2361, 0.5
    %2364 = vrot.lane.b32.xlu0 %v2360, 64
    %v2365 = vpop.permute.xlu0 %2364
    %v2367 = vmul.f32 %v2362, %v2365
    %v2368 = vtanh.pop %v2367
    %2370 = vrot.lane.b32.xlu0 %v2368, 96
    %v2371 = vpop.permute.xlu0 %2370
    %v2373 = vmul.f32 %v2362, %v2371
    %2375 = vrot.lane.b32.xlu0 %v2373, 32
    %v2376 = vpop.permute.xlu0 %2375
    %v2377 = vsel %vm346, %v2376, 0
    %2379 = vmatpush.msra.mxu0 0.0
    %2380 = vmatpush.msra.mxu0 0.0
    %2381 = vmatpush.msra.mxu0 0.0
    %2382 = vmatpush.msra.mxu0 0.0
    %2383 = vmatpush.msra.mxu0 0.0
    %2384 = vmatpush.msra.mxu0 0.0
    %2385 = vmatpush.msra.mxu0 0.0
    %2386 = vmatpush.msra.mxu0 0.0
    %2387 = vmatpush.msra.mxu0 0.0
    %2388 = vmatpush.msra.mxu0 0.0
    %2389 = vmatpush.msra.mxu0 0.0
    %2390 = vmatpush.msra.mxu0 0.0
    %v2391 = vand.u32 %v2102, 4294901760
    %2392 = vmatpush.msra.mxu0 %v2391
    %v2393 = vand.u32 %v2101, 4294901760
    %2394 = vmatpush.msra.mxu0 %v2393
    %v2395 = vand.u32 %v2100, 4294901760
    %2396 = vmatpush.msra.mxu0 %v2395
    %v2397 = vand.u32 %v2099, 4294901760
    %2398 = vmatpush.msra.mxu0 %v2397
    %v2399 = vand.u32 %v2377, 4294901760
    %v2400 = vsub.f32 %v2377, %v2399
    %v2401 = vand.u32 %v2400, 4294901760
    %v2402 = vsub.f32 %v2400, %v2401
    %v2403 = vand.u32 %v2402, 4294901760
    %2404 = vmatmul.f32.gmra.mxu0 %v2403
    %v2405 = vpop.f32.mrf.mxu0
    %v2406 = vadd.f32 0.0, %v2405
    %2407 = vdwg.mxu0
    %2408 = vmatpush.msra.mxu0 0.0
    %2409 = vmatpush.msra.mxu0 0.0
    %2410 = vmatpush.msra.mxu0 0.0
    %2411 = vmatpush.msra.mxu0 0.0
    %2412 = vmatpush.msra.mxu0 0.0
    %2413 = vmatpush.msra.mxu0 0.0
    %2414 = vmatpush.msra.mxu0 0.0
    %2415 = vmatpush.msra.mxu0 0.0
    %2416 = vmatpush.msra.mxu0 0.0
    %2417 = vmatpush.msra.mxu0 0.0
    %2418 = vmatpush.msra.mxu0 0.0
    %2419 = vmatpush.msra.mxu0 0.0
    %v2420 = vand.u32 %v2102, 4294901760
    %v2421 = vsub.f32 %v2102, %v2420
    %v2422 = vand.u32 %v2421, 4294901760
    %v2423 = vsub.f32 %v2421, %v2422
    %v2424 = vand.u32 %v2423, 4294901760
    %2425 = vmatpush.msra.mxu0 %v2424
    %v2426 = vand.u32 %v2101, 4294901760
    %v2427 = vsub.f32 %v2101, %v2426
    %v2428 = vand.u32 %v2427, 4294901760
    %v2429 = vsub.f32 %v2427, %v2428
    %v2430 = vand.u32 %v2429, 4294901760
    %2431 = vmatpush.msra.mxu0 %v2430
    %v2432 = vand.u32 %v2100, 4294901760
    %v2433 = vsub.f32 %v2100, %v2432
    %v2434 = vand.u32 %v2433, 4294901760
    %v2435 = vsub.f32 %v2433, %v2434
    %v2436 = vand.u32 %v2435, 4294901760
    %2437 = vmatpush.msra.mxu0 %v2436
    %v2438 = vand.u32 %v2099, 4294901760
    %v2439 = vsub.f32 %v2099, %v2438
    %v2440 = vand.u32 %v2439, 4294901760
    %v2441 = vsub.f32 %v2439, %v2440
    %v2442 = vand.u32 %v2441, 4294901760
    %2443 = vmatpush.msra.mxu0 %v2442
    %v2444 = vand.u32 %v2377, 4294901760
    %2445 = vmatmul.f32.gmra.mxu0 %v2444
    %v2446 = vpop.f32.mrf.mxu0
    %v2447 = vadd.f32 %v2406, %v2446
    %2448 = vdwg.mxu0
    %2449 = vmatpush.msra.mxu0 0.0
    %2450 = vmatpush.msra.mxu0 0.0
    %2451 = vmatpush.msra.mxu0 0.0
    %2452 = vmatpush.msra.mxu0 0.0
    %2453 = vmatpush.msra.mxu0 0.0
    %2454 = vmatpush.msra.mxu0 0.0
    %2455 = vmatpush.msra.mxu0 0.0
    %2456 = vmatpush.msra.mxu0 0.0
    %2457 = vmatpush.msra.mxu0 0.0
    %2458 = vmatpush.msra.mxu0 0.0
    %2459 = vmatpush.msra.mxu0 0.0
    %2460 = vmatpush.msra.mxu0 0.0
    %v2461 = vand.u32 %v2102, 4294901760
    %v2462 = vsub.f32 %v2102, %v2461
    %2463 = vmatpush.msra.mxu0 %v2462
    %v2464 = vand.u32 %v2101, 4294901760
    %v2465 = vsub.f32 %v2101, %v2464
    %2466 = vmatpush.msra.mxu0 %v2465
    %v2467 = vand.u32 %v2100, 4294901760
    %v2468 = vsub.f32 %v2100, %v2467
    %2469 = vmatpush.msra.mxu0 %v2468
    %v2470 = vand.u32 %v2099, 4294901760
    %v2471 = vsub.f32 %v2099, %v2470
    %2472 = vmatpush.msra.mxu0 %v2471
    %v2473 = vand.u32 %v2377, 4294901760
    %v2474 = vsub.f32 %v2377, %v2473
    %2475 = vmatmul.f32.gmra.mxu0 %v2474
    %v2476 = vpop.f32.mrf.mxu0
    %v2477 = vadd.f32 %v2447, %v2476
    %2478 = vdwg.mxu0
    %2479 = vmatpush.msra.mxu0 0.0
    %2480 = vmatpush.msra.mxu0 0.0
    %2481 = vmatpush.msra.mxu0 0.0
    %2482 = vmatpush.msra.mxu0 0.0
    %2483 = vmatpush.msra.mxu0 0.0
    %2484 = vmatpush.msra.mxu0 0.0
    %2485 = vmatpush.msra.mxu0 0.0
    %2486 = vmatpush.msra.mxu0 0.0
    %2487 = vmatpush.msra.mxu0 0.0
    %2488 = vmatpush.msra.mxu0 0.0
    %2489 = vmatpush.msra.mxu0 0.0
    %2490 = vmatpush.msra.mxu0 0.0
    %v2491 = vand.u32 %v2102, 4294901760
    %2492 = vmatpush.msra.mxu0 %v2491
    %v2493 = vand.u32 %v2101, 4294901760
    %2494 = vmatpush.msra.mxu0 %v2493
    %v2495 = vand.u32 %v2100, 4294901760
    %2496 = vmatpush.msra.mxu0 %v2495
    %v2497 = vand.u32 %v2099, 4294901760
    %2498 = vmatpush.msra.mxu0 %v2497
    %v2499 = vand.u32 %v2377, 4294901760
    %v2500 = vsub.f32 %v2377, %v2499
    %v2501 = vand.u32 %v2500, 4294901760
    %2502 = vmatmul.f32.gmra.mxu0 %v2501
    %v2503 = vpop.f32.mrf.mxu0
    %v2504 = vadd.f32 %v2477, %v2503
    %2505 = vdwg.mxu0
    %2506 = vmatpush.msra.mxu0 0.0
    %2507 = vmatpush.msra.mxu0 0.0
    %2508 = vmatpush.msra.mxu0 0.0
    %2509 = vmatpush.msra.mxu0 0.0
    %2510 = vmatpush.msra.mxu0 0.0
    %2511 = vmatpush.msra.mxu0 0.0
    %2512 = vmatpush.msra.mxu0 0.0
    %2513 = vmatpush.msra.mxu0 0.0
    %2514 = vmatpush.msra.mxu0 0.0
    %2515 = vmatpush.msra.mxu0 0.0
    %2516 = vmatpush.msra.mxu0 0.0
    %2517 = vmatpush.msra.mxu0 0.0
    %v2518 = vand.u32 %v2102, 4294901760
    %v2519 = vsub.f32 %v2102, %v2518
    %v2520 = vand.u32 %v2519, 4294901760
    %2521 = vmatpush.msra.mxu0 %v2520
    %v2522 = vand.u32 %v2101, 4294901760
    %v2523 = vsub.f32 %v2101, %v2522
    %v2524 = vand.u32 %v2523, 4294901760
    %2525 = vmatpush.msra.mxu0 %v2524
    %v2526 = vand.u32 %v2100, 4294901760
    %v2527 = vsub.f32 %v2100, %v2526
    %v2528 = vand.u32 %v2527, 4294901760
    %2529 = vmatpush.msra.mxu0 %v2528
    %v2530 = vand.u32 %v2099, 4294901760
    %v2531 = vsub.f32 %v2099, %v2530
    %v2532 = vand.u32 %v2531, 4294901760
    %2533 = vmatpush.msra.mxu0 %v2532
    %v2534 = vand.u32 %v2377, 4294901760
    %2535 = vmatmul.f32.gmra.mxu0 %v2534
    %v2536 = vpop.f32.mrf.mxu0
    %v2537 = vadd.f32 %v2504, %v2536
    %2538 = vdwg.mxu0
    %2539 = vmatpush.msra.mxu0 0.0
    %2540 = vmatpush.msra.mxu0 0.0
    %2541 = vmatpush.msra.mxu0 0.0
    %2542 = vmatpush.msra.mxu0 0.0
    %2543 = vmatpush.msra.mxu0 0.0
    %2544 = vmatpush.msra.mxu0 0.0
    %2545 = vmatpush.msra.mxu0 0.0
    %2546 = vmatpush.msra.mxu0 0.0
    %2547 = vmatpush.msra.mxu0 0.0
    %2548 = vmatpush.msra.mxu0 0.0
    %2549 = vmatpush.msra.mxu0 0.0
    %2550 = vmatpush.msra.mxu0 0.0
    %v2551 = vand.u32 %v2102, 4294901760
    %2552 = vmatpush.msra.mxu0 %v2551
    %v2553 = vand.u32 %v2101, 4294901760
    %2554 = vmatpush.msra.mxu0 %v2553
    %v2555 = vand.u32 %v2100, 4294901760
    %2556 = vmatpush.msra.mxu0 %v2555
    %v2557 = vand.u32 %v2099, 4294901760
    %2558 = vmatpush.msra.mxu0 %v2557
    %v2559 = vand.u32 %v2377, 4294901760
    %2560 = vmatmul.f32.gmra.mxu0 %v2559
    %v2561 = vpop.f32.mrf.mxu0
    %v2562 = vadd.f32 %v2537, %v2561
    %2563 = vdwg.mxu0
    %v2565 = vrot.slane %v2562, 6
    %v2567 = vadd.f32 %v2353, %v2565
    %v2568 = vmul.f32 %v2567, %v103
    %v2569 = vtanh.pop %v2568
    %v2570 = vmul.f32 %v2569, 0.5
    %v2571 = vadd.f32 %v2570, 0.5
    %v2573 = vrot.slane %v2367, 6
    %2574 = vrot.lane.b32.xlu0 %v2573, 32
    %v2575 = vpop.permute.xlu0 %2574
    %v2577 = vmul.f32 %v2571, %v2575
    %2579 = vrot.lane.b32.xlu0 %v2569, 64
    %v2580 = vpop.permute.xlu0 %2579
    %v2582 = vmul.f32 %v2571, %v2580
    %2584 = vrot.lane.b32.xlu0 %v2582, 32
    %v2585 = vpop.permute.xlu0 %2584
    %v2587 = vadd.f32 %v2577, %v2585
    %v2588 = vtanh.pop %v2587
    %2590 = vrot.lane.b32.xlu0 %v2588, 64
    %v2591 = vpop.permute.xlu0 %2590
    %v2593 = vmul.f32 %v2571, %v2591
    %v2595 = vrot.slane %v2593, 2
    %2596 = vrot.lane.b32.xlu0 %v2595, 32
    %v2597 = vpop.permute.xlu0 %2596
    %v2598 = vsel %vm346, %v2597, 0
    %2600 = vmatpush.msra.mxu0 0.0
    %2601 = vmatpush.msra.mxu0 0.0
    %2602 = vmatpush.msra.mxu0 0.0
    %2603 = vmatpush.msra.mxu0 0.0
    %2604 = vmatpush.msra.mxu0 0.0
    %2605 = vmatpush.msra.mxu0 0.0
    %2606 = vmatpush.msra.mxu0 0.0
    %2607 = vmatpush.msra.mxu0 0.0
    %2608 = vmatpush.msra.mxu0 0.0
    %2609 = vmatpush.msra.mxu0 0.0
    %2610 = vmatpush.msra.mxu0 0.0
    %2611 = vmatpush.msra.mxu0 0.0
    %v2612 = vand.u32 %v2102, 4294901760
    %2613 = vmatpush.msra.mxu0 %v2612
    %v2614 = vand.u32 %v2101, 4294901760
    %2615 = vmatpush.msra.mxu0 %v2614
    %v2616 = vand.u32 %v2100, 4294901760
    %2617 = vmatpush.msra.mxu0 %v2616
    %v2618 = vand.u32 %v2099, 4294901760
    %2619 = vmatpush.msra.mxu0 %v2618
    %v2620 = vand.u32 %v2598, 4294901760
    %v2621 = vsub.f32 %v2598, %v2620
    %v2622 = vand.u32 %v2621, 4294901760
    %v2623 = vsub.f32 %v2621, %v2622
    %v2624 = vand.u32 %v2623, 4294901760
    %2625 = vmatmul.f32.gmra.mxu0 %v2624
    %v2626 = vpop.f32.mrf.mxu0
    %v2627 = vadd.f32 0.0, %v2626
    %2628 = vdwg.mxu0
    %2629 = vmatpush.msra.mxu0 0.0
    %2630 = vmatpush.msra.mxu0 0.0
    %2631 = vmatpush.msra.mxu0 0.0
    %2632 = vmatpush.msra.mxu0 0.0
    %2633 = vmatpush.msra.mxu0 0.0
    %2634 = vmatpush.msra.mxu0 0.0
    %2635 = vmatpush.msra.mxu0 0.0
    %2636 = vmatpush.msra.mxu0 0.0
    %2637 = vmatpush.msra.mxu0 0.0
    %2638 = vmatpush.msra.mxu0 0.0
    %2639 = vmatpush.msra.mxu0 0.0
    %2640 = vmatpush.msra.mxu0 0.0
    %v2641 = vand.u32 %v2102, 4294901760
    %v2642 = vsub.f32 %v2102, %v2641
    %v2643 = vand.u32 %v2642, 4294901760
    %v2644 = vsub.f32 %v2642, %v2643
    %v2645 = vand.u32 %v2644, 4294901760
    %2646 = vmatpush.msra.mxu0 %v2645
    %v2647 = vand.u32 %v2101, 4294901760
    %v2648 = vsub.f32 %v2101, %v2647
    %v2649 = vand.u32 %v2648, 4294901760
    %v2650 = vsub.f32 %v2648, %v2649
    %v2651 = vand.u32 %v2650, 4294901760
    %2652 = vmatpush.msra.mxu0 %v2651
    %v2653 = vand.u32 %v2100, 4294901760
    %v2654 = vsub.f32 %v2100, %v2653
    %v2655 = vand.u32 %v2654, 4294901760
    %v2656 = vsub.f32 %v2654, %v2655
    %v2657 = vand.u32 %v2656, 4294901760
    %2658 = vmatpush.msra.mxu0 %v2657
    %v2659 = vand.u32 %v2099, 4294901760
    %v2660 = vsub.f32 %v2099, %v2659
    %v2661 = vand.u32 %v2660, 4294901760
    %v2662 = vsub.f32 %v2660, %v2661
    %v2663 = vand.u32 %v2662, 4294901760
    %2664 = vmatpush.msra.mxu0 %v2663
    %v2665 = vand.u32 %v2598, 4294901760
    %2666 = vmatmul.f32.gmra.mxu0 %v2665
    %v2667 = vpop.f32.mrf.mxu0
    %v2668 = vadd.f32 %v2627, %v2667
    %2669 = vdwg.mxu0
    %2670 = vmatpush.msra.mxu0 0.0
    %2671 = vmatpush.msra.mxu0 0.0
    %2672 = vmatpush.msra.mxu0 0.0
    %2673 = vmatpush.msra.mxu0 0.0
    %2674 = vmatpush.msra.mxu0 0.0
    %2675 = vmatpush.msra.mxu0 0.0
    %2676 = vmatpush.msra.mxu0 0.0
    %2677 = vmatpush.msra.mxu0 0.0
    %2678 = vmatpush.msra.mxu0 0.0
    %2679 = vmatpush.msra.mxu0 0.0
    %2680 = vmatpush.msra.mxu0 0.0
    %2681 = vmatpush.msra.mxu0 0.0
    %v2682 = vand.u32 %v2102, 4294901760
    %v2683 = vsub.f32 %v2102, %v2682
    %2684 = vmatpush.msra.mxu0 %v2683
    %v2685 = vand.u32 %v2101, 4294901760
    %v2686 = vsub.f32 %v2101, %v2685
    %2687 = vmatpush.msra.mxu0 %v2686
    %v2688 = vand.u32 %v2100, 4294901760
    %v2689 = vsub.f32 %v2100, %v2688
    %2690 = vmatpush.msra.mxu0 %v2689
    %v2691 = vand.u32 %v2099, 4294901760
    %v2692 = vsub.f32 %v2099, %v2691
    %2693 = vmatpush.msra.mxu0 %v2692
    %v2694 = vand.u32 %v2598, 4294901760
    %v2695 = vsub.f32 %v2598, %v2694
    %2696 = vmatmul.f32.gmra.mxu0 %v2695
    %v2697 = vpop.f32.mrf.mxu0
    %v2698 = vadd.f32 %v2668, %v2697
    %2699 = vdwg.mxu0
    %2700 = vmatpush.msra.mxu0 0.0
    %2701 = vmatpush.msra.mxu0 0.0
    %2702 = vmatpush.msra.mxu0 0.0
    %2703 = vmatpush.msra.mxu0 0.0
    %2704 = vmatpush.msra.mxu0 0.0
    %2705 = vmatpush.msra.mxu0 0.0
    %2706 = vmatpush.msra.mxu0 0.0
    %2707 = vmatpush.msra.mxu0 0.0
    %2708 = vmatpush.msra.mxu0 0.0
    %2709 = vmatpush.msra.mxu0 0.0
    %2710 = vmatpush.msra.mxu0 0.0
    %2711 = vmatpush.msra.mxu0 0.0
    %v2712 = vand.u32 %v2102, 4294901760
    %2713 = vmatpush.msra.mxu0 %v2712
    %v2714 = vand.u32 %v2101, 4294901760
    %2715 = vmatpush.msra.mxu0 %v2714
    %v2716 = vand.u32 %v2100, 4294901760
    %2717 = vmatpush.msra.mxu0 %v2716
    %v2718 = vand.u32 %v2099, 4294901760
    %2719 = vmatpush.msra.mxu0 %v2718
    %v2720 = vand.u32 %v2598, 4294901760
    %v2721 = vsub.f32 %v2598, %v2720
    %v2722 = vand.u32 %v2721, 4294901760
    %2723 = vmatmul.f32.gmra.mxu0 %v2722
    %v2724 = vpop.f32.mrf.mxu0
    %v2725 = vadd.f32 %v2698, %v2724
    %2726 = vdwg.mxu0
    %2727 = vmatpush.msra.mxu0 0.0
    %2728 = vmatpush.msra.mxu0 0.0
    %2729 = vmatpush.msra.mxu0 0.0
    %2730 = vmatpush.msra.mxu0 0.0
    %2731 = vmatpush.msra.mxu0 0.0
    %2732 = vmatpush.msra.mxu0 0.0
    %2733 = vmatpush.msra.mxu0 0.0
    %2734 = vmatpush.msra.mxu0 0.0
    %2735 = vmatpush.msra.mxu0 0.0
    %2736 = vmatpush.msra.mxu0 0.0
    %2737 = vmatpush.msra.mxu0 0.0
    %2738 = vmatpush.msra.mxu0 0.0
    %v2739 = vand.u32 %v2102, 4294901760
    %v2740 = vsub.f32 %v2102, %v2739
    %v2741 = vand.u32 %v2740, 4294901760
    %2742 = vmatpush.msra.mxu0 %v2741
    %v2743 = vand.u32 %v2101, 4294901760
    %v2744 = vsub.f32 %v2101, %v2743
    %v2745 = vand.u32 %v2744, 4294901760
    %2746 = vmatpush.msra.mxu0 %v2745
    %v2747 = vand.u32 %v2100, 4294901760
    %v2748 = vsub.f32 %v2100, %v2747
    %v2749 = vand.u32 %v2748, 4294901760
    %2750 = vmatpush.msra.mxu0 %v2749
    %v2751 = vand.u32 %v2099, 4294901760
    %v2752 = vsub.f32 %v2099, %v2751
    %v2753 = vand.u32 %v2752, 4294901760
    %2754 = vmatpush.msra.mxu0 %v2753
    %v2755 = vand.u32 %v2598, 4294901760
    %2756 = vmatmul.f32.gmra.mxu0 %v2755
    %v2757 = vpop.f32.mrf.mxu0
    %v2758 = vadd.f32 %v2725, %v2757
    %2759 = vdwg.mxu0
    %2760 = vmatpush.msra.mxu0 0.0
    %2761 = vmatpush.msra.mxu0 0.0
    %2762 = vmatpush.msra.mxu0 0.0
    %2763 = vmatpush.msra.mxu0 0.0
    %2764 = vmatpush.msra.mxu0 0.0
    %2765 = vmatpush.msra.mxu0 0.0
    %2766 = vmatpush.msra.mxu0 0.0
    %2767 = vmatpush.msra.mxu0 0.0
    %2768 = vmatpush.msra.mxu0 0.0
    %2769 = vmatpush.msra.mxu0 0.0
    %2770 = vmatpush.msra.mxu0 0.0
    %2771 = vmatpush.msra.mxu0 0.0
    %v2772 = vand.u32 %v2102, 4294901760
    %2773 = vmatpush.msra.mxu0 %v2772
    %v2774 = vand.u32 %v2101, 4294901760
    %2775 = vmatpush.msra.mxu0 %v2774
    %v2776 = vand.u32 %v2100, 4294901760
    %2777 = vmatpush.msra.mxu0 %v2776
    %v2778 = vand.u32 %v2099, 4294901760
    %2779 = vmatpush.msra.mxu0 %v2778
    %v2780 = vand.u32 %v2598, 4294901760
    %2781 = vmatmul.f32.gmra.mxu0 %v2780
    %v2782 = vpop.f32.mrf.mxu0
    %v2783 = vadd.f32 %v2758, %v2782
    %2784 = vdwg.mxu0
    %v2786 = vrot.slane %v2783, 4
    %v2788 = vadd.f32 %v2353, %v2786
    %v2789 = vmul.f32 %v2788, %v103
    %v2790 = vtanh.pop %v2789
    %v2791 = vmul.f32 %v2790, 0.5
    %v2792 = vadd.f32 %v2791, 0.5
    %v2794 = vrot.slane %v2587, 6
    %v2796 = vmul.f32 %v2792, %v2794
    %2798 = vrot.lane.b32.xlu0 %v2790, 64
    %v2799 = vpop.permute.xlu0 %2798
    %v2801 = vmul.f32 %v2792, %v2799
    %2803 = vrot.lane.b32.xlu0 %v2801, 32
    %v2804 = vpop.permute.xlu0 %2803
    %v2806 = vadd.f32 %v2796, %v2804
    %v2807 = vtanh.pop %v2806
    %2809 = vrot.lane.b32.xlu0 %v2807, 64
    %v2810 = vpop.permute.xlu0 %2809
    %v2812 = vmul.f32 %v2792, %v2810
    %v2814 = vrot.slane %v2812, 4
    %2815 = vrot.lane.b32.xlu0 %v2814, 32
    %v2816 = vpop.permute.xlu0 %2815
    %v2817 = vsel %vm346, %v2816, 0
    %2819 = vmatpush.msra.mxu0 0.0
    %2820 = vmatpush.msra.mxu0 0.0
    %2821 = vmatpush.msra.mxu0 0.0
    %2822 = vmatpush.msra.mxu0 0.0
    %2823 = vmatpush.msra.mxu0 0.0
    %2824 = vmatpush.msra.mxu0 0.0
    %2825 = vmatpush.msra.mxu0 0.0
    %2826 = vmatpush.msra.mxu0 0.0
    %2827 = vmatpush.msra.mxu0 0.0
    %2828 = vmatpush.msra.mxu0 0.0
    %2829 = vmatpush.msra.mxu0 0.0
    %2830 = vmatpush.msra.mxu0 0.0
    %v2831 = vand.u32 %v2102, 4294901760
    %2832 = vmatpush.msra.mxu0 %v2831
    %v2833 = vand.u32 %v2101, 4294901760
    %2834 = vmatpush.msra.mxu0 %v2833
    %v2835 = vand.u32 %v2100, 4294901760
    %2836 = vmatpush.msra.mxu0 %v2835
    %v2837 = vand.u32 %v2099, 4294901760
    %2838 = vmatpush.msra.mxu0 %v2837
    %v2839 = vand.u32 %v2817, 4294901760
    %v2840 = vsub.f32 %v2817, %v2839
    %v2841 = vand.u32 %v2840, 4294901760
    %v2842 = vsub.f32 %v2840, %v2841
    %v2843 = vand.u32 %v2842, 4294901760
    %2844 = vmatmul.f32.gmra.mxu0 %v2843
    %v2845 = vpop.f32.mrf.mxu0
    %v2846 = vadd.f32 0.0, %v2845
    %2847 = vdwg.mxu0
    %2848 = vmatpush.msra.mxu0 0.0
    %2849 = vmatpush.msra.mxu0 0.0
    %2850 = vmatpush.msra.mxu0 0.0
    %2851 = vmatpush.msra.mxu0 0.0
    %2852 = vmatpush.msra.mxu0 0.0
    %2853 = vmatpush.msra.mxu0 0.0
    %2854 = vmatpush.msra.mxu0 0.0
    %2855 = vmatpush.msra.mxu0 0.0
    %2856 = vmatpush.msra.mxu0 0.0
    %2857 = vmatpush.msra.mxu0 0.0
    %2858 = vmatpush.msra.mxu0 0.0
    %2859 = vmatpush.msra.mxu0 0.0
    %v2860 = vand.u32 %v2102, 4294901760
    %v2861 = vsub.f32 %v2102, %v2860
    %v2862 = vand.u32 %v2861, 4294901760
    %v2863 = vsub.f32 %v2861, %v2862
    %v2864 = vand.u32 %v2863, 4294901760
    %2865 = vmatpush.msra.mxu0 %v2864
    %v2866 = vand.u32 %v2101, 4294901760
    %v2867 = vsub.f32 %v2101, %v2866
    %v2868 = vand.u32 %v2867, 4294901760
    %v2869 = vsub.f32 %v2867, %v2868
    %v2870 = vand.u32 %v2869, 4294901760
    %2871 = vmatpush.msra.mxu0 %v2870
    %v2872 = vand.u32 %v2100, 4294901760
    %v2873 = vsub.f32 %v2100, %v2872
    %v2874 = vand.u32 %v2873, 4294901760
    %v2875 = vsub.f32 %v2873, %v2874
    %v2876 = vand.u32 %v2875, 4294901760
    %2877 = vmatpush.msra.mxu0 %v2876
    %v2878 = vand.u32 %v2099, 4294901760
    %v2879 = vsub.f32 %v2099, %v2878
    %v2880 = vand.u32 %v2879, 4294901760
    %v2881 = vsub.f32 %v2879, %v2880
    %v2882 = vand.u32 %v2881, 4294901760
    %2883 = vmatpush.msra.mxu0 %v2882
    %v2884 = vand.u32 %v2817, 4294901760
    %2885 = vmatmul.f32.gmra.mxu0 %v2884
    %v2886 = vpop.f32.mrf.mxu0
    %v2887 = vadd.f32 %v2846, %v2886
    %2888 = vdwg.mxu0
    %2889 = vmatpush.msra.mxu0 0.0
    %2890 = vmatpush.msra.mxu0 0.0
    %2891 = vmatpush.msra.mxu0 0.0
    %2892 = vmatpush.msra.mxu0 0.0
    %2893 = vmatpush.msra.mxu0 0.0
    %2894 = vmatpush.msra.mxu0 0.0
    %2895 = vmatpush.msra.mxu0 0.0
    %2896 = vmatpush.msra.mxu0 0.0
    %2897 = vmatpush.msra.mxu0 0.0
    %2898 = vmatpush.msra.mxu0 0.0
    %2899 = vmatpush.msra.mxu0 0.0
    %2900 = vmatpush.msra.mxu0 0.0
    %v2901 = vand.u32 %v2102, 4294901760
    %v2902 = vsub.f32 %v2102, %v2901
    %2903 = vmatpush.msra.mxu0 %v2902
    %v2904 = vand.u32 %v2101, 4294901760
    %v2905 = vsub.f32 %v2101, %v2904
    %2906 = vmatpush.msra.mxu0 %v2905
    %v2907 = vand.u32 %v2100, 4294901760
    %v2908 = vsub.f32 %v2100, %v2907
    %2909 = vmatpush.msra.mxu0 %v2908
    %v2910 = vand.u32 %v2099, 4294901760
    %v2911 = vsub.f32 %v2099, %v2910
    %2912 = vmatpush.msra.mxu0 %v2911
    %v2913 = vand.u32 %v2817, 4294901760
    %v2914 = vsub.f32 %v2817, %v2913
    %2915 = vmatmul.f32.gmra.mxu0 %v2914
    %v2916 = vpop.f32.mrf.mxu0
    %v2917 = vadd.f32 %v2887, %v2916
    %2918 = vdwg.mxu0
    %2919 = vmatpush.msra.mxu0 0.0
    %2920 = vmatpush.msra.mxu0 0.0
    %2921 = vmatpush.msra.mxu0 0.0
    %2922 = vmatpush.msra.mxu0 0.0
    %2923 = vmatpush.msra.mxu0 0.0
    %2924 = vmatpush.msra.mxu0 0.0
    %2925 = vmatpush.msra.mxu0 0.0
    %2926 = vmatpush.msra.mxu0 0.0
    %2927 = vmatpush.msra.mxu0 0.0
    %2928 = vmatpush.msra.mxu0 0.0
    %2929 = vmatpush.msra.mxu0 0.0
    %2930 = vmatpush.msra.mxu0 0.0
    %v2931 = vand.u32 %v2102, 4294901760
    %2932 = vmatpush.msra.mxu0 %v2931
    %v2933 = vand.u32 %v2101, 4294901760
    %2934 = vmatpush.msra.mxu0 %v2933
    %v2935 = vand.u32 %v2100, 4294901760
    %2936 = vmatpush.msra.mxu0 %v2935
    %v2937 = vand.u32 %v2099, 4294901760
    %2938 = vmatpush.msra.mxu0 %v2937
    %v2939 = vand.u32 %v2817, 4294901760
    %v2940 = vsub.f32 %v2817, %v2939
    %v2941 = vand.u32 %v2940, 4294901760
    %2942 = vmatmul.f32.gmra.mxu0 %v2941
    %v2943 = vpop.f32.mrf.mxu0
    %v2944 = vadd.f32 %v2917, %v2943
    %2945 = vdwg.mxu0
    %2946 = vmatpush.msra.mxu0 0.0
    %2947 = vmatpush.msra.mxu0 0.0
    %2948 = vmatpush.msra.mxu0 0.0
    %2949 = vmatpush.msra.mxu0 0.0
    %2950 = vmatpush.msra.mxu0 0.0
    %2951 = vmatpush.msra.mxu0 0.0
    %2952 = vmatpush.msra.mxu0 0.0
    %2953 = vmatpush.msra.mxu0 0.0
    %2954 = vmatpush.msra.mxu0 0.0
    %2955 = vmatpush.msra.mxu0 0.0
    %2956 = vmatpush.msra.mxu0 0.0
    %2957 = vmatpush.msra.mxu0 0.0
    %v2958 = vand.u32 %v2102, 4294901760
    %v2959 = vsub.f32 %v2102, %v2958
    %v2960 = vand.u32 %v2959, 4294901760
    %2961 = vmatpush.msra.mxu0 %v2960
    %v2962 = vand.u32 %v2101, 4294901760
    %v2963 = vsub.f32 %v2101, %v2962
    %v2964 = vand.u32 %v2963, 4294901760
    %2965 = vmatpush.msra.mxu0 %v2964
    %v2966 = vand.u32 %v2100, 4294901760
    %v2967 = vsub.f32 %v2100, %v2966
    %v2968 = vand.u32 %v2967, 4294901760
    %2969 = vmatpush.msra.mxu0 %v2968
    %v2970 = vand.u32 %v2099, 4294901760
    %v2971 = vsub.f32 %v2099, %v2970
    %v2972 = vand.u32 %v2971, 4294901760
    %2973 = vmatpush.msra.mxu0 %v2972
    %v2974 = vand.u32 %v2817, 4294901760
    %2975 = vmatmul.f32.gmra.mxu0 %v2974
    %v2976 = vpop.f32.mrf.mxu0
    %v2977 = vadd.f32 %v2944, %v2976
    %2978 = vdwg.mxu0
    %2979 = vmatpush.msra.mxu0 0.0
    %2980 = vmatpush.msra.mxu0 0.0
    %2981 = vmatpush.msra.mxu0 0.0
    %2982 = vmatpush.msra.mxu0 0.0
    %2983 = vmatpush.msra.mxu0 0.0
    %2984 = vmatpush.msra.mxu0 0.0
    %2985 = vmatpush.msra.mxu0 0.0
    %2986 = vmatpush.msra.mxu0 0.0
    %2987 = vmatpush.msra.mxu0 0.0
    %2988 = vmatpush.msra.mxu0 0.0
    %2989 = vmatpush.msra.mxu0 0.0
    %2990 = vmatpush.msra.mxu0 0.0
    %v2991 = vand.u32 %v2102, 4294901760
    %2992 = vmatpush.msra.mxu0 %v2991
    %v2993 = vand.u32 %v2101, 4294901760
    %2994 = vmatpush.msra.mxu0 %v2993
    %v2995 = vand.u32 %v2100, 4294901760
    %2996 = vmatpush.msra.mxu0 %v2995
    %v2997 = vand.u32 %v2099, 4294901760
    %2998 = vmatpush.msra.mxu0 %v2997
    %v2999 = vand.u32 %v2817, 4294901760
    %3000 = vmatmul.f32.gmra.mxu0 %v2999
    %v3001 = vpop.f32.mrf.mxu0
    %v3002 = vadd.f32 %v2977, %v3001
    %3003 = vdwg.mxu0
    %v3005 = vrot.slane %v3002, 2
    %v3007 = vadd.f32 %v2353, %v3005
    %v3008 = vmul.f32 %v3007, %v103
    %v3009 = vtanh.pop %v3008
    %v3010 = vmul.f32 %v3009, 0.5
    %v3011 = vadd.f32 %v3010, 0.5
    %v3013 = vrot.slane %v2806, 6
    %v3015 = vmul.f32 %v3011, %v3013
    %3017 = vrot.lane.b32.xlu0 %v3009, 64
    %v3018 = vpop.permute.xlu0 %3017
    %v3020 = vmul.f32 %v3011, %v3018
    %3022 = vrot.lane.b32.xlu0 %v3020, 32
    %v3023 = vpop.permute.xlu0 %3022
    %v3025 = vadd.f32 %v3015, %v3023
    %v3026 = vtanh.pop %v3025
    %3028 = vrot.lane.b32.xlu0 %v3026, 64
    %v3029 = vpop.permute.xlu0 %3028
    %v3031 = vmul.f32 %v3011, %v3029
    %v3033 = vrot.slane %v3031, 6
    %3034 = vrot.lane.b32.xlu0 %v3033, 32
    %v3035 = vpop.permute.xlu0 %3034
    %v3036 = vsel %vm346, %v3035, 0
    %3038 = vmatpush.msra.mxu0 0.0
    %3039 = vmatpush.msra.mxu0 0.0
    %3040 = vmatpush.msra.mxu0 0.0
    %3041 = vmatpush.msra.mxu0 0.0
    %3042 = vmatpush.msra.mxu0 0.0
    %3043 = vmatpush.msra.mxu0 0.0
    %3044 = vmatpush.msra.mxu0 0.0
    %3045 = vmatpush.msra.mxu0 0.0
    %3046 = vmatpush.msra.mxu0 0.0
    %3047 = vmatpush.msra.mxu0 0.0
    %3048 = vmatpush.msra.mxu0 0.0
    %3049 = vmatpush.msra.mxu0 0.0
    %v3050 = vand.u32 %v2102, 4294901760
    %3051 = vmatpush.msra.mxu0 %v3050
    %v3052 = vand.u32 %v2101, 4294901760
    %3053 = vmatpush.msra.mxu0 %v3052
    %v3054 = vand.u32 %v2100, 4294901760
    %3055 = vmatpush.msra.mxu0 %v3054
    %v3056 = vand.u32 %v2099, 4294901760
    %3057 = vmatpush.msra.mxu0 %v3056
    %v3058 = vand.u32 %v3036, 4294901760
    %v3059 = vsub.f32 %v3036, %v3058
    %v3060 = vand.u32 %v3059, 4294901760
    %v3061 = vsub.f32 %v3059, %v3060
    %v3062 = vand.u32 %v3061, 4294901760
    %3063 = vmatmul.f32.gmra.mxu0 %v3062
    %v3064 = vpop.f32.mrf.mxu0
    %v3065 = vadd.f32 0.0, %v3064
    %3066 = vdwg.mxu0
    %3067 = vmatpush.msra.mxu0 0.0
    %3068 = vmatpush.msra.mxu0 0.0
    %3069 = vmatpush.msra.mxu0 0.0
    %3070 = vmatpush.msra.mxu0 0.0
    %3071 = vmatpush.msra.mxu0 0.0
    %3072 = vmatpush.msra.mxu0 0.0
    %3073 = vmatpush.msra.mxu0 0.0
    %3074 = vmatpush.msra.mxu0 0.0
    %3075 = vmatpush.msra.mxu0 0.0
    %3076 = vmatpush.msra.mxu0 0.0
    %3077 = vmatpush.msra.mxu0 0.0
    %3078 = vmatpush.msra.mxu0 0.0
    %v3079 = vand.u32 %v2102, 4294901760
    %v3080 = vsub.f32 %v2102, %v3079
    %v3081 = vand.u32 %v3080, 4294901760
    %v3082 = vsub.f32 %v3080, %v3081
    %v3083 = vand.u32 %v3082, 4294901760
    %3084 = vmatpush.msra.mxu0 %v3083
    %v3085 = vand.u32 %v2101, 4294901760
    %v3086 = vsub.f32 %v2101, %v3085
    %v3087 = vand.u32 %v3086, 4294901760
    %v3088 = vsub.f32 %v3086, %v3087
    %v3089 = vand.u32 %v3088, 4294901760
    %3090 = vmatpush.msra.mxu0 %v3089
    %v3091 = vand.u32 %v2100, 4294901760
    %v3092 = vsub.f32 %v2100, %v3091
    %v3093 = vand.u32 %v3092, 4294901760
    %v3094 = vsub.f32 %v3092, %v3093
    %v3095 = vand.u32 %v3094, 4294901760
    %3096 = vmatpush.msra.mxu0 %v3095
    %v3097 = vand.u32 %v2099, 4294901760
    %v3098 = vsub.f32 %v2099, %v3097
    %v3099 = vand.u32 %v3098, 4294901760
    %v3100 = vsub.f32 %v3098, %v3099
    %v3101 = vand.u32 %v3100, 4294901760
    %3102 = vmatpush.msra.mxu0 %v3101
    %v3103 = vand.u32 %v3036, 4294901760
    %3104 = vmatmul.f32.gmra.mxu0 %v3103
    %v3105 = vpop.f32.mrf.mxu0
    %v3106 = vadd.f32 %v3065, %v3105
    %3107 = vdwg.mxu0
    %3108 = vmatpush.msra.mxu0 0.0
    %3109 = vmatpush.msra.mxu0 0.0
    %3110 = vmatpush.msra.mxu0 0.0
    %3111 = vmatpush.msra.mxu0 0.0
    %3112 = vmatpush.msra.mxu0 0.0
    %3113 = vmatpush.msra.mxu0 0.0
    %3114 = vmatpush.msra.mxu0 0.0
    %3115 = vmatpush.msra.mxu0 0.0
    %3116 = vmatpush.msra.mxu0 0.0
    %3117 = vmatpush.msra.mxu0 0.0
    %3118 = vmatpush.msra.mxu0 0.0
    %3119 = vmatpush.msra.mxu0 0.0
    %v3120 = vand.u32 %v2102, 4294901760
    %v3121 = vsub.f32 %v2102, %v3120
    %3122 = vmatpush.msra.mxu0 %v3121
    %v3123 = vand.u32 %v2101, 4294901760
    %v3124 = vsub.f32 %v2101, %v3123
    %3125 = vmatpush.msra.mxu0 %v3124
    %v3126 = vand.u32 %v2100, 4294901760
    %v3127 = vsub.f32 %v2100, %v3126
    %3128 = vmatpush.msra.mxu0 %v3127
    %v3129 = vand.u32 %v2099, 4294901760
    %v3130 = vsub.f32 %v2099, %v3129
    %3131 = vmatpush.msra.mxu0 %v3130
    %v3132 = vand.u32 %v3036, 4294901760
    %v3133 = vsub.f32 %v3036, %v3132
    %3134 = vmatmul.f32.gmra.mxu0 %v3133
    %v3135 = vpop.f32.mrf.mxu0
    %v3136 = vadd.f32 %v3106, %v3135
    %3137 = vdwg.mxu0
    %3138 = vmatpush.msra.mxu0 0.0
    %3139 = vmatpush.msra.mxu0 0.0
    %3140 = vmatpush.msra.mxu0 0.0
    %3141 = vmatpush.msra.mxu0 0.0
    %3142 = vmatpush.msra.mxu0 0.0
    %3143 = vmatpush.msra.mxu0 0.0
    %3144 = vmatpush.msra.mxu0 0.0
    %3145 = vmatpush.msra.mxu0 0.0
    %3146 = vmatpush.msra.mxu0 0.0
    %3147 = vmatpush.msra.mxu0 0.0
    %3148 = vmatpush.msra.mxu0 0.0
    %3149 = vmatpush.msra.mxu0 0.0
    %v3150 = vand.u32 %v2102, 4294901760
    %3151 = vmatpush.msra.mxu0 %v3150
    %v3152 = vand.u32 %v2101, 4294901760
    %3153 = vmatpush.msra.mxu0 %v3152
    %v3154 = vand.u32 %v2100, 4294901760
    %3155 = vmatpush.msra.mxu0 %v3154
    %v3156 = vand.u32 %v2099, 4294901760
    %3157 = vmatpush.msra.mxu0 %v3156
    %v3158 = vand.u32 %v3036, 4294901760
    %v3159 = vsub.f32 %v3036, %v3158
    %v3160 = vand.u32 %v3159, 4294901760
    %3161 = vmatmul.f32.gmra.mxu0 %v3160
    %v3162 = vpop.f32.mrf.mxu0
    %v3163 = vadd.f32 %v3136, %v3162
    %3164 = vdwg.mxu0
    %3165 = vmatpush.msra.mxu0 0.0
    %3166 = vmatpush.msra.mxu0 0.0
    %3167 = vmatpush.msra.mxu0 0.0
    %3168 = vmatpush.msra.mxu0 0.0
    %3169 = vmatpush.msra.mxu0 0.0
    %3170 = vmatpush.msra.mxu0 0.0
    %3171 = vmatpush.msra.mxu0 0.0
    %3172 = vmatpush.msra.mxu0 0.0
    %3173 = vmatpush.msra.mxu0 0.0
    %3174 = vmatpush.msra.mxu0 0.0
    %3175 = vmatpush.msra.mxu0 0.0
    %3176 = vmatpush.msra.mxu0 0.0
    %v3177 = vand.u32 %v2102, 4294901760
    %v3178 = vsub.f32 %v2102, %v3177
    %v3179 = vand.u32 %v3178, 4294901760
    %3180 = vmatpush.msra.mxu0 %v3179
    %v3181 = vand.u32 %v2101, 4294901760
    %v3182 = vsub.f32 %v2101, %v3181
    %v3183 = vand.u32 %v3182, 4294901760
    %3184 = vmatpush.msra.mxu0 %v3183
    %v3185 = vand.u32 %v2100, 4294901760
    %v3186 = vsub.f32 %v2100, %v3185
    %v3187 = vand.u32 %v3186, 4294901760
    %3188 = vmatpush.msra.mxu0 %v3187
    %v3189 = vand.u32 %v2099, 4294901760
    %v3190 = vsub.f32 %v2099, %v3189
    %v3191 = vand.u32 %v3190, 4294901760
    %3192 = vmatpush.msra.mxu0 %v3191
    %v3193 = vand.u32 %v3036, 4294901760
    %3194 = vmatmul.f32.gmra.mxu0 %v3193
    %v3195 = vpop.f32.mrf.mxu0
    %v3196 = vadd.f32 %v3163, %v3195
    %3197 = vdwg.mxu0
    %3198 = vmatpush.msra.mxu0 0.0
    %3199 = vmatpush.msra.mxu0 0.0
    %3200 = vmatpush.msra.mxu0 0.0
    %3201 = vmatpush.msra.mxu0 0.0
    %3202 = vmatpush.msra.mxu0 0.0
    %3203 = vmatpush.msra.mxu0 0.0
    %3204 = vmatpush.msra.mxu0 0.0
    %3205 = vmatpush.msra.mxu0 0.0
    %3206 = vmatpush.msra.mxu0 0.0
    %3207 = vmatpush.msra.mxu0 0.0
    %3208 = vmatpush.msra.mxu0 0.0
    %3209 = vmatpush.msra.mxu0 0.0
    %v3210 = vand.u32 %v2102, 4294901760
    %3211 = vmatpush.msra.mxu0 %v3210
    %v3212 = vand.u32 %v2101, 4294901760
    %3213 = vmatpush.msra.mxu0 %v3212
    %v3214 = vand.u32 %v2100, 4294901760
    %3215 = vmatpush.msra.mxu0 %v3214
    %v3216 = vand.u32 %v2099, 4294901760
    %3217 = vmatpush.msra.mxu0 %v3216
    %v3218 = vand.u32 %v3036, 4294901760
    %3219 = vmatmul.f32.gmra.mxu0 %v3218
    %v3220 = vpop.f32.mrf.mxu0
    %v3221 = vadd.f32 %v3196, %v3220
    %3222 = vdwg.mxu0
    %v3223 = vadd.f32 %v2357, %v3221
    %v3224 = vmul.f32 %v3223, %v103
    %v3225 = vtanh.pop %v3224
    %v3226 = vmul.f32 %v3225, 0.5
    %v3227 = vadd.f32 %v3226, 0.5
    %v3229 = vrot.slane %v3025, 6
    %v3231 = vmul.f32 %v3227, %v3229
    %3233 = vrot.lane.b32.xlu0 %v3225, 64
    %v3234 = vpop.permute.xlu0 %3233
    %v3236 = vmul.f32 %v3227, %v3234
    %3238 = vrot.lane.b32.xlu0 %v3236, 32
    %v3239 = vpop.permute.xlu0 %3238
    %v3241 = vadd.f32 %v3231, %v3239
    %v3242 = vtanh.pop %v3241
    %3244 = vrot.lane.b32.xlu0 %v3242, 64
    %v3245 = vpop.permute.xlu0 %3244
    %v3247 = vmul.f32 %v3227, %v3245
    %3249 = vrot.lane.b32.xlu0 %v3247, 32
    %v3250 = vpop.permute.xlu0 %3249
    %v3251 = vsel %vm346, %v3250, 0
    %3253 = vmatpush.msra.mxu0 0.0
    %3254 = vmatpush.msra.mxu0 0.0
    %3255 = vmatpush.msra.mxu0 0.0
    %3256 = vmatpush.msra.mxu0 0.0
    %3257 = vmatpush.msra.mxu0 0.0
    %3258 = vmatpush.msra.mxu0 0.0
    %3259 = vmatpush.msra.mxu0 0.0
    %3260 = vmatpush.msra.mxu0 0.0
    %3261 = vmatpush.msra.mxu0 0.0
    %3262 = vmatpush.msra.mxu0 0.0
    %3263 = vmatpush.msra.mxu0 0.0
    %3264 = vmatpush.msra.mxu0 0.0
    %v3265 = vand.u32 %v2102, 4294901760
    %3266 = vmatpush.msra.mxu0 %v3265
    %v3267 = vand.u32 %v2101, 4294901760
    %3268 = vmatpush.msra.mxu0 %v3267
    %v3269 = vand.u32 %v2100, 4294901760
    %3270 = vmatpush.msra.mxu0 %v3269
    %v3271 = vand.u32 %v2099, 4294901760
    %3272 = vmatpush.msra.mxu0 %v3271
    %v3273 = vand.u32 %v3251, 4294901760
    %v3274 = vsub.f32 %v3251, %v3273
    %v3275 = vand.u32 %v3274, 4294901760
    %v3276 = vsub.f32 %v3274, %v3275
    %v3277 = vand.u32 %v3276, 4294901760
    %3278 = vmatmul.f32.gmra.mxu0 %v3277
    %v3279 = vpop.f32.mrf.mxu0
    %v3280 = vadd.f32 0.0, %v3279
    %3281 = vdwg.mxu0
    %3282 = vmatpush.msra.mxu0 0.0
    %3283 = vmatpush.msra.mxu0 0.0
    %3284 = vmatpush.msra.mxu0 0.0
    %3285 = vmatpush.msra.mxu0 0.0
    %3286 = vmatpush.msra.mxu0 0.0
    %3287 = vmatpush.msra.mxu0 0.0
    %3288 = vmatpush.msra.mxu0 0.0
    %3289 = vmatpush.msra.mxu0 0.0
    %3290 = vmatpush.msra.mxu0 0.0
    %3291 = vmatpush.msra.mxu0 0.0
    %3292 = vmatpush.msra.mxu0 0.0
    %3293 = vmatpush.msra.mxu0 0.0
    %v3294 = vand.u32 %v2102, 4294901760
    %v3295 = vsub.f32 %v2102, %v3294
    %v3296 = vand.u32 %v3295, 4294901760
    %v3297 = vsub.f32 %v3295, %v3296
    %v3298 = vand.u32 %v3297, 4294901760
    %3299 = vmatpush.msra.mxu0 %v3298
    %v3300 = vand.u32 %v2101, 4294901760
    %v3301 = vsub.f32 %v2101, %v3300
    %v3302 = vand.u32 %v3301, 4294901760
    %v3303 = vsub.f32 %v3301, %v3302
    %v3304 = vand.u32 %v3303, 4294901760
    %3305 = vmatpush.msra.mxu0 %v3304
    %v3306 = vand.u32 %v2100, 4294901760
    %v3307 = vsub.f32 %v2100, %v3306
    %v3308 = vand.u32 %v3307, 4294901760
    %v3309 = vsub.f32 %v3307, %v3308
    %v3310 = vand.u32 %v3309, 4294901760
    %3311 = vmatpush.msra.mxu0 %v3310
    %v3312 = vand.u32 %v2099, 4294901760
    %v3313 = vsub.f32 %v2099, %v3312
    %v3314 = vand.u32 %v3313, 4294901760
    %v3315 = vsub.f32 %v3313, %v3314
    %v3316 = vand.u32 %v3315, 4294901760
    %3317 = vmatpush.msra.mxu0 %v3316
    %v3318 = vand.u32 %v3251, 4294901760
    %3319 = vmatmul.f32.gmra.mxu0 %v3318
    %v3320 = vpop.f32.mrf.mxu0
    %v3321 = vadd.f32 %v3280, %v3320
    %3322 = vdwg.mxu0
    %3323 = vmatpush.msra.mxu0 0.0
    %3324 = vmatpush.msra.mxu0 0.0
    %3325 = vmatpush.msra.mxu0 0.0
    %3326 = vmatpush.msra.mxu0 0.0
    %3327 = vmatpush.msra.mxu0 0.0
    %3328 = vmatpush.msra.mxu0 0.0
    %3329 = vmatpush.msra.mxu0 0.0
    %3330 = vmatpush.msra.mxu0 0.0
    %3331 = vmatpush.msra.mxu0 0.0
    %3332 = vmatpush.msra.mxu0 0.0
    %3333 = vmatpush.msra.mxu0 0.0
    %3334 = vmatpush.msra.mxu0 0.0
    %v3335 = vand.u32 %v2102, 4294901760
    %v3336 = vsub.f32 %v2102, %v3335
    %3337 = vmatpush.msra.mxu0 %v3336
    %v3338 = vand.u32 %v2101, 4294901760
    %v3339 = vsub.f32 %v2101, %v3338
    %3340 = vmatpush.msra.mxu0 %v3339
    %v3341 = vand.u32 %v2100, 4294901760
    %v3342 = vsub.f32 %v2100, %v3341
    %3343 = vmatpush.msra.mxu0 %v3342
    %v3344 = vand.u32 %v2099, 4294901760
    %v3345 = vsub.f32 %v2099, %v3344
    %3346 = vmatpush.msra.mxu0 %v3345
    %v3347 = vand.u32 %v3251, 4294901760
    %v3348 = vsub.f32 %v3251, %v3347
    %3349 = vmatmul.f32.gmra.mxu0 %v3348
    %v3350 = vpop.f32.mrf.mxu0
    %v3351 = vadd.f32 %v3321, %v3350
    %3352 = vdwg.mxu0
    %3353 = vmatpush.msra.mxu0 0.0
    %3354 = vmatpush.msra.mxu0 0.0
    %3355 = vmatpush.msra.mxu0 0.0
    %3356 = vmatpush.msra.mxu0 0.0
    %3357 = vmatpush.msra.mxu0 0.0
    %3358 = vmatpush.msra.mxu0 0.0
    %3359 = vmatpush.msra.mxu0 0.0
    %3360 = vmatpush.msra.mxu0 0.0
    %3361 = vmatpush.msra.mxu0 0.0
    %3362 = vmatpush.msra.mxu0 0.0
    %3363 = vmatpush.msra.mxu0 0.0
    %3364 = vmatpush.msra.mxu0 0.0
    %v3365 = vand.u32 %v2102, 4294901760
    %3366 = vmatpush.msra.mxu0 %v3365
    %v3367 = vand.u32 %v2101, 4294901760
    %3368 = vmatpush.msra.mxu0 %v3367
    %v3369 = vand.u32 %v2100, 4294901760
    %3370 = vmatpush.msra.mxu0 %v3369
    %v3371 = vand.u32 %v2099, 4294901760
    %3372 = vmatpush.msra.mxu0 %v3371
    %v3373 = vand.u32 %v3251, 4294901760
    %v3374 = vsub.f32 %v3251, %v3373
    %v3375 = vand.u32 %v3374, 4294901760
    %3376 = vmatmul.f32.gmra.mxu0 %v3375
    %v3377 = vpop.f32.mrf.mxu0
    %v3378 = vadd.f32 %v3351, %v3377
    %3379 = vdwg.mxu0
    %3380 = vmatpush.msra.mxu0 0.0
    %3381 = vmatpush.msra.mxu0 0.0
    %3382 = vmatpush.msra.mxu0 0.0
    %3383 = vmatpush.msra.mxu0 0.0
    %3384 = vmatpush.msra.mxu0 0.0
    %3385 = vmatpush.msra.mxu0 0.0
    %3386 = vmatpush.msra.mxu0 0.0
    %3387 = vmatpush.msra.mxu0 0.0
    %3388 = vmatpush.msra.mxu0 0.0
    %3389 = vmatpush.msra.mxu0 0.0
    %3390 = vmatpush.msra.mxu0 0.0
    %3391 = vmatpush.msra.mxu0 0.0
    %v3392 = vand.u32 %v2102, 4294901760
    %v3393 = vsub.f32 %v2102, %v3392
    %v3394 = vand.u32 %v3393, 4294901760
    %3395 = vmatpush.msra.mxu0 %v3394
    %v3396 = vand.u32 %v2101, 4294901760
    %v3397 = vsub.f32 %v2101, %v3396
    %v3398 = vand.u32 %v3397, 4294901760
    %3399 = vmatpush.msra.mxu0 %v3398
    %v3400 = vand.u32 %v2100, 4294901760
    %v3401 = vsub.f32 %v2100, %v3400
    %v3402 = vand.u32 %v3401, 4294901760
    %3403 = vmatpush.msra.mxu0 %v3402
    %v3404 = vand.u32 %v2099, 4294901760
    %v3405 = vsub.f32 %v2099, %v3404
    %v3406 = vand.u32 %v3405, 4294901760
    %3407 = vmatpush.msra.mxu0 %v3406
    %v3408 = vand.u32 %v3251, 4294901760
    %3409 = vmatmul.f32.gmra.mxu0 %v3408
    %v3410 = vpop.f32.mrf.mxu0
    %v3411 = vadd.f32 %v3378, %v3410
    %3412 = vdwg.mxu0
    %3413 = vmatpush.msra.mxu0 0.0
    %3414 = vmatpush.msra.mxu0 0.0
    %3415 = vmatpush.msra.mxu0 0.0
    %3416 = vmatpush.msra.mxu0 0.0
    %3417 = vmatpush.msra.mxu0 0.0
    %3418 = vmatpush.msra.mxu0 0.0
    %3419 = vmatpush.msra.mxu0 0.0
    %3420 = vmatpush.msra.mxu0 0.0
    %3421 = vmatpush.msra.mxu0 0.0
    %3422 = vmatpush.msra.mxu0 0.0
    %3423 = vmatpush.msra.mxu0 0.0
    %3424 = vmatpush.msra.mxu0 0.0
    %v3425 = vand.u32 %v2102, 4294901760
    %3426 = vmatpush.msra.mxu0 %v3425
    %v3427 = vand.u32 %v2101, 4294901760
    %3428 = vmatpush.msra.mxu0 %v3427
    %v3429 = vand.u32 %v2100, 4294901760
    %3430 = vmatpush.msra.mxu0 %v3429
    %v3431 = vand.u32 %v2099, 4294901760
    %3432 = vmatpush.msra.mxu0 %v3431
    %v3433 = vand.u32 %v3251, 4294901760
    %3434 = vmatmul.f32.gmra.mxu0 %v3433
    %v3435 = vpop.f32.mrf.mxu0
    %v3436 = vadd.f32 %v3411, %v3435
    %3437 = vdwg.mxu0
    %v3439 = vrot.slane %v3436, 6
    %v3441 = vadd.f32 %v2357, %v3439
    %v3442 = vmul.f32 %v3441, %v103
    %v3443 = vtanh.pop %v3442
    %v3444 = vmul.f32 %v3443, 0.5
    %v3445 = vadd.f32 %v3444, 0.5
    %v3447 = vrot.slane %v3241, 6
    %v3449 = vmul.f32 %v3445, %v3447
    %3451 = vrot.lane.b32.xlu0 %v3443, 64
    %v3452 = vpop.permute.xlu0 %3451
    %v3454 = vmul.f32 %v3445, %v3452
    %3456 = vrot.lane.b32.xlu0 %v3454, 32
    %v3457 = vpop.permute.xlu0 %3456
    %v3459 = vadd.f32 %v3449, %v3457
    %v3460 = vtanh.pop %v3459
    %3462 = vrot.lane.b32.xlu0 %v3460, 64
    %v3463 = vpop.permute.xlu0 %3462
    %v3465 = vmul.f32 %v3445, %v3463
    %v3467 = vrot.slane %v3465, 2
    %3468 = vrot.lane.b32.xlu0 %v3467, 32
    %v3469 = vpop.permute.xlu0 %3468
    %v3470 = vsel %vm346, %v3469, 0
    %3472 = vmatpush.msra.mxu0 0.0
    %3473 = vmatpush.msra.mxu0 0.0
    %3474 = vmatpush.msra.mxu0 0.0
    %3475 = vmatpush.msra.mxu0 0.0
    %3476 = vmatpush.msra.mxu0 0.0
    %3477 = vmatpush.msra.mxu0 0.0
    %3478 = vmatpush.msra.mxu0 0.0
    %3479 = vmatpush.msra.mxu0 0.0
    %3480 = vmatpush.msra.mxu0 0.0
    %3481 = vmatpush.msra.mxu0 0.0
    %3482 = vmatpush.msra.mxu0 0.0
    %3483 = vmatpush.msra.mxu0 0.0
    %v3484 = vand.u32 %v2102, 4294901760
    %3485 = vmatpush.msra.mxu0 %v3484
    %v3486 = vand.u32 %v2101, 4294901760
    %3487 = vmatpush.msra.mxu0 %v3486
    %v3488 = vand.u32 %v2100, 4294901760
    %3489 = vmatpush.msra.mxu0 %v3488
    %v3490 = vand.u32 %v2099, 4294901760
    %3491 = vmatpush.msra.mxu0 %v3490
    %v3492 = vand.u32 %v3470, 4294901760
    %v3493 = vsub.f32 %v3470, %v3492
    %v3494 = vand.u32 %v3493, 4294901760
    %v3495 = vsub.f32 %v3493, %v3494
    %v3496 = vand.u32 %v3495, 4294901760
    %3497 = vmatmul.f32.gmra.mxu0 %v3496
    %v3498 = vpop.f32.mrf.mxu0
    %v3499 = vadd.f32 0.0, %v3498
    %3500 = vdwg.mxu0
    %3501 = vmatpush.msra.mxu0 0.0
    %3502 = vmatpush.msra.mxu0 0.0
    %3503 = vmatpush.msra.mxu0 0.0
    %3504 = vmatpush.msra.mxu0 0.0
    %3505 = vmatpush.msra.mxu0 0.0
    %3506 = vmatpush.msra.mxu0 0.0
    %3507 = vmatpush.msra.mxu0 0.0
    %3508 = vmatpush.msra.mxu0 0.0
    %3509 = vmatpush.msra.mxu0 0.0
    %3510 = vmatpush.msra.mxu0 0.0
    %3511 = vmatpush.msra.mxu0 0.0
    %3512 = vmatpush.msra.mxu0 0.0
    %v3513 = vand.u32 %v2102, 4294901760
    %v3514 = vsub.f32 %v2102, %v3513
    %v3515 = vand.u32 %v3514, 4294901760
    %v3516 = vsub.f32 %v3514, %v3515
    %v3517 = vand.u32 %v3516, 4294901760
    %3518 = vmatpush.msra.mxu0 %v3517
    %v3519 = vand.u32 %v2101, 4294901760
    %v3520 = vsub.f32 %v2101, %v3519
    %v3521 = vand.u32 %v3520, 4294901760
    %v3522 = vsub.f32 %v3520, %v3521
    %v3523 = vand.u32 %v3522, 4294901760
    %3524 = vmatpush.msra.mxu0 %v3523
    %v3525 = vand.u32 %v2100, 4294901760
    %v3526 = vsub.f32 %v2100, %v3525
    %v3527 = vand.u32 %v3526, 4294901760
    %v3528 = vsub.f32 %v3526, %v3527
    %v3529 = vand.u32 %v3528, 4294901760
    %3530 = vmatpush.msra.mxu0 %v3529
    %v3531 = vand.u32 %v2099, 4294901760
    %v3532 = vsub.f32 %v2099, %v3531
    %v3533 = vand.u32 %v3532, 4294901760
    %v3534 = vsub.f32 %v3532, %v3533
    %v3535 = vand.u32 %v3534, 4294901760
    %3536 = vmatpush.msra.mxu0 %v3535
    %v3537 = vand.u32 %v3470, 4294901760
    %3538 = vmatmul.f32.gmra.mxu0 %v3537
    %v3539 = vpop.f32.mrf.mxu0
    %v3540 = vadd.f32 %v3499, %v3539
    %3541 = vdwg.mxu0
    %3542 = vmatpush.msra.mxu0 0.0
    %3543 = vmatpush.msra.mxu0 0.0
    %3544 = vmatpush.msra.mxu0 0.0
    %3545 = vmatpush.msra.mxu0 0.0
    %3546 = vmatpush.msra.mxu0 0.0
    %3547 = vmatpush.msra.mxu0 0.0
    %3548 = vmatpush.msra.mxu0 0.0
    %3549 = vmatpush.msra.mxu0 0.0
    %3550 = vmatpush.msra.mxu0 0.0
    %3551 = vmatpush.msra.mxu0 0.0
    %3552 = vmatpush.msra.mxu0 0.0
    %3553 = vmatpush.msra.mxu0 0.0
    %v3554 = vand.u32 %v2102, 4294901760
    %v3555 = vsub.f32 %v2102, %v3554
    %3556 = vmatpush.msra.mxu0 %v3555
    %v3557 = vand.u32 %v2101, 4294901760
    %v3558 = vsub.f32 %v2101, %v3557
    %3559 = vmatpush.msra.mxu0 %v3558
    %v3560 = vand.u32 %v2100, 4294901760
    %v3561 = vsub.f32 %v2100, %v3560
    %3562 = vmatpush.msra.mxu0 %v3561
    %v3563 = vand.u32 %v2099, 4294901760
    %v3564 = vsub.f32 %v2099, %v3563
    %3565 = vmatpush.msra.mxu0 %v3564
    %v3566 = vand.u32 %v3470, 4294901760
    %v3567 = vsub.f32 %v3470, %v3566
    %3568 = vmatmul.f32.gmra.mxu0 %v3567
    %v3569 = vpop.f32.mrf.mxu0
    %v3570 = vadd.f32 %v3540, %v3569
    %3571 = vdwg.mxu0
    %3572 = vmatpush.msra.mxu0 0.0
    %3573 = vmatpush.msra.mxu0 0.0
    %3574 = vmatpush.msra.mxu0 0.0
    %3575 = vmatpush.msra.mxu0 0.0
    %3576 = vmatpush.msra.mxu0 0.0
    %3577 = vmatpush.msra.mxu0 0.0
    %3578 = vmatpush.msra.mxu0 0.0
    %3579 = vmatpush.msra.mxu0 0.0
    %3580 = vmatpush.msra.mxu0 0.0
    %3581 = vmatpush.msra.mxu0 0.0
    %3582 = vmatpush.msra.mxu0 0.0
    %3583 = vmatpush.msra.mxu0 0.0
    %v3584 = vand.u32 %v2102, 4294901760
    %3585 = vmatpush.msra.mxu0 %v3584
    %v3586 = vand.u32 %v2101, 4294901760
    %3587 = vmatpush.msra.mxu0 %v3586
    %v3588 = vand.u32 %v2100, 4294901760
    %3589 = vmatpush.msra.mxu0 %v3588
    %v3590 = vand.u32 %v2099, 4294901760
    %3591 = vmatpush.msra.mxu0 %v3590
    %v3592 = vand.u32 %v3470, 4294901760
    %v3593 = vsub.f32 %v3470, %v3592
    %v3594 = vand.u32 %v3593, 4294901760
    %3595 = vmatmul.f32.gmra.mxu0 %v3594
    %v3596 = vpop.f32.mrf.mxu0
    %v3597 = vadd.f32 %v3570, %v3596
    %3598 = vdwg.mxu0
    %3599 = vmatpush.msra.mxu0 0.0
    %3600 = vmatpush.msra.mxu0 0.0
    %3601 = vmatpush.msra.mxu0 0.0
    %3602 = vmatpush.msra.mxu0 0.0
    %3603 = vmatpush.msra.mxu0 0.0
    %3604 = vmatpush.msra.mxu0 0.0
    %3605 = vmatpush.msra.mxu0 0.0
    %3606 = vmatpush.msra.mxu0 0.0
    %3607 = vmatpush.msra.mxu0 0.0
    %3608 = vmatpush.msra.mxu0 0.0
    %3609 = vmatpush.msra.mxu0 0.0
    %3610 = vmatpush.msra.mxu0 0.0
    %v3611 = vand.u32 %v2102, 4294901760
    %v3612 = vsub.f32 %v2102, %v3611
    %v3613 = vand.u32 %v3612, 4294901760
    %3614 = vmatpush.msra.mxu0 %v3613
    %v3615 = vand.u32 %v2101, 4294901760
    %v3616 = vsub.f32 %v2101, %v3615
    %v3617 = vand.u32 %v3616, 4294901760
    %3618 = vmatpush.msra.mxu0 %v3617
    %v3619 = vand.u32 %v2100, 4294901760
    %v3620 = vsub.f32 %v2100, %v3619
    %v3621 = vand.u32 %v3620, 4294901760
    %3622 = vmatpush.msra.mxu0 %v3621
    %v3623 = vand.u32 %v2099, 4294901760
    %v3624 = vsub.f32 %v2099, %v3623
    %v3625 = vand.u32 %v3624, 4294901760
    %3626 = vmatpush.msra.mxu0 %v3625
    %v3627 = vand.u32 %v3470, 4294901760
    %3628 = vmatmul.f32.gmra.mxu0 %v3627
    %v3629 = vpop.f32.mrf.mxu0
    %v3630 = vadd.f32 %v3597, %v3629
    %3631 = vdwg.mxu0
    %3632 = vmatpush.msra.mxu0 0.0
    %3633 = vmatpush.msra.mxu0 0.0
    %3634 = vmatpush.msra.mxu0 0.0
    %3635 = vmatpush.msra.mxu0 0.0
    %3636 = vmatpush.msra.mxu0 0.0
    %3637 = vmatpush.msra.mxu0 0.0
    %3638 = vmatpush.msra.mxu0 0.0
    %3639 = vmatpush.msra.mxu0 0.0
    %3640 = vmatpush.msra.mxu0 0.0
    %3641 = vmatpush.msra.mxu0 0.0
    %3642 = vmatpush.msra.mxu0 0.0
    %3643 = vmatpush.msra.mxu0 0.0
    %v3644 = vand.u32 %v2102, 4294901760
    %3645 = vmatpush.msra.mxu0 %v3644
    %v3646 = vand.u32 %v2101, 4294901760
    %3647 = vmatpush.msra.mxu0 %v3646
    %v3648 = vand.u32 %v2100, 4294901760
    %3649 = vmatpush.msra.mxu0 %v3648
    %v3650 = vand.u32 %v2099, 4294901760
    %3651 = vmatpush.msra.mxu0 %v3650
    %v3652 = vand.u32 %v3470, 4294901760
    %3653 = vmatmul.f32.gmra.mxu0 %v3652
    %v3654 = vpop.f32.mrf.mxu0
    %v3655 = vadd.f32 %v3630, %v3654
    %3656 = vdwg.mxu0
    %v3658 = vrot.slane %v3655, 4
    %v3660 = vadd.f32 %v2357, %v3658
    %v3661 = vmul.f32 %v3660, %v103
    %v3662 = vtanh.pop %v3661
    %v3663 = vmul.f32 %v3662, 0.5
    %v3664 = vadd.f32 %v3663, 0.5
    %v3666 = vrot.slane %v3459, 6
    %v3668 = vmul.f32 %v3664, %v3666
    %3670 = vrot.lane.b32.xlu0 %v3662, 64
    %v3671 = vpop.permute.xlu0 %3670
    %v3673 = vmul.f32 %v3664, %v3671
    %3675 = vrot.lane.b32.xlu0 %v3673, 32
    %v3676 = vpop.permute.xlu0 %3675
    %v3678 = vadd.f32 %v3668, %v3676
    %v3679 = vtanh.pop %v3678
    %3681 = vrot.lane.b32.xlu0 %v3679, 64
    %v3682 = vpop.permute.xlu0 %3681
    %v3684 = vmul.f32 %v3664, %v3682
    %v3686 = vrot.slane %v3684, 4
    %3687 = vrot.lane.b32.xlu0 %v3686, 32
    %v3688 = vpop.permute.xlu0 %3687
    %v3689 = vsel %vm346, %v3688, 0
    %3691 = vmatpush.msra.mxu0 0.0
    %3692 = vmatpush.msra.mxu0 0.0
    %3693 = vmatpush.msra.mxu0 0.0
    %3694 = vmatpush.msra.mxu0 0.0
    %3695 = vmatpush.msra.mxu0 0.0
    %3696 = vmatpush.msra.mxu0 0.0
    %3697 = vmatpush.msra.mxu0 0.0
    %3698 = vmatpush.msra.mxu0 0.0
    %3699 = vmatpush.msra.mxu0 0.0
    %3700 = vmatpush.msra.mxu0 0.0
    %3701 = vmatpush.msra.mxu0 0.0
    %3702 = vmatpush.msra.mxu0 0.0
    %v3703 = vand.u32 %v2102, 4294901760
    %3704 = vmatpush.msra.mxu0 %v3703
    %v3705 = vand.u32 %v2101, 4294901760
    %3706 = vmatpush.msra.mxu0 %v3705
    %v3707 = vand.u32 %v2100, 4294901760
    %3708 = vmatpush.msra.mxu0 %v3707
    %v3709 = vand.u32 %v2099, 4294901760
    %3710 = vmatpush.msra.mxu0 %v3709
    %v3711 = vand.u32 %v3689, 4294901760
    %v3712 = vsub.f32 %v3689, %v3711
    %v3713 = vand.u32 %v3712, 4294901760
    %v3714 = vsub.f32 %v3712, %v3713
    %v3715 = vand.u32 %v3714, 4294901760
    %3716 = vmatmul.f32.gmra.mxu0 %v3715
    %v3717 = vpop.f32.mrf.mxu0
    %v3718 = vadd.f32 0.0, %v3717
    %3719 = vdwg.mxu0
    %3720 = vmatpush.msra.mxu0 0.0
    %3721 = vmatpush.msra.mxu0 0.0
    %3722 = vmatpush.msra.mxu0 0.0
    %3723 = vmatpush.msra.mxu0 0.0
    %3724 = vmatpush.msra.mxu0 0.0
    %3725 = vmatpush.msra.mxu0 0.0
    %3726 = vmatpush.msra.mxu0 0.0
    %3727 = vmatpush.msra.mxu0 0.0
    %3728 = vmatpush.msra.mxu0 0.0
    %3729 = vmatpush.msra.mxu0 0.0
    %3730 = vmatpush.msra.mxu0 0.0
    %3731 = vmatpush.msra.mxu0 0.0
    %v3732 = vand.u32 %v2102, 4294901760
    %v3733 = vsub.f32 %v2102, %v3732
    %v3734 = vand.u32 %v3733, 4294901760
    %v3735 = vsub.f32 %v3733, %v3734
    %v3736 = vand.u32 %v3735, 4294901760
    %3737 = vmatpush.msra.mxu0 %v3736
    %v3738 = vand.u32 %v2101, 4294901760
    %v3739 = vsub.f32 %v2101, %v3738
    %v3740 = vand.u32 %v3739, 4294901760
    %v3741 = vsub.f32 %v3739, %v3740
    %v3742 = vand.u32 %v3741, 4294901760
    %3743 = vmatpush.msra.mxu0 %v3742
    %v3744 = vand.u32 %v2100, 4294901760
    %v3745 = vsub.f32 %v2100, %v3744
    %v3746 = vand.u32 %v3745, 4294901760
    %v3747 = vsub.f32 %v3745, %v3746
    %v3748 = vand.u32 %v3747, 4294901760
    %3749 = vmatpush.msra.mxu0 %v3748
    %v3750 = vand.u32 %v2099, 4294901760
    %v3751 = vsub.f32 %v2099, %v3750
    %v3752 = vand.u32 %v3751, 4294901760
    %v3753 = vsub.f32 %v3751, %v3752
    %v3754 = vand.u32 %v3753, 4294901760
    %3755 = vmatpush.msra.mxu0 %v3754
    %v3756 = vand.u32 %v3689, 4294901760
    %3757 = vmatmul.f32.gmra.mxu0 %v3756
    %v3758 = vpop.f32.mrf.mxu0
    %v3759 = vadd.f32 %v3718, %v3758
    %3760 = vdwg.mxu0
    %3761 = vmatpush.msra.mxu0 0.0
    %3762 = vmatpush.msra.mxu0 0.0
    %3763 = vmatpush.msra.mxu0 0.0
    %3764 = vmatpush.msra.mxu0 0.0
    %3765 = vmatpush.msra.mxu0 0.0
    %3766 = vmatpush.msra.mxu0 0.0
    %3767 = vmatpush.msra.mxu0 0.0
    %3768 = vmatpush.msra.mxu0 0.0
    %3769 = vmatpush.msra.mxu0 0.0
    %3770 = vmatpush.msra.mxu0 0.0
    %3771 = vmatpush.msra.mxu0 0.0
    %3772 = vmatpush.msra.mxu0 0.0
    %v3773 = vand.u32 %v2102, 4294901760
    %v3774 = vsub.f32 %v2102, %v3773
    %3775 = vmatpush.msra.mxu0 %v3774
    %v3776 = vand.u32 %v2101, 4294901760
    %v3777 = vsub.f32 %v2101, %v3776
    %3778 = vmatpush.msra.mxu0 %v3777
    %v3779 = vand.u32 %v2100, 4294901760
    %v3780 = vsub.f32 %v2100, %v3779
    %3781 = vmatpush.msra.mxu0 %v3780
    %v3782 = vand.u32 %v2099, 4294901760
    %v3783 = vsub.f32 %v2099, %v3782
    %3784 = vmatpush.msra.mxu0 %v3783
    %v3785 = vand.u32 %v3689, 4294901760
    %v3786 = vsub.f32 %v3689, %v3785
    %3787 = vmatmul.f32.gmra.mxu0 %v3786
    %v3788 = vpop.f32.mrf.mxu0
    %v3789 = vadd.f32 %v3759, %v3788
    %3790 = vdwg.mxu0
    %3791 = vmatpush.msra.mxu0 0.0
    %3792 = vmatpush.msra.mxu0 0.0
    %3793 = vmatpush.msra.mxu0 0.0
    %3794 = vmatpush.msra.mxu0 0.0
    %3795 = vmatpush.msra.mxu0 0.0
    %3796 = vmatpush.msra.mxu0 0.0
    %3797 = vmatpush.msra.mxu0 0.0
    %3798 = vmatpush.msra.mxu0 0.0
    %3799 = vmatpush.msra.mxu0 0.0
    %3800 = vmatpush.msra.mxu0 0.0
    %3801 = vmatpush.msra.mxu0 0.0
    %3802 = vmatpush.msra.mxu0 0.0
    %v3803 = vand.u32 %v2102, 4294901760
    %3804 = vmatpush.msra.mxu0 %v3803
    %v3805 = vand.u32 %v2101, 4294901760
    %3806 = vmatpush.msra.mxu0 %v3805
    %v3807 = vand.u32 %v2100, 4294901760
    %3808 = vmatpush.msra.mxu0 %v3807
    %v3809 = vand.u32 %v2099, 4294901760
    %3810 = vmatpush.msra.mxu0 %v3809
    %v3811 = vand.u32 %v3689, 4294901760
    %v3812 = vsub.f32 %v3689, %v3811
    %v3813 = vand.u32 %v3812, 4294901760
    %3814 = vmatmul.f32.gmra.mxu0 %v3813
    %v3815 = vpop.f32.mrf.mxu0
    %v3816 = vadd.f32 %v3789, %v3815
    %3817 = vdwg.mxu0
    %3818 = vmatpush.msra.mxu0 0.0
    %3819 = vmatpush.msra.mxu0 0.0
    %3820 = vmatpush.msra.mxu0 0.0
    %3821 = vmatpush.msra.mxu0 0.0
    %3822 = vmatpush.msra.mxu0 0.0
    %3823 = vmatpush.msra.mxu0 0.0
    %3824 = vmatpush.msra.mxu0 0.0
    %3825 = vmatpush.msra.mxu0 0.0
    %3826 = vmatpush.msra.mxu0 0.0
    %3827 = vmatpush.msra.mxu0 0.0
    %3828 = vmatpush.msra.mxu0 0.0
    %3829 = vmatpush.msra.mxu0 0.0
    %v3830 = vand.u32 %v2102, 4294901760
    %v3831 = vsub.f32 %v2102, %v3830
    %v3832 = vand.u32 %v3831, 4294901760
    %3833 = vmatpush.msra.mxu0 %v3832
    %v3834 = vand.u32 %v2101, 4294901760
    %v3835 = vsub.f32 %v2101, %v3834
    %v3836 = vand.u32 %v3835, 4294901760
    %3837 = vmatpush.msra.mxu0 %v3836
    %v3838 = vand.u32 %v2100, 4294901760
    %v3839 = vsub.f32 %v2100, %v3838
    %v3840 = vand.u32 %v3839, 4294901760
    %3841 = vmatpush.msra.mxu0 %v3840
    %v3842 = vand.u32 %v2099, 4294901760
    %v3843 = vsub.f32 %v2099, %v3842
    %v3844 = vand.u32 %v3843, 4294901760
    %3845 = vmatpush.msra.mxu0 %v3844
    %v3846 = vand.u32 %v3689, 4294901760
    %3847 = vmatmul.f32.gmra.mxu0 %v3846
    %v3848 = vpop.f32.mrf.mxu0
    %v3849 = vadd.f32 %v3816, %v3848
    %3850 = vdwg.mxu0
    %3851 = vmatpush.msra.mxu0 0.0
    %3852 = vmatpush.msra.mxu0 0.0
    %3853 = vmatpush.msra.mxu0 0.0
    %3854 = vmatpush.msra.mxu0 0.0
    %3855 = vmatpush.msra.mxu0 0.0
    %3856 = vmatpush.msra.mxu0 0.0
    %3857 = vmatpush.msra.mxu0 0.0
    %3858 = vmatpush.msra.mxu0 0.0
    %3859 = vmatpush.msra.mxu0 0.0
    %3860 = vmatpush.msra.mxu0 0.0
    %3861 = vmatpush.msra.mxu0 0.0
    %3862 = vmatpush.msra.mxu0 0.0
    %v3863 = vand.u32 %v2102, 4294901760
    %3864 = vmatpush.msra.mxu0 %v3863
    %v3865 = vand.u32 %v2101, 4294901760
    %3866 = vmatpush.msra.mxu0 %v3865
    %v3867 = vand.u32 %v2100, 4294901760
    %3868 = vmatpush.msra.mxu0 %v3867
    %v3869 = vand.u32 %v2099, 4294901760
    %3870 = vmatpush.msra.mxu0 %v3869
    %v3871 = vand.u32 %v3689, 4294901760
    %3872 = vmatmul.f32.gmra.mxu0 %v3871
    %v3873 = vpop.f32.mrf.mxu0
    %v3874 = vadd.f32 %v3849, %v3873
    %3875 = vdwg.mxu0
    %v3877 = vrot.slane %v3874, 2
    %v3879 = vadd.f32 %v2357, %v3877
    %v3880 = vmul.f32 %v3879, %v103
    %v3881 = vtanh.pop %v3880
    %v3882 = vmul.f32 %v3881, 0.5
    %v3883 = vadd.f32 %v3882, 0.5
    %v3885 = vrot.slane %v3678, 6
    %v3887 = vmul.f32 %v3883, %v3885
    %3889 = vrot.lane.b32.xlu0 %v3881, 64
    %v3890 = vpop.permute.xlu0 %3889
    %v3892 = vmul.f32 %v3883, %v3890
    %3894 = vrot.lane.b32.xlu0 %v3892, 32
    %v3895 = vpop.permute.xlu0 %3894
    %v3897 = vadd.f32 %v3887, %v3895
    %v3898 = vtanh.pop %v3897
    %3900 = vrot.lane.b32.xlu0 %v3898, 64
    %v3901 = vpop.permute.xlu0 %3900
    %v3903 = vmul.f32 %v3883, %v3901
    %3905 = vrot.lane.b32.xlu0 %v2595, 64
    %v3906 = vpop.permute.xlu0 %3905
    %3908 = vrot.lane.b32.xlu0 %v2814, 96
    %v3909 = vpop.permute.xlu0 %3908
    %3913 = vrot.lane.b32.xlu0 %v3467, 64
    %v3914 = vpop.permute.xlu0 %3913
    %3916 = vrot.lane.b32.xlu0 %v3686, 96
    %v3917 = vpop.permute.xlu0 %3916
    %v3920 = vrot.slane %v3903, 6
    %v3922 = vsel %vm346, %v2376, %v3906
    %vm3923 = vcmask 523264
    %v3924 = vsel %vm3923, %v3922, %v3909
    %vm3925 = vcmask 785408
    %v3926 = vsel %vm3925, %v3924, %v3033
    %v3927 = vsel %vm346, %v3250, %v3914
    %v3928 = vsel %vm3923, %v3927, %v3917
    %v3929 = vsel %vm3925, %v3928, %v3920
    %v3930 = vmul.f32 %v3926, 0.5
    %v3931 = vmul.f32 %v3929, 0.5
    %v3932 = vtanh.pop %v3930
    %v3933 = vtanh.pop %v3931
    %v3934 = vmul.f32 %v3932, 0.5
    %v3935 = vmul.f32 %v3933, 0.5
    %v3936 = vadd.f32 %v3934, 0.5
    %v3937 = vadd.f32 %v3935, 0.5
    %v3940 = vrot.slane %v3937, 6
    %vm3941 = vcmask 1041408
    %v3942 = vsel %vm3941, %v3936, %v3940
    %3944 = vst [vmem:[%s5] sm:$0xf] %v3942
    // Predicated region
    $region42: #{rnn1_forward.1} parent=1 // pred_check
      _
    $region43: #{rnn1_forward.1} parent=1 // pred_check_branch
      %3946 = sbr.rel (0) target = $region45
    $region44: #{rnn1_forward.1} parent=1 // pred_region
      _
    $region45: #{rnn1_forward.1} parent=1 // pred_fallthru
      _
    // Predicated region
    $region46: #{rnn1_forward.1} parent=1 // pred_check
      _
    $region47: #{rnn1_forward.1} parent=1 // pred_check_branch
      %3948 = sbr.rel (0) target = $region49
    $region48: #{rnn1_forward.1} parent=1 // pred_region
      _
    $region49: #{rnn1_forward.1} parent=1 // pred_fallthru
      _
    %3949 = vsyncpa [#allocation3], 1
    %3950 = vsyncpa [#allocation5], 1
    %3951 = vsyncpa [#allocation8], 1

</llo_original>
